<compile_context>
chip_gen: v5e
topology: v5e:2x2
jax: 0.10.0
libtpu: 0.0.40
codegen_flags: <defaults>
</compile_context>

<pallas_src>
import jax
import jax.numpy as jnp
from jax.experimental import pallas as pl
from jax.experimental.pallas import tpu as pltpu


def _make_kernel(n_heads, key_ch, output_ch):
    dk = key_ch // n_heads
    do = output_ch // n_heads

    def kernel(x_ref, y_ref, m_ref, counts_ref, gain_ref, obias_ref,
               wq_ref, bq_ref, wk_ref, bk_ref, wv_ref, bv_ref, out_ref):
        b = pl.program_id(0)

        y_t = y_ref[0]                    # (C_img, S_q)    queries (pixels), transposed
        x_t = x_ref[0]                    # (D_v, S_v_pad)  keys/values, transposed + padded
        mask = m_ref[0]                   # (1, S_v_pad)    float 0/1 (padding = 0)

        # ---- projections, kept transposed: (channels, positions) ------------------
        qT = jnp.dot(wq_ref[...], y_t, preferred_element_type=jnp.float32) + bq_ref[...]   # (key_ch, S_q)
        kT = jnp.dot(wk_ref[...], x_t, preferred_element_type=jnp.float32) + bk_ref[...]   # (key_ch, S_v_pad)
        vT = jnp.dot(wv_ref[...], x_t, preferred_element_type=jnp.float32) + bv_ref[...]   # (output_ch, S_v_pad)

        cnt = jnp.maximum(counts_ref[b], 1.0)   # clamp for robustness (all-masked rows)
        inv_cnt = 1.0 / cnt
        inv_sqrt_cnt = jax.lax.rsqrt(cnt)

        # overall-weighting pooled scores, refactored:
        #   pooled[q] = sum_s scores[q,s]*mask[s]/cnt = q[q,:] . kbar,  kbar = (mask @ k)/cnt
        kbarT = jax.lax.dot_general(kT, mask, (((1,), (1,)), ((), ())),
                                    preferred_element_type=jnp.float32) * inv_cnt           # (key_ch, 1)

        # fold 1/sqrt(cnt) into k once (cheaper than scaling the (S_q, S_v) scores per head)
        kTs = kT * inv_sqrt_cnt                                                              # (key_ch, S_v_pad)

        # large finite negative instead of -inf (padding / all-masked robustness)
        add_mask = jnp.where(mask == 0.0, jnp.float32(-1e30), jnp.float32(0.0))              # (1, S_v_pad)

        for h in range(n_heads):
            # head slices are aligned 8-row sublane bands (no sub-128-lane slicing)
            qhT = qT[h * dk:(h + 1) * dk, :]          # (dk, S_q)
            khT = kTs[h * dk:(h + 1) * dk, :]         # (dk, S_v_pad)
            vhT = vT[h * do:(h + 1) * do, :]          # (do, S_v_pad)
            kbar_h = kbarT[h * dk:(h + 1) * dk, :]    # (dk, 1)

            # scores[q, s] = (q_h[q,:] . k_h[s,:]) / sqrt(cnt)
            scores = jax.lax.dot_general(qhT, khT, (((0,), (0,)), ((), ())),
                                         preferred_element_type=jnp.float32)                # (S_q, S_v_pad)

            # overall-weight gate, already transposed: (1, S_q)
            pooledT = jax.lax.dot_general(kbar_h, qhT, (((0,), (0,)), ((), ())),
                                          preferred_element_type=jnp.float32)               # (1, S_q)
            overall_wT = jax.nn.sigmoid(pooledT * gain_ref[h] + obias_ref[h])                # (1, S_q)

            # masked softmax over key positions (manual; reciprocal rides the EUP)
            masked = scores + add_mask
            row_max = jnp.max(masked, axis=-1, keepdims=True)                                # (S_q, 1)
            p = jnp.exp(masked - row_max)
            denom = jnp.sum(p, axis=-1, keepdims=True)                                       # (S_q, 1)
            sm = p * pl.reciprocal(denom, approx=True)                                       # (S_q, S_v_pad)

            # head output already transposed: (do, S_q) = v_h^T @ sm^T
            houtT = jax.lax.dot_general(vhT, sm, (((1,), (1,)), ((), ())),
                                        preferred_element_type=jnp.float32)                  # (do, S_q)

            # lane-dense store straight into this head's sublane band
            out_ref[0, h * do:(h + 1) * do, :] = (houtT * overall_wT).astype(out_ref.dtype)

    return kernel


def seq_to_image_pallas(x, masks, counts, y, params, n_heads):
    B, C_img, H_img, W_img = y.shape
    S_q = H_img * W_img
    _, S_v, D_v = x.shape
    key_ch = params['wq'].shape[0]
    output_ch = params['wv'].shape[0]

    # Pad the key/value sequence length up to a full 128-lane tile.
    S_vp = ((S_v + 127) // 128) * 128

    # x: (B, S_v, D_v) -> (B, D_v, S_vp)  (transposed + zero-padded key axis)
    xT = jnp.transpose(x.astype(jnp.float32), (0, 2, 1))
    xT = jnp.pad(xT, ((0, 0), (0, 0), (0, S_vp - S_v)))
    masks_p = jnp.pad(masks.astype(jnp.float32), ((0, 0), (0, S_vp - S_v)))
    masks_p = masks_p.reshape(B, 1, S_vp)

    # y (NCHW) flattened over HW is already the (channels, positions) layout the kernel wants.
    y_t = y.reshape(B, C_img, S_q).astype(jnp.float32)

    counts_f = counts.astype(jnp.float32)

    # Linear weights are used as-is:  (W @ act^T + b[:, None]) == (act @ W^T + b)^T
    bq2 = params['bq'].reshape(key_ch, 1).astype(jnp.float32)
    bk2 = params['bk'].reshape(key_ch, 1).astype(jnp.float32)
    bv2 = params['bv'].reshape(output_ch, 1).astype(jnp.float32)

    kernel = _make_kernel(n_heads, key_ch, output_ch)

    grid_spec = pltpu.PrefetchScalarGridSpec(
        num_scalar_prefetch=0,
        grid=(B,),
        in_specs=[
            pl.BlockSpec((1, D_v, S_vp), lambda b: (b, 0, 0)),       # x^T (padded)
            pl.BlockSpec((1, C_img, S_q), lambda b: (b, 0, 0)),      # y^T (pixels)
            pl.BlockSpec((1, 1, S_vp), lambda b: (b, 0, 0)),         # masks (padded)
            pl.BlockSpec(memory_space=pltpu.MemorySpace.SMEM),       # counts (B,)
            pl.BlockSpec(memory_space=pltpu.MemorySpace.SMEM),       # overall gain (n_heads,)
            pl.BlockSpec(memory_space=pltpu.MemorySpace.SMEM),       # overall bias (n_heads,)
            pl.BlockSpec((key_ch, C_img), lambda b: (0, 0)),         # Wq
            pl.BlockSpec((key_ch, 1), lambda b: (0, 0)),             # bq
            pl.BlockSpec((key_ch, D_v), lambda b: (0, 0)),           # Wk
            pl.BlockSpec((key_ch, 1), lambda b: (0, 0)),             # bk
            pl.BlockSpec((output_ch, D_v), lambda b: (0, 0)),        # Wv
            pl.BlockSpec((output_ch, 1), lambda b: (0, 0)),          # bv
        ],
        out_specs=pl.BlockSpec((1, output_ch, S_q), lambda b: (b, 0, 0)),
    )

    out_t = pl.pallas_call(
        kernel,
        out_shape=jax.ShapeDtypeStruct((B, output_ch, S_q), jnp.float32),
        grid_spec=grid_spec,
        compiler_params=pltpu.CompilerParams(dimension_semantics=("parallel",)),
    )(xT, y_t, masks_p, counts_f,
      params['gain'].astype(jnp.float32), params['obias'].astype(jnp.float32),
      params['wq'].astype(jnp.float32), bq2,
      params['wk'].astype(jnp.float32), bk2,
      params['wv'].astype(jnp.float32), bv2)

    # seq_to_width: the (B, output_ch, S_q) kernel output is already NC(HW) — reshape only.
    # (The original module uses `width` for both spatial dims, i.e. assumes H == W.)
    return out_t.reshape(B, output_ch, W_img, W_img)


def reference(x, masks, counts, y, params, n_heads):
    """Pure-JAX mirror of the PyTorch forward (for verification)."""
    B, C, Himg, Wimg = y.shape
    S_q = Himg * Wimg
    y_seq = jnp.transpose(y, (0, 2, 3, 1)).reshape(B, S_q, C)
    q = y_seq @ params['wq'].T + params['bq']
    k = x @ params['wk'].T + params['bk']
    v = x @ params['wv'].T + params['bv']

    def to_heads(t):
        B_, S, D = t.shape
        return t.reshape(B_, S, n_heads, D // n_heads).transpose(0, 2, 1, 3)

    qh, kh, vh = to_heads(q), to_heads(k), to_heads(v)
    scores = jnp.einsum('bhqd,bhkd->bhqk', qh, kh)
    sds = scores / jnp.sqrt(counts)[:, None, None, None]
    szero = scores * masks[:, None, None, :]
    sdc = szero / counts[:, None, None, None]
    pooled = sdc.sum(-1, keepdims=True)
    ow = jax.nn.sigmoid(pooled * params['gain'][None, :, None, None]
                        + params['obias'][None, :, None, None])
    am = jnp.where(masks == 0, -jnp.inf, 0.0)[:, None, None, :]
    sm = jax.nn.softmax(sds + am, axis=-1)
    h = jnp.einsum('bhqk,bhkd->bhqd', sm, vh)
    out = (h * ow).transpose(0, 2, 1, 3).reshape(B, S_q, -1)
    return out.reshape(B, Wimg, Wimg, -1).transpose(0, 3, 1, 2)


if __name__ == "__main__":
    # cfg: seq_size=32 (D_v), image_ch=4, key_ch=32, output_ch=32, n_heads=4, mix_bias=-10
    cfg = dict(seq_size=32, image_ch=4, key_ch=32, output_ch=32, n_heads=4, mix_bias=-10.0)
    B, S_v, Himg, Wimg = 2, 8, 16, 16

    key = jax.random.PRNGKey(0)
    ks = jax.random.split(key, 12)
    x = jax.random.normal(ks[0], (B, S_v, cfg['seq_size']), jnp.float32)
    y = jax.random.normal(ks[1], (B, cfg['image_ch'], Himg, Wimg), jnp.float32)
    masks = (jax.random.uniform(ks[2], (B, S_v)) > 0.3).astype(jnp.float32)
    masks = masks.at[:, 0].set(1.0)          # guarantee at least one valid key per batch
    counts = masks.sum(axis=-1)

    params = {
        'wq': 0.1 * jax.random.normal(ks[3], (cfg['key_ch'], cfg['image_ch']), jnp.float32),
        'bq': 0.1 * jax.random.normal(ks[4], (cfg['key_ch'],), jnp.float32),
        'wk': 0.1 * jax.random.normal(ks[5], (cfg['key_ch'], cfg['seq_size']), jnp.float32),
        'bk': 0.1 * jax.random.normal(ks[6], (cfg['key_ch'],), jnp.float32),
        'wv': 0.1 * jax.random.normal(ks[7], (cfg['output_ch'], cfg['seq_size']), jnp.float32),
        'bv': 0.1 * jax.random.normal(ks[8], (cfg['output_ch'],), jnp.float32),
        # NOTE: the module initializes gain=ones and obias=mix_bias (-10); randomized
        # (post-training-like) values are used here so the sigmoid gate isn't ~0 and the
        # numerical check against the reference is actually meaningful.
        'gain': 1.0 + 0.1 * jax.random.normal(ks[9], (cfg['n_heads'],), jnp.float32),
        'obias': 0.5 * jax.random.normal(ks[10], (cfg['n_heads'],), jnp.float32),
    }

    out = seq_to_image_pallas(x, masks, counts, y, params, cfg['n_heads'])
    out = jax.block_until_ready(out)

    ref = reference(x, masks, counts, y, params, cfg['n_heads'])
    assert out.shape == (B, cfg['output_ch'], Himg, Wimg), out.shape
    err = float(jnp.max(jnp.abs(out - ref)))
    assert jnp.allclose(out, ref, atol=5e-3, rtol=5e-3), err
    print("KERNEL_OK")
</pallas_src>

<mosaic_0001>
module attributes {stable_mosaic.version = 11 : i64} {
  func.func @kernel(%arg0: i32, %arg1: memref<1x32x128xf32, #tpu.memory_space<vmem>>, %arg2: memref<1x4x256xf32, #tpu.memory_space<vmem>>, %arg3: memref<1x1x128xf32, #tpu.memory_space<vmem>>, %arg4: memref<2xf32, #tpu.memory_space<smem>>, %arg5: memref<4xf32, #tpu.memory_space<smem>>, %arg6: memref<4xf32, #tpu.memory_space<smem>>, %arg7: memref<32x4xf32, #tpu.memory_space<vmem>>, %arg8: memref<32x1xf32, #tpu.memory_space<vmem>>, %arg9: memref<32x32xf32, #tpu.memory_space<vmem>>, %arg10: memref<32x1xf32, #tpu.memory_space<vmem>>, %arg11: memref<32x32xf32, #tpu.memory_space<vmem>>, %arg12: memref<32x1xf32, #tpu.memory_space<vmem>>, %arg13: memref<1x32x256xf32, #tpu.memory_space<vmem>>) attributes {dimension_semantics = [#tpu.dimension_semantics<parallel>], iteration_bounds = array<i64: 2>, scalar_prefetch = 0 : i64, scratch_operands = 0 : i64, tpu.core_type = #tpu.core_type<tc>, window_params = [{transform_indices = @transform_0, window_bounds = array<i64: 1, 32, 128>}, {transform_indices = @transform_1, window_bounds = array<i64: 1, 4, 256>}, {transform_indices = @transform_2, window_bounds = array<i64: 1, 1, 128>}, {transform_indices = @transform_3, window_bounds = array<i64: 2>}, {transform_indices = @transform_4, window_bounds = array<i64: 4>}, {transform_indices = @transform_5, window_bounds = array<i64: 4>}, {pipeline_mode = #tpu.pipeline_mode<synchronous>, transform_indices = @transform_6, window_bounds = array<i64: 32, 4>}, {pipeline_mode = #tpu.pipeline_mode<synchronous>, transform_indices = @transform_7, window_bounds = array<i64: 32, 1>}, {pipeline_mode = #tpu.pipeline_mode<synchronous>, transform_indices = @transform_8, window_bounds = array<i64: 32, 32>}, {pipeline_mode = #tpu.pipeline_mode<synchronous>, transform_indices = @transform_9, window_bounds = array<i64: 32, 1>}, {pipeline_mode = #tpu.pipeline_mode<synchronous>, transform_indices = @transform_10, window_bounds = array<i64: 32, 32>}, {pipeline_mode = #tpu.pipeline_mode<synchronous>, transform_indices = @transform_11, window_bounds = array<i64: 32, 1>}, {transform_indices = @transform_12, window_bounds = array<i64: 1, 32, 256>}]} {
    %c0 = arith.constant 0 : index
    %c0_0 = arith.constant 0 : index
    %c0_1 = arith.constant 0 : index
    %0 = vector.load %arg2[%c0, %c0_0, %c0_1] : memref<1x4x256xf32, #tpu.memory_space<vmem>>, vector<1x4x256xf32>
    %1 = vector.shape_cast %0 : vector<1x4x256xf32> to vector<4x256xf32>
    %c0_2 = arith.constant 0 : index
    %c0_3 = arith.constant 0 : index
    %c0_4 = arith.constant 0 : index
    %2 = vector.load %arg1[%c0_2, %c0_3, %c0_4] : memref<1x32x128xf32, #tpu.memory_space<vmem>>, vector<1x32x128xf32>
    %3 = vector.shape_cast %2 : vector<1x32x128xf32> to vector<32x128xf32>
    %c0_5 = arith.constant 0 : index
    %c0_6 = arith.constant 0 : index
    %c0_7 = arith.constant 0 : index
    %4 = vector.load %arg3[%c0_5, %c0_6, %c0_7] : memref<1x1x128xf32, #tpu.memory_space<vmem>>, vector<1x1x128xf32>
    %5 = vector.shape_cast %4 : vector<1x1x128xf32> to vector<1x128xf32>
    %c0_8 = arith.constant 0 : index
    %c0_9 = arith.constant 0 : index
    %6 = vector.load %arg7[%c0_8, %c0_9] : memref<32x4xf32, #tpu.memory_space<vmem>>, vector<32x4xf32>
    %cst = arith.constant dense<0.000000e+00> : vector<32x256xf32>
    %7 = tpu.matmul %6, %1, %cst {dimension_numbers = #tpu.dot_dimension_numbers<[1], [0], [0], [1], [0, 0, 1, 1], [], []>} : vector<32x4xf32>, vector<4x256xf32>, vector<32x256xf32> -> vector<32x256xf32>
    %c0_10 = arith.constant 0 : index
    %c0_11 = arith.constant 0 : index
    %8 = vector.load %arg8[%c0_10, %c0_11] : memref<32x1xf32, #tpu.memory_space<vmem>>, vector<32x1xf32>
    %9 = vector.broadcast %8 : vector<32x1xf32> to vector<32x256xf32>
    %10 = arith.addf %7, %9 : vector<32x256xf32>
    %c0_12 = arith.constant 0 : index
    %c0_13 = arith.constant 0 : index
    %11 = vector.load %arg9[%c0_12, %c0_13] : memref<32x32xf32, #tpu.memory_space<vmem>>, vector<32x32xf32>
    %cst_14 = arith.constant dense<0.000000e+00> : vector<32x128xf32>
    %12 = tpu.matmul %11, %3, %cst_14 {dimension_numbers = #tpu.dot_dimension_numbers<[1], [0], [0], [1], [0, 0, 1, 1], [], []>} : vector<32x32xf32>, vector<32x128xf32>, vector<32x128xf32> -> vector<32x128xf32>
    %c0_15 = arith.constant 0 : index
    %c0_16 = arith.constant 0 : index
    %13 = vector.load %arg10[%c0_15, %c0_16] : memref<32x1xf32, #tpu.memory_space<vmem>>, vector<32x1xf32>
    %14 = vector.broadcast %13 : vector<32x1xf32> to vector<32x128xf32>
    %15 = arith.addf %12, %14 : vector<32x128xf32>
    %c0_17 = arith.constant 0 : index
    %c0_18 = arith.constant 0 : index
    %16 = vector.load %arg11[%c0_17, %c0_18] : memref<32x32xf32, #tpu.memory_space<vmem>>, vector<32x32xf32>
    %cst_19 = arith.constant dense<0.000000e+00> : vector<32x128xf32>
    %17 = tpu.matmul %16, %3, %cst_19 {dimension_numbers = #tpu.dot_dimension_numbers<[1], [0], [0], [1], [0, 0, 1, 1], [], []>} : vector<32x32xf32>, vector<32x128xf32>, vector<32x128xf32> -> vector<32x128xf32>
    %c0_20 = arith.constant 0 : index
    %c0_21 = arith.constant 0 : index
    %18 = vector.load %arg12[%c0_20, %c0_21] : memref<32x1xf32, #tpu.memory_space<vmem>>, vector<32x1xf32>
    %19 = vector.broadcast %18 : vector<32x1xf32> to vector<32x128xf32>
    %20 = arith.addf %17, %19 : vector<32x128xf32>
    %21 = arith.index_cast %arg0 : i32 to index
    %22 = memref.load %arg4[%21] : memref<2xf32, #tpu.memory_space<smem>>
    %cst_22 = arith.constant 1.000000e+00 : f32
    %23 = arith.maximumf %22, %cst_22 : f32
    %cst_23 = arith.constant 1.000000e+00 : f32
    %24 = arith.divf %cst_23, %23 : f32
    %25 = math.rsqrt %23 : f32
    %cst_24 = arith.constant dense<0.000000e+00> : vector<32x1xf32>
    %26 = tpu.matmul %15, %5, %cst_24 {dimension_numbers = #tpu.dot_dimension_numbers<[1], [1], [0], [0], [0, 0, 1, 0], [], []>} : vector<32x128xf32>, vector<1x128xf32>, vector<32x1xf32> -> vector<32x1xf32>
    %27 = vector.broadcast %24 : f32 to vector<32x1xf32>
    %28 = arith.mulf %26, %27 : vector<32x1xf32>
    %29 = vector.broadcast %25 : f32 to vector<32x128xf32>
    %30 = arith.mulf %15, %29 : vector<32x128xf32>
    %cst_25 = arith.constant 0.000000e+00 : f32
    %31 = vector.broadcast %cst_25 : f32 to vector<1x128xf32>
    %32 = arith.cmpf oeq, %5, %31 : vector<1x128xf32>
    %cst_26 = arith.constant -1.000000e+30 : f32
    %cst_27 = arith.constant 0.000000e+00 : f32
    %33 = vector.broadcast %cst_26 : f32 to vector<1x128xf32>
    %34 = vector.broadcast %cst_27 : f32 to vector<1x128xf32>
    %35 = arith.select %32, %33, %34 : vector<1x128xi1>, vector<1x128xf32>
    %36 = vector.extract_strided_slice %10 {offsets = [0, 0], sizes = [8, 256], strides = [1, 1]} : vector<32x256xf32> to vector<8x256xf32>
    %37 = vector.extract_strided_slice %30 {offsets = [0, 0], sizes = [8, 128], strides = [1, 1]} : vector<32x128xf32> to vector<8x128xf32>
    %38 = vector.extract_strided_slice %20 {offsets = [0, 0], sizes = [8, 128], strides = [1, 1]} : vector<32x128xf32> to vector<8x128xf32>
    %39 = vector.extract_strided_slice %28 {offsets = [0, 0], sizes = [8, 1], strides = [1, 1]} : vector<32x1xf32> to vector<8x1xf32>
    %cst_28 = arith.constant dense<0.000000e+00> : vector<256x128xf32>
    %40 = tpu.matmul %36, %37, %cst_28 {dimension_numbers = #tpu.dot_dimension_numbers<[0], [0], [1], [1], [0, 1, 1, 1], [], []>} : vector<8x256xf32>, vector<8x128xf32>, vector<256x128xf32> -> vector<256x128xf32>
    %cst_29 = arith.constant dense<0.000000e+00> : vector<1x256xf32>
    %41 = tpu.matmul %39, %36, %cst_29 {dimension_numbers = #tpu.dot_dimension_numbers<[0], [0], [1], [1], [0, 1, 1, 1], [], []>} : vector<8x1xf32>, vector<8x256xf32>, vector<1x256xf32> -> vector<1x256xf32>
    %c0_30 = arith.constant 0 : index
    %42 = memref.load %arg5[%c0_30] : memref<4xf32, #tpu.memory_space<smem>>
    %43 = vector.broadcast %42 : f32 to vector<1x256xf32>
    %44 = arith.mulf %41, %43 : vector<1x256xf32>
    %c0_31 = arith.constant 0 : index
    %45 = memref.load %arg6[%c0_31] : memref<4xf32, #tpu.memory_space<smem>>
    %46 = vector.broadcast %45 : f32 to vector<1x256xf32>
    %47 = arith.addf %44, %46 : vector<1x256xf32>
    %48 = arith.negf %47 : vector<1x256xf32>
    %49 = math.exp %48 : vector<1x256xf32>
    %cst_32 = arith.constant 1.000000e+00 : f32
    %50 = vector.broadcast %cst_32 : f32 to vector<1x256xf32>
    %51 = arith.addf %50, %49 : vector<1x256xf32>
    %52 = arith.divf %50, %51 : vector<1x256xf32>
    %53 = vector.broadcast %35 : vector<1x128xf32> to vector<256x128xf32>
    %54 = arith.addf %40, %53 : vector<256x128xf32>
    %cst_33 = arith.constant dense<0xFF800000> : vector<256xf32>
    %55 = vector.multi_reduction <maximumf>, %54, %cst_33 [1] : vector<256x128xf32> to vector<256xf32>
    %56 = vector.shape_cast %55 : vector<256xf32> to vector<256x1xf32>
    %57 = vector.broadcast %56 : vector<256x1xf32> to vector<256x128xf32>
    %58 = arith.subf %54, %57 : vector<256x128xf32>
    %59 = math.exp %58 : vector<256x128xf32>
    %cst_34 = arith.constant dense<0.000000e+00> : vector<256xf32>
    %60 = vector.multi_reduction <add>, %59, %cst_34 [1] : vector<256x128xf32> to vector<256xf32>
    %61 = vector.shape_cast %60 : vector<256xf32> to vector<256x1xf32>
    %62 = tpu.reciprocal %61 {approx = true} : vector<256x1xf32> -> vector<256x1xf32>
    %63 = vector.broadcast %62 : vector<256x1xf32> to vector<256x128xf32>
    %64 = arith.mulf %59, %63 : vector<256x128xf32>
    %cst_35 = arith.constant dense<0.000000e+00> : vector<8x256xf32>
    %65 = tpu.matmul %38, %64, %cst_35 {dimension_numbers = #tpu.dot_dimension_numbers<[1], [1], [0], [0], [0, 0, 1, 0], [], []>} : vector<8x128xf32>, vector<256x128xf32>, vector<8x256xf32> -> vector<8x256xf32>
    %66 = vector.broadcast %52 : vector<1x256xf32> to vector<8x256xf32>
    %67 = arith.mulf %65, %66 : vector<8x256xf32>
    %c0_36 = arith.constant 0 : index
    %c0_37 = arith.constant 0 : index
    %c0_38 = arith.constant 0 : index
    %68 = vector.load %arg13[%c0_36, %c0_37, %c0_38] : memref<1x32x256xf32, #tpu.memory_space<vmem>>, vector<1x8x256xf32>
    %69 = vector.shape_cast %68 : vector<1x8x256xf32> to vector<8x256xf32>
    %70 = vector.shape_cast %67 : vector<8x256xf32> to vector<1x8x256xf32>
    tpu.vector_store %arg13[%c0_36, %c0_37, %c0_38], %70 {strides = array<i32>} : memref<1x32x256xf32, #tpu.memory_space<vmem>>, vector<1x8x256xf32>,
    %71 = vector.extract_strided_slice %10 {offsets = [8, 0], sizes = [8, 256], strides = [1, 1]} : vector<32x256xf32> to vector<8x256xf32>
    %72 = vector.extract_strided_slice %30 {offsets = [8, 0], sizes = [8, 128], strides = [1, 1]} : vector<32x128xf32> to vector<8x128xf32>
    %73 = vector.extract_strided_slice %20 {offsets = [8, 0], sizes = [8, 128], strides = [1, 1]} : vector<32x128xf32> to vector<8x128xf32>
    %74 = vector.extract_strided_slice %28 {offsets = [8, 0], sizes = [8, 1], strides = [1, 1]} : vector<32x1xf32> to vector<8x1xf32>
    %cst_39 = arith.constant dense<0.000000e+00> : vector<256x128xf32>
    %75 = tpu.matmul %71, %72, %cst_39 {dimension_numbers = #tpu.dot_dimension_numbers<[0], [0], [1], [1], [0, 1, 1, 1], [], []>} : vector<8x256xf32>, vector<8x128xf32>, vector<256x128xf32> -> vector<256x128xf32>
    %cst_40 = arith.constant dense<0.000000e+00> : vector<1x256xf32>
    %76 = tpu.matmul %74, %71, %cst_40 {dimension_numbers = #tpu.dot_dimension_numbers<[0], [0], [1], [1], [0, 1, 1, 1], [], []>} : vector<8x1xf32>, vector<8x256xf32>, vector<1x256xf32> -> vector<1x256xf32>
    %c1 = arith.constant 1 : index
    %77 = memref.load %arg5[%c1] : memref<4xf32, #tpu.memory_space<smem>>
    %78 = vector.broadcast %77 : f32 to vector<1x256xf32>
    %79 = arith.mulf %76, %78 : vector<1x256xf32>
    %c1_41 = arith.constant 1 : index
    %80 = memref.load %arg6[%c1_41] : memref<4xf32, #tpu.memory_space<smem>>
    %81 = vector.broadcast %80 : f32 to vector<1x256xf32>
    %82 = arith.addf %79, %81 : vector<1x256xf32>
    %83 = arith.negf %82 : vector<1x256xf32>
    %84 = math.exp %83 : vector<1x256xf32>
    %cst_42 = arith.constant 1.000000e+00 : f32
    %85 = vector.broadcast %cst_42 : f32 to vector<1x256xf32>
    %86 = arith.addf %85, %84 : vector<1x256xf32>
    %87 = arith.divf %85, %86 : vector<1x256xf32>
    %88 = vector.broadcast %35 : vector<1x128xf32> to vector<256x128xf32>
    %89 = arith.addf %75, %88 : vector<256x128xf32>
    %cst_43 = arith.constant dense<0xFF800000> : vector<256xf32>
    %90 = vector.multi_reduction <maximumf>, %89, %cst_43 [1] : vector<256x128xf32> to vector<256xf32>
    %91 = vector.shape_cast %90 : vector<256xf32> to vector<256x1xf32>
    %92 = vector.broadcast %91 : vector<256x1xf32> to vector<256x128xf32>
    %93 = arith.subf %89, %92 : vector<256x128xf32>
    %94 = math.exp %93 : vector<256x128xf32>
    %cst_44 = arith.constant dense<0.000000e+00> : vector<256xf32>
    %95 = vector.multi_reduction <add>, %94, %cst_44 [1] : vector<256x128xf32> to vector<256xf32>
    %96 = vector.shape_cast %95 : vector<256xf32> to vector<256x1xf32>
    %97 = tpu.reciprocal %96 {approx = true} : vector<256x1xf32> -> vector<256x1xf32>
    %98 = vector.broadcast %97 : vector<256x1xf32> to vector<256x128xf32>
    %99 = arith.mulf %94, %98 : vector<256x128xf32>
    %cst_45 = arith.constant dense<0.000000e+00> : vector<8x256xf32>
    %100 = tpu.matmul %73, %99, %cst_45 {dimension_numbers = #tpu.dot_dimension_numbers<[1], [1], [0], [0], [0, 0, 1, 0], [], []>} : vector<8x128xf32>, vector<256x128xf32>, vector<8x256xf32> -> vector<8x256xf32>
    %101 = vector.broadcast %87 : vector<1x256xf32> to vector<8x256xf32>
    %102 = arith.mulf %100, %101 : vector<8x256xf32>
    %c0_46 = arith.constant 0 : index
    %c8 = arith.constant 8 : index
    %c0_47 = arith.constant 0 : index
    %103 = vector.load %arg13[%c0_46, %c8, %c0_47] : memref<1x32x256xf32, #tpu.memory_space<vmem>>, vector<1x8x256xf32>
    %104 = vector.shape_cast %103 : vector<1x8x256xf32> to vector<8x256xf32>
    %105 = vector.shape_cast %102 : vector<8x256xf32> to vector<1x8x256xf32>
    tpu.vector_store %arg13[%c0_46, %c8, %c0_47], %105 {strides = array<i32>} : memref<1x32x256xf32, #tpu.memory_space<vmem>>, vector<1x8x256xf32>,
    %106 = vector.extract_strided_slice %10 {offsets = [16, 0], sizes = [8, 256], strides = [1, 1]} : vector<32x256xf32> to vector<8x256xf32>
    %107 = vector.extract_strided_slice %30 {offsets = [16, 0], sizes = [8, 128], strides = [1, 1]} : vector<32x128xf32> to vector<8x128xf32>
    %108 = vector.extract_strided_slice %20 {offsets = [16, 0], sizes = [8, 128], strides = [1, 1]} : vector<32x128xf32> to vector<8x128xf32>
    %109 = vector.extract_strided_slice %28 {offsets = [16, 0], sizes = [8, 1], strides = [1, 1]} : vector<32x1xf32> to vector<8x1xf32>
    %cst_48 = arith.constant dense<0.000000e+00> : vector<256x128xf32>
    %110 = tpu.matmul %106, %107, %cst_48 {dimension_numbers = #tpu.dot_dimension_numbers<[0], [0], [1], [1], [0, 1, 1, 1], [], []>} : vector<8x256xf32>, vector<8x128xf32>, vector<256x128xf32> -> vector<256x128xf32>
    %cst_49 = arith.constant dense<0.000000e+00> : vector<1x256xf32>
    %111 = tpu.matmul %109, %106, %cst_49 {dimension_numbers = #tpu.dot_dimension_numbers<[0], [0], [1], [1], [0, 1, 1, 1], [], []>} : vector<8x1xf32>, vector<8x256xf32>, vector<1x256xf32> -> vector<1x256xf32>
    %c2 = arith.constant 2 : index
    %112 = memref.load %arg5[%c2] : memref<4xf32, #tpu.memory_space<smem>>
    %113 = vector.broadcast %112 : f32 to vector<1x256xf32>
    %114 = arith.mulf %111, %113 : vector<1x256xf32>
    %c2_50 = arith.constant 2 : index
    %115 = memref.load %arg6[%c2_50] : memref<4xf32, #tpu.memory_space<smem>>
    %116 = vector.broadcast %115 : f32 to vector<1x256xf32>
    %117 = arith.addf %114, %116 : vector<1x256xf32>
    %118 = arith.negf %117 : vector<1x256xf32>
    %119 = math.exp %118 : vector<1x256xf32>
    %cst_51 = arith.constant 1.000000e+00 : f32
    %120 = vector.broadcast %cst_51 : f32 to vector<1x256xf32>
    %121 = arith.addf %120, %119 : vector<1x256xf32>
    %122 = arith.divf %120, %121 : vector<1x256xf32>
    %123 = vector.broadcast %35 : vector<1x128xf32> to vector<256x128xf32>
    %124 = arith.addf %110, %123 : vector<256x128xf32>
    %cst_52 = arith.constant dense<0xFF800000> : vector<256xf32>
    %125 = vector.multi_reduction <maximumf>, %124, %cst_52 [1] : vector<256x128xf32> to vector<256xf32>
    %126 = vector.shape_cast %125 : vector<256xf32> to vector<256x1xf32>
    %127 = vector.broadcast %126 : vector<256x1xf32> to vector<256x128xf32>
    %128 = arith.subf %124, %127 : vector<256x128xf32>
    %129 = math.exp %128 : vector<256x128xf32>
    %cst_53 = arith.constant dense<0.000000e+00> : vector<256xf32>
    %130 = vector.multi_reduction <add>, %129, %cst_53 [1] : vector<256x128xf32> to vector<256xf32>
    %131 = vector.shape_cast %130 : vector<256xf32> to vector<256x1xf32>
    %132 = tpu.reciprocal %131 {approx = true} : vector<256x1xf32> -> vector<256x1xf32>
    %133 = vector.broadcast %132 : vector<256x1xf32> to vector<256x128xf32>
    %134 = arith.mulf %129, %133 : vector<256x128xf32>
    %cst_54 = arith.constant dense<0.000000e+00> : vector<8x256xf32>
    %135 = tpu.matmul %108, %134, %cst_54 {dimension_numbers = #tpu.dot_dimension_numbers<[1], [1], [0], [0], [0, 0, 1, 0], [], []>} : vector<8x128xf32>, vector<256x128xf32>, vector<8x256xf32> -> vector<8x256xf32>
    %136 = vector.broadcast %122 : vector<1x256xf32> to vector<8x256xf32>
    %137 = arith.mulf %135, %136 : vector<8x256xf32>
    %c0_55 = arith.constant 0 : index
    %c16 = arith.constant 16 : index
    %c0_56 = arith.constant 0 : index
    %138 = vector.load %arg13[%c0_55, %c16, %c0_56] : memref<1x32x256xf32, #tpu.memory_space<vmem>>, vector<1x8x256xf32>
    %139 = vector.shape_cast %138 : vector<1x8x256xf32> to vector<8x256xf32>
    %140 = vector.shape_cast %137 : vector<8x256xf32> to vector<1x8x256xf32>
    tpu.vector_store %arg13[%c0_55, %c16, %c0_56], %140 {strides = array<i32>} : memref<1x32x256xf32, #tpu.memory_space<vmem>>, vector<1x8x256xf32>,
    %141 = vector.extract_strided_slice %10 {offsets = [24, 0], sizes = [8, 256], strides = [1, 1]} : vector<32x256xf32> to vector<8x256xf32>
    %142 = vector.extract_strided_slice %30 {offsets = [24, 0], sizes = [8, 128], strides = [1, 1]} : vector<32x128xf32> to vector<8x128xf32>
    %143 = vector.extract_strided_slice %20 {offsets = [24, 0], sizes = [8, 128], strides = [1, 1]} : vector<32x128xf32> to vector<8x128xf32>
    %144 = vector.extract_strided_slice %28 {offsets = [24, 0], sizes = [8, 1], strides = [1, 1]} : vector<32x1xf32> to vector<8x1xf32>
    %cst_57 = arith.constant dense<0.000000e+00> : vector<256x128xf32>
    %145 = tpu.matmul %141, %142, %cst_57 {dimension_numbers = #tpu.dot_dimension_numbers<[0], [0], [1], [1], [0, 1, 1, 1], [], []>} : vector<8x256xf32>, vector<8x128xf32>, vector<256x128xf32> -> vector<256x128xf32>
    %cst_58 = arith.constant dense<0.000000e+00> : vector<1x256xf32>
    %146 = tpu.matmul %144, %141, %cst_58 {dimension_numbers = #tpu.dot_dimension_numbers<[0], [0], [1], [1], [0, 1, 1, 1], [], []>} : vector<8x1xf32>, vector<8x256xf32>, vector<1x256xf32> -> vector<1x256xf32>
    %c3 = arith.constant 3 : index
    %147 = memref.load %arg5[%c3] : memref<4xf32, #tpu.memory_space<smem>>
    %148 = vector.broadcast %147 : f32 to vector<1x256xf32>
    %149 = arith.mulf %146, %148 : vector<1x256xf32>
    %c3_59 = arith.constant 3 : index
    %150 = memref.load %arg6[%c3_59] : memref<4xf32, #tpu.memory_space<smem>>
    %151 = vector.broadcast %150 : f32 to vector<1x256xf32>
    %152 = arith.addf %149, %151 : vector<1x256xf32>
    %153 = arith.negf %152 : vector<1x256xf32>
    %154 = math.exp %153 : vector<1x256xf32>
    %cst_60 = arith.constant 1.000000e+00 : f32
    %155 = vector.broadcast %cst_60 : f32 to vector<1x256xf32>
    %156 = arith.addf %155, %154 : vector<1x256xf32>
    %157 = arith.divf %155, %156 : vector<1x256xf32>
    %158 = vector.broadcast %35 : vector<1x128xf32> to vector<256x128xf32>
    %159 = arith.addf %145, %158 : vector<256x128xf32>
    %cst_61 = arith.constant dense<0xFF800000> : vector<256xf32>
    %160 = vector.multi_reduction <maximumf>, %159, %cst_61 [1] : vector<256x128xf32> to vector<256xf32>
    %161 = vector.shape_cast %160 : vector<256xf32> to vector<256x1xf32>
    %162 = vector.broadcast %161 : vector<256x1xf32> to vector<256x128xf32>
    %163 = arith.subf %159, %162 : vector<256x128xf32>
    %164 = math.exp %163 : vector<256x128xf32>
    %cst_62 = arith.constant dense<0.000000e+00> : vector<256xf32>
    %165 = vector.multi_reduction <add>, %164, %cst_62 [1] : vector<256x128xf32> to vector<256xf32>
    %166 = vector.shape_cast %165 : vector<256xf32> to vector<256x1xf32>
    %167 = tpu.reciprocal %166 {approx = true} : vector<256x1xf32> -> vector<256x1xf32>
    %168 = vector.broadcast %167 : vector<256x1xf32> to vector<256x128xf32>
    %169 = arith.mulf %164, %168 : vector<256x128xf32>
    %cst_63 = arith.constant dense<0.000000e+00> : vector<8x256xf32>
    %170 = tpu.matmul %143, %169, %cst_63 {dimension_numbers = #tpu.dot_dimension_numbers<[1], [1], [0], [0], [0, 0, 1, 0], [], []>} : vector<8x128xf32>, vector<256x128xf32>, vector<8x256xf32> -> vector<8x256xf32>
    %171 = vector.broadcast %157 : vector<1x256xf32> to vector<8x256xf32>
    %172 = arith.mulf %170, %171 : vector<8x256xf32>
    %c0_64 = arith.constant 0 : index
    %c24 = arith.constant 24 : index
    %c0_65 = arith.constant 0 : index
    %173 = vector.load %arg13[%c0_64, %c24, %c0_65] : memref<1x32x256xf32, #tpu.memory_space<vmem>>, vector<1x8x256xf32>
    %174 = vector.shape_cast %173 : vector<1x8x256xf32> to vector<8x256xf32>
    %175 = vector.shape_cast %172 : vector<8x256xf32> to vector<1x8x256xf32>
    tpu.vector_store %arg13[%c0_64, %c24, %c0_65], %175 {strides = array<i32>} : memref<1x32x256xf32, #tpu.memory_space<vmem>>, vector<1x8x256xf32>,
    return
  }
  func.func @transform_0(%arg0: i32) -> (i32, i32, i32) {
    %c0_i32 = arith.constant 0 : i32
    %c0_i32_0 = arith.constant 0 : i32
    %c0_i32_1 = arith.constant 0 : i32
    return %arg0, %c0_i32, %c0_i32_0 : i32, i32, i32
  }
  func.func @transform_1(%arg0: i32) -> (i32, i32, i32) {
    %c0_i32 = arith.constant 0 : i32
    %c0_i32_0 = arith.constant 0 : i32
    %c0_i32_1 = arith.constant 0 : i32
    return %arg0, %c0_i32, %c0_i32_0 : i32, i32, i32
  }
  func.func @transform_2(%arg0: i32) -> (i32, i32, i32) {
    %c0_i32 = arith.constant 0 : i32
    %c0_i32_0 = arith.constant 0 : i32
    %c0_i32_1 = arith.constant 0 : i32
    return %arg0, %c0_i32, %c0_i32_0 : i32, i32, i32
  }
  func.func @transform_3(%arg0: i32) -> i32 {
    %c0_i32 = arith.constant 0 : i32
    %c0_i32_0 = arith.constant 0 : i32
    return %c0_i32 : i32
  }
  func.func @transform_4(%arg0: i32) -> i32 {
    %c0_i32 = arith.constant 0 : i32
    %c0_i32_0 = arith.constant 0 : i32
    return %c0_i32 : i32
  }
  func.func @transform_5(%arg0: i32) -> i32 {
    %c0_i32 = arith.constant 0 : i32
    %c0_i32_0 = arith.constant 0 : i32
    return %c0_i32 : i32
  }
  func.func @transform_6(%arg0: i32) -> (i32, i32) {
    %c0_i32 = arith.constant 0 : i32
    %c0_i32_0 = arith.constant 0 : i32
    %c0_i32_1 = arith.constant 0 : i32
    return %c0_i32, %c0_i32_0 : i32, i32
  }
  func.func @transform_7(%arg0: i32) -> (i32, i32) {
    %c0_i32 = arith.constant 0 : i32
    %c0_i32_0 = arith.constant 0 : i32
    %c0_i32_1 = arith.constant 0 : i32
    return %c0_i32, %c0_i32_0 : i32, i32
  }
  func.func @transform_8(%arg0: i32) -> (i32, i32) {
    %c0_i32 = arith.constant 0 : i32
    %c0_i32_0 = arith.constant 0 : i32
    %c0_i32_1 = arith.constant 0 : i32
    return %c0_i32, %c0_i32_0 : i32, i32
  }
  func.func @transform_9(%arg0: i32) -> (i32, i32) {
    %c0_i32 = arith.constant 0 : i32
    %c0_i32_0 = arith.constant 0 : i32
    %c0_i32_1 = arith.constant 0 : i32
    return %c0_i32, %c0_i32_0 : i32, i32
  }
  func.func @transform_10(%arg0: i32) -> (i32, i32) {
    %c0_i32 = arith.constant 0 : i32
    %c0_i32_0 = arith.constant 0 : i32
    %c0_i32_1 = arith.constant 0 : i32
    return %c0_i32, %c0_i32_0 : i32, i32
  }
  func.func @transform_11(%arg0: i32) -> (i32, i32) {
    %c0_i32 = arith.constant 0 : i32
    %c0_i32_0 = arith.constant 0 : i32
    %c0_i32_1 = arith.constant 0 : i32
    return %c0_i32, %c0_i32_0 : i32, i32
  }
  func.func @transform_12(%arg0: i32) -> (i32, i32, i32) {
    %c0_i32 = arith.constant 0 : i32
    %c0_i32_0 = arith.constant 0 : i32
    %c0_i32_1 = arith.constant 0 : i32
    return %arg0, %c0_i32, %c0_i32_0 : i32, i32, i32
  }
}

</mosaic_0001>

<llo_original>
// kernel: tpu_custom_call.1
$region0: #{tpu_custom_call.1}
  #allocation0 [shape = 'u32[]', space=smem, size = 0x4, offset = 0x4, fixed_abs, tag = 'smem constant byte address 0x4 - core index']
  #allocation1 [shape = 'u32[72,128]{1,0:T(1,128)}', space=vmem, size = 0x9000, scoped, tag = 'internal scratch']
  %s0 = inlined_call_operand.vmem [shape: f32[2,32,128], index: 0, kind: input, shape index: {}]
  %s1 = inlined_call_operand.hbm [shape: f32[2,4,256], index: 1, kind: input, shape index: {}]
  %s2 = inlined_call_operand.vmem [shape: f32[2,1,128], index: 2, kind: input, shape index: {}]
  %s3 = inlined_call_operand.vmem [shape: f32[2], index: 3, kind: input, shape index: {}]
  %s4 = inlined_call_operand.vmem [shape: f32[4], index: 4, kind: input, shape index: {}]
  %s5 = inlined_call_operand.vmem [shape: f32[4], index: 5, kind: input, shape index: {}]
  %s6 = inlined_call_operand.vmem [shape: f32[32,4], index: 6, kind: input, shape index: {}]
  %s7 = inlined_call_operand.vmem [shape: f32[32,1], index: 7, kind: input, shape index: {}]
  %s8 = inlined_call_operand.vmem [shape: f32[32,32], index: 8, kind: input, shape index: {}]
  %s9 = inlined_call_operand.vmem [shape: f32[32,1], index: 9, kind: input, shape index: {}]
  %s10 = inlined_call_operand.vmem [shape: f32[32,32], index: 10, kind: input, shape index: {}]
  %s11 = inlined_call_operand.vmem [shape: f32[32,1], index: 11, kind: input, shape index: {}]
  %s12 = inlined_call_operand.hbm [shape: f32[2,32,256], index: 12, kind: output, shape index: {}]
  %s13 = sld [smem:[#allocation0]]
  $region97: #{tpu_custom_call.1} parent=0
    _
  %s15 = ssub.s32 1, %s13
  %s16 = scalar_select 0, %s15, %s13
  $region1: #{tpu_custom_call.1} parent=0
    #allocation2 [shape = 'u8[8192]{0}', space=vmem, size = 0x2000, scoped, tag = 'input window, operand 1']
    #allocation3 [shape = 's32[2]{0}', space=sflag, size = 0x8, scoped, tag = 'scoped memory for tpu_custom_call.1']
    #allocation4 [shape = 's32[2]{0}', space=sflag, size = 0x8, scoped, tag = 'scoped memory for tpu_custom_call.1']
    #allocation5 [shape = 's32[2]{0}', space=sflag, size = 0x8, scoped, tag = 'scoped memory for tpu_custom_call.1']
    #allocation6 [shape = 'u8[512]{0}', space=smem, size = 0x200, scoped, tag = 'input window, operand 3, single buffered']
    #allocation7 [shape = 'u8[512]{0}', space=smem, size = 0x200, scoped, tag = 'input window, operand 4, single buffered']
    #allocation8 [shape = 's32[1]{0}', space=sflag, size = 0x4, scoped, tag = 'scoped memory for tpu_custom_call.1']
    #allocation9 [shape = 'u8[512]{0}', space=smem, size = 0x200, scoped, tag = 'input window, operand 5, single buffered']
    #allocation10 [shape = 'u8[65536]{0}', space=vmem, size = 0x10000, scoped, tag = 'output window, operand 0']
    %17 = vsyncpa [#allocation3], 0
    %s18 = scalar_lea.sflag [#allocation3], 1
    %19 = vsyncpa %s18, 0
    %20 = vsyncpa [#allocation5], 0
    %21 = vsyncpa [#allocation8], 0
    %22 = vsyncpa [#allocation4], 0
    %s23 = scalar_lea.sflag [#allocation4], 1
    %24 = vsyncpa %s23, 0
    loop: start=0, step=1, limit=4
    $region2: #{tpu_custom_call.1} parent=1 // loop_pre_header
      _
    $region3: #{tpu_custom_call.1} parent=1 // loop_header
      %s26 = sphi 0, %s30
      %p27 = scmp.ge.s32.totalorder %s26, 4
      %s36 = sphi 0, %s38
      %s39 = sphi 0, %s36
      %s40 = sphi 0, %s39
      %s56 = sphi 0, %s40
      %s62 = sphi 0, %s64
      %s65 = sphi 0, %s62
      %s66 = sphi 0, %s65
      %s82 = sphi 0, %s66
      %s88 = sphi 0, %s90
      %s91 = sphi 0, %s88
      %s92 = sphi 0, %s91
      %s108 = sphi 0, %s92
      %s112 = sphi 0, %s112
      %s114 = sphi 0, %s112
      %s115 = sphi 0, %s114
      %s129 = sphi 0, %s115
      %s133 = sphi 0, %s133
      %s135 = sphi 0, %s133
      %s136 = sphi 0, %s135
      %s150 = sphi 0, %s136
      %s154 = sphi 0, %s154
      %s156 = sphi 0, %s154
      %s157 = sphi 0, %s156
      %s171 = sphi 0, %s157
      %s175 = sphi 0, %s175
      %s177 = sphi 0, %s175
      %s178 = sphi 0, %s177
      %s192 = sphi 0, %s178
      %s196 = sphi 0, %s196
      %s198 = sphi 0, %s196
      %s199 = sphi 0, %s198
      %s213 = sphi 0, %s199
      %s217 = sphi 0, %s217
      %s219 = sphi 0, %s217
      %s220 = sphi 0, %s219
      %s234 = sphi 0, %s220
      %s238 = sphi 0, %s238
      %s240 = sphi 0, %s238
      %s241 = sphi 0, %s240
      %s255 = sphi 0, %s241
      %s259 = sphi 0, %s259
      %s261 = sphi 0, %s259
      %s262 = sphi 0, %s261
      %s276 = sphi 0, %s262
      %s280 = sphi 0, %s280
      %s282 = sphi 0, %s280
      %s283 = sphi 0, %s282
      %s297 = sphi 0, %s283
      %s303 = sphi 0, %s305
      %s306 = sphi 0, %s303
      %s307 = sphi 0, %s306
      %s323 = sphi 0, %s307
    $region4: #{tpu_custom_call.1} parent=1 // loop_header_branch
      %29 = sbr.rel (%p27) target = $region8
    $region5: #{tpu_custom_call.1} parent=1 // loop_body
      %s31 = ssub.s32 %s26, 1
      %s32 = ssub.s32 %s26, 2
      %s33 = sadd.s32 %s26, 1
      %s34 = ssub.s32 %s26, %s33
      %p35 = scmp.eq.s32.totalorder %s34, 0
      %s37 = sadd.s32 %s36, 1
      %s38 = scalar_select %p35, %s36, %s37
      %p41 = pneg %p35
      %p42 = scmp.eq.s32.totalorder %s26, 1
      %p43 = por %p41, %p42
      %p44 = scmp.ne.s32.totalorder %s36, %s39
      %p45 = scmp.eq.s32.totalorder %s26, 0
      %p46 = por %p44, %p45
      %p47 = scmp.ne.s32.totalorder %s36, %s39
      %p48 = scmp.eq.s32.totalorder %s31, 1
      %p49 = por %p47, %p48
      %p50 = scmp.ne.s32.totalorder %s39, %s40
      %p51 = scmp.eq.s32.totalorder %s31, 0
      %p52 = por %p50, %p51
      %p53 = scmp.ne.s32.totalorder %s39, %s40
      %p54 = scmp.eq.s32.totalorder %s32, 1
      %p55 = por %p53, %p54
      %p57 = scmp.ne.s32.totalorder %s40, %s56
      %p58 = scmp.eq.s32.totalorder %s32, 0
      %p59 = por %p57, %p58
      %s60 = ssub.s32 %s26, %s33
      %p61 = scmp.eq.s32.totalorder %s60, 0
      %s63 = sadd.s32 %s62, 1
      %s64 = scalar_select %p61, %s62, %s63
      %p67 = pneg %p61
      %p68 = scmp.eq.s32.totalorder %s26, 1
      %p69 = por %p67, %p68
      %p70 = scmp.ne.s32.totalorder %s62, %s65
      %p71 = scmp.eq.s32.totalorder %s26, 0
      %p72 = por %p70, %p71
      %p73 = scmp.ne.s32.totalorder %s62, %s65
      %p74 = scmp.eq.s32.totalorder %s31, 1
      %p75 = por %p73, %p74
      %p76 = scmp.ne.s32.totalorder %s65, %s66
      %p77 = scmp.eq.s32.totalorder %s31, 0
      %p78 = por %p76, %p77
      %p79 = scmp.ne.s32.totalorder %s65, %s66
      %p80 = scmp.eq.s32.totalorder %s32, 1
      %p81 = por %p79, %p80
      %p83 = scmp.ne.s32.totalorder %s66, %s82
      %p84 = scmp.eq.s32.totalorder %s32, 0
      %p85 = por %p83, %p84
      %s86 = ssub.s32 %s26, %s33
      %p87 = scmp.eq.s32.totalorder %s86, 0
      %s89 = sadd.s32 %s88, 1
      %s90 = scalar_select %p87, %s88, %s89
      %p93 = pneg %p87
      %p94 = scmp.eq.s32.totalorder %s26, 1
      %p95 = por %p93, %p94
      %p96 = scmp.ne.s32.totalorder %s88, %s91
      %p97 = scmp.eq.s32.totalorder %s26, 0
      %p98 = por %p96, %p97
      %p99 = scmp.ne.s32.totalorder %s88, %s91
      %p100 = scmp.eq.s32.totalorder %s31, 1
      %p101 = por %p99, %p100
      %p102 = scmp.ne.s32.totalorder %s91, %s92
      %p103 = scmp.eq.s32.totalorder %s31, 0
      %p104 = por %p102, %p103
      %p105 = scmp.ne.s32.totalorder %s91, %s92
      %p106 = scmp.eq.s32.totalorder %s32, 1
      %p107 = por %p105, %p106
      %p109 = scmp.ne.s32.totalorder %s92, %s108
      %p110 = scmp.eq.s32.totalorder %s32, 0
      %p111 = por %p109, %p110
      %s113 = sadd.s32 %s112, 1
      %p116 = scmp.eq.s32.totalorder %s26, 1
      %p117 = scmp.ne.s32.totalorder %s112, %s114
      %p118 = scmp.eq.s32.totalorder %s26, 0
      %p119 = por %p117, %p118
      %p120 = scmp.ne.s32.totalorder %s112, %s114
      %p121 = scmp.eq.s32.totalorder %s31, 1
      %p122 = por %p120, %p121
      %p123 = scmp.ne.s32.totalorder %s114, %s115
      %p124 = scmp.eq.s32.totalorder %s31, 0
      %p125 = por %p123, %p124
      %p126 = scmp.ne.s32.totalorder %s114, %s115
      %p127 = scmp.eq.s32.totalorder %s32, 1
      %p128 = por %p126, %p127
      %p130 = scmp.ne.s32.totalorder %s115, %s129
      %p131 = scmp.eq.s32.totalorder %s32, 0
      %p132 = por %p130, %p131
      %s134 = sadd.s32 %s133, 1
      %p137 = scmp.eq.s32.totalorder %s26, 1
      %p138 = scmp.ne.s32.totalorder %s133, %s135
      %p139 = scmp.eq.s32.totalorder %s26, 0
      %p140 = por %p138, %p139
      %p141 = scmp.ne.s32.totalorder %s133, %s135
      %p142 = scmp.eq.s32.totalorder %s31, 1
      %p143 = por %p141, %p142
      %p144 = scmp.ne.s32.totalorder %s135, %s136
      %p145 = scmp.eq.s32.totalorder %s31, 0
      %p146 = por %p144, %p145
      %p147 = scmp.ne.s32.totalorder %s135, %s136
      %p148 = scmp.eq.s32.totalorder %s32, 1
      %p149 = por %p147, %p148
      %p151 = scmp.ne.s32.totalorder %s136, %s150
      %p152 = scmp.eq.s32.totalorder %s32, 0
      %p153 = por %p151, %p152
      %s155 = sadd.s32 %s154, 1
      %p158 = scmp.eq.s32.totalorder %s26, 1
      %p159 = scmp.ne.s32.totalorder %s154, %s156
      %p160 = scmp.eq.s32.totalorder %s26, 0
      %p161 = por %p159, %p160
      %p162 = scmp.ne.s32.totalorder %s154, %s156
      %p163 = scmp.eq.s32.totalorder %s31, 1
      %p164 = por %p162, %p163
      %p165 = scmp.ne.s32.totalorder %s156, %s157
      %p166 = scmp.eq.s32.totalorder %s31, 0
      %p167 = por %p165, %p166
      %p168 = scmp.ne.s32.totalorder %s156, %s157
      %p169 = scmp.eq.s32.totalorder %s32, 1
      %p170 = por %p168, %p169
      %p172 = scmp.ne.s32.totalorder %s157, %s171
      %p173 = scmp.eq.s32.totalorder %s32, 0
      %p174 = por %p172, %p173
      %s176 = sadd.s32 %s175, 1
      %p179 = scmp.eq.s32.totalorder %s26, 1
      %p180 = scmp.ne.s32.totalorder %s175, %s177
      %p181 = scmp.eq.s32.totalorder %s26, 0
      %p182 = por %p180, %p181
      %p183 = scmp.ne.s32.totalorder %s175, %s177
      %p184 = scmp.eq.s32.totalorder %s31, 1
      %p185 = por %p183, %p184
      %p186 = scmp.ne.s32.totalorder %s177, %s178
      %p187 = scmp.eq.s32.totalorder %s31, 0
      %p188 = por %p186, %p187
      %p189 = scmp.ne.s32.totalorder %s177, %s178
      %p190 = scmp.eq.s32.totalorder %s32, 1
      %p191 = por %p189, %p190
      %p193 = scmp.ne.s32.totalorder %s178, %s192
      %p194 = scmp.eq.s32.totalorder %s32, 0
      %p195 = por %p193, %p194
      %s197 = sadd.s32 %s196, 1
      %p200 = scmp.eq.s32.totalorder %s26, 1
      %p201 = scmp.ne.s32.totalorder %s196, %s198
      %p202 = scmp.eq.s32.totalorder %s26, 0
      %p203 = por %p201, %p202
      %p204 = scmp.ne.s32.totalorder %s196, %s198
      %p205 = scmp.eq.s32.totalorder %s31, 1
      %p206 = por %p204, %p205
      %p207 = scmp.ne.s32.totalorder %s198, %s199
      %p208 = scmp.eq.s32.totalorder %s31, 0
      %p209 = por %p207, %p208
      %p210 = scmp.ne.s32.totalorder %s198, %s199
      %p211 = scmp.eq.s32.totalorder %s32, 1
      %p212 = por %p210, %p211
      %p214 = scmp.ne.s32.totalorder %s199, %s213
      %p215 = scmp.eq.s32.totalorder %s32, 0
      %p216 = por %p214, %p215
      %s218 = sadd.s32 %s217, 1
      %p221 = scmp.eq.s32.totalorder %s26, 1
      %p222 = scmp.ne.s32.totalorder %s217, %s219
      %p223 = scmp.eq.s32.totalorder %s26, 0
      %p224 = por %p222, %p223
      %p225 = scmp.ne.s32.totalorder %s217, %s219
      %p226 = scmp.eq.s32.totalorder %s31, 1
      %p227 = por %p225, %p226
      %p228 = scmp.ne.s32.totalorder %s219, %s220
      %p229 = scmp.eq.s32.totalorder %s31, 0
      %p230 = por %p228, %p229
      %p231 = scmp.ne.s32.totalorder %s219, %s220
      %p232 = scmp.eq.s32.totalorder %s32, 1
      %p233 = por %p231, %p232
      %p235 = scmp.ne.s32.totalorder %s220, %s234
      %p236 = scmp.eq.s32.totalorder %s32, 0
      %p237 = por %p235, %p236
      %s239 = sadd.s32 %s238, 1
      %p242 = scmp.eq.s32.totalorder %s26, 1
      %p243 = scmp.ne.s32.totalorder %s238, %s240
      %p244 = scmp.eq.s32.totalorder %s26, 0
      %p245 = por %p243, %p244
      %p246 = scmp.ne.s32.totalorder %s238, %s240
      %p247 = scmp.eq.s32.totalorder %s31, 1
      %p248 = por %p246, %p247
      %p249 = scmp.ne.s32.totalorder %s240, %s241
      %p250 = scmp.eq.s32.totalorder %s31, 0
      %p251 = por %p249, %p250
      %p252 = scmp.ne.s32.totalorder %s240, %s241
      %p253 = scmp.eq.s32.totalorder %s32, 1
      %p254 = por %p252, %p253
      %p256 = scmp.ne.s32.totalorder %s241, %s255
      %p257 = scmp.eq.s32.totalorder %s32, 0
      %p258 = por %p256, %p257
      %s260 = sadd.s32 %s259, 1
      %p263 = scmp.eq.s32.totalorder %s26, 1
      %p264 = scmp.ne.s32.totalorder %s259, %s261
      %p265 = scmp.eq.s32.totalorder %s26, 0
      %p266 = por %p264, %p265
      %p267 = scmp.ne.s32.totalorder %s259, %s261
      %p268 = scmp.eq.s32.totalorder %s31, 1
      %p269 = por %p267, %p268
      %p270 = scmp.ne.s32.totalorder %s261, %s262
      %p271 = scmp.eq.s32.totalorder %s31, 0
      %p272 = por %p270, %p271
      %p273 = scmp.ne.s32.totalorder %s261, %s262
      %p274 = scmp.eq.s32.totalorder %s32, 1
      %p275 = por %p273, %p274
      %p277 = scmp.ne.s32.totalorder %s262, %s276
      %p278 = scmp.eq.s32.totalorder %s32, 0
      %p279 = por %p277, %p278
      %s281 = sadd.s32 %s280, 1
      %p284 = scmp.eq.s32.totalorder %s26, 1
      %p285 = scmp.ne.s32.totalorder %s280, %s282
      %p286 = scmp.eq.s32.totalorder %s26, 0
      %p287 = por %p285, %p286
      %p288 = scmp.ne.s32.totalorder %s280, %s282
      %p289 = scmp.eq.s32.totalorder %s31, 1
      %p290 = por %p288, %p289
      %p291 = scmp.ne.s32.totalorder %s282, %s283
      %p292 = scmp.eq.s32.totalorder %s31, 0
      %p293 = por %p291, %p292
      %p294 = scmp.ne.s32.totalorder %s282, %s283
      %p295 = scmp.eq.s32.totalorder %s32, 1
      %p296 = por %p294, %p295
      %p298 = scmp.ne.s32.totalorder %s283, %s297
      %p299 = scmp.eq.s32.totalorder %s32, 0
      %p300 = por %p298, %p299
      %s301 = ssub.s32 %s26, %s33
      %p302 = scmp.eq.s32.totalorder %s301, 0
      %s304 = sadd.s32 %s303, 1
      %s305 = scalar_select %p302, %s303, %s304
      %p308 = pneg %p302
      %p309 = scmp.eq.s32.totalorder %s26, 1
      %p310 = por %p308, %p309
      %p311 = scmp.ne.s32.totalorder %s303, %s306
      %p312 = scmp.eq.s32.totalorder %s26, 0
      %p313 = por %p311, %p312
      %p314 = scmp.ne.s32.totalorder %s303, %s306
      %p315 = scmp.eq.s32.totalorder %s31, 1
      %p316 = por %p314, %p315
      %p317 = scmp.ne.s32.totalorder %s306, %s307
      %p318 = scmp.eq.s32.totalorder %s31, 0
      %p319 = por %p317, %p318
      %p320 = scmp.ne.s32.totalorder %s306, %s307
      %p321 = scmp.eq.s32.totalorder %s32, 1
      %p322 = por %p320, %p321
      %p324 = scmp.ne.s32.totalorder %s307, %s323
      %p325 = scmp.eq.s32.totalorder %s32, 0
      %p326 = por %p324, %p325
      %p327 = scmp.le.s32.totalorder 1, %s26
      %p328 = scmp.lt.s32.totalorder %s26, 3
      %p329 = pnand %p327, %p328
      %p330 = pneg %p329
      // Predicated region
      $region9: #{tpu_custom_call.1} parent=5 // pred_check
        _
      $region10: #{tpu_custom_call.1} parent=5 // pred_check_branch
        %332 = sbr.rel (%p329) target = $region12
      $region11: #{tpu_custom_call.1} parent=5 // pred_region
        %s333 = ssub.s32 %s26, 1
        // Predicated region
        $region13: #{tpu_custom_call.1} parent=11 // pred_check
          %p334 = pneg %p125
        $region14: #{tpu_custom_call.1} parent=11 // pred_check_branch
          %336 = sbr.rel (%p334) target = $region16
        $region15: #{tpu_custom_call.1} parent=11 // pred_region
          %338 = vsyncadd [#allocation5], 0
          %s340 = sshll.u32 %s3, 4
          %s341 = int_to_ptr.vmem [resolvable:$true] %s340
          %343 = dma.vmem_to_smem %s341, 16, [#allocation6], [#allocation5]
        $region16: #{tpu_custom_call.1} parent=11 // pred_fallthru
          _
        // Predicated region
        $region17: #{tpu_custom_call.1} parent=11 // pred_check
          %p344 = pneg %p146
        $region18: #{tpu_custom_call.1} parent=11 // pred_check_branch
          %346 = sbr.rel (%p344) target = $region20
        $region19: #{tpu_custom_call.1} parent=11 // pred_region
          %348 = vsyncadd [#allocation8], 0
          %s350 = sshll.u32 %s4, 4
          %s351 = int_to_ptr.vmem [resolvable:$true] %s350
          %353 = dma.vmem_to_smem %s351, 16, [#allocation7], [#allocation8]
        $region20: #{tpu_custom_call.1} parent=11 // pred_fallthru
          _
        // Predicated region
        $region21: #{tpu_custom_call.1} parent=11 // pred_check
          %p354 = pneg %p167
        $region22: #{tpu_custom_call.1} parent=11 // pred_check_branch
          %356 = sbr.rel (%p354) target = $region24
        $region23: #{tpu_custom_call.1} parent=11 // pred_region
          %358 = vsyncadd [#allocation8], 0
          %s360 = sshll.u32 %s5, 4
          %s361 = int_to_ptr.vmem [resolvable:$true] %s360
          %363 = dma.vmem_to_smem %s361, 16, [#allocation9], [#allocation8]
        $region24: #{tpu_custom_call.1} parent=11 // pred_fallthru
          _
        // Predicated region
        $region25: #{tpu_custom_call.1} parent=11 // pred_check
          %p364 = pneg %p188
        $region26: #{tpu_custom_call.1} parent=11 // pred_check_branch
          %366 = sbr.rel (%p364) target = $region28
        $region27: #{tpu_custom_call.1} parent=11 // pred_region
          _
        $region28: #{tpu_custom_call.1} parent=11 // pred_fallthru
          _
        // Predicated region
        $region29: #{tpu_custom_call.1} parent=11 // pred_check
          %p367 = pneg %p209
        $region30: #{tpu_custom_call.1} parent=11 // pred_check_branch
          %369 = sbr.rel (%p367) target = $region32
        $region31: #{tpu_custom_call.1} parent=11 // pred_region
          _
        $region32: #{tpu_custom_call.1} parent=11 // pred_fallthru
          _
        // Predicated region
        $region33: #{tpu_custom_call.1} parent=11 // pred_check
          %p370 = pneg %p230
        $region34: #{tpu_custom_call.1} parent=11 // pred_check_branch
          %372 = sbr.rel (%p370) target = $region36
        $region35: #{tpu_custom_call.1} parent=11 // pred_region
          _
        $region36: #{tpu_custom_call.1} parent=11 // pred_fallthru
          _
        // Predicated region
        $region37: #{tpu_custom_call.1} parent=11 // pred_check
          %p373 = pneg %p251
        $region38: #{tpu_custom_call.1} parent=11 // pred_check_branch
          %375 = sbr.rel (%p373) target = $region40
        $region39: #{tpu_custom_call.1} parent=11 // pred_region
          _
        $region40: #{tpu_custom_call.1} parent=11 // pred_fallthru
          _
        // Predicated region
        $region41: #{tpu_custom_call.1} parent=11 // pred_check
          %p376 = pneg %p272
        $region42: #{tpu_custom_call.1} parent=11 // pred_check_branch
          %378 = sbr.rel (%p376) target = $region44
        $region43: #{tpu_custom_call.1} parent=11 // pred_region
          _
        $region44: #{tpu_custom_call.1} parent=11 // pred_fallthru
          _
        // Predicated region
        $region45: #{tpu_custom_call.1} parent=11 // pred_check
          %p379 = pneg %p293
        $region46: #{tpu_custom_call.1} parent=11 // pred_check_branch
          %381 = sbr.rel (%p379) target = $region48
        $region47: #{tpu_custom_call.1} parent=11 // pred_region
          _
        $region48: #{tpu_custom_call.1} parent=11 // pred_fallthru
          _
      $region12: #{tpu_custom_call.1} parent=5 // pred_fallthru
        _
      %p382 = scmp.lt.s32.totalorder %s26, 2
      // Predicated region
      $region49: #{tpu_custom_call.1} parent=5 // pred_check
        %p383 = pneg %p382
      $region50: #{tpu_custom_call.1} parent=5 // pred_check_branch
        %385 = sbr.rel (%p383) target = $region52
      $region51: #{tpu_custom_call.1} parent=5 // pred_region
        // Predicated region
        $region53: #{tpu_custom_call.1} parent=51 // pred_check
          %p386 = pneg %p46
        $region54: #{tpu_custom_call.1} parent=51 // pred_check_branch
          %388 = sbr.rel (%p386) target = $region56
        $region55: #{tpu_custom_call.1} parent=51 // pred_region
          %p389 = scmp.lt.s32.totalorder %s26, 1
          %s390 = scalar_select %p389, %s26, 1
          %s391 = smul.addr %s390, 4
          %s392 = smul.addr %s391, 8
          %s393 = scalar_lea.vmem %s0, %s392
        $region56: #{tpu_custom_call.1} parent=51 // pred_fallthru
          _
        // Predicated region
        $region57: #{tpu_custom_call.1} parent=51 // pred_check
          %p394 = pneg %p72
        $region58: #{tpu_custom_call.1} parent=51 // pred_check_branch
          %396 = sbr.rel (%p394) target = $region60
        $region59: #{tpu_custom_call.1} parent=51 // pred_region
          %s397 = sand.u32 %s62, 1
          %s398 = scalar_lea.sflag [#allocation3], %s397
          %s399 = sand.u32 %s62, 1
          %s400 = smul.addr %s399, 8
          %s401 = scalar_lea.vmem [#allocation2], %s400
          %403 = vsyncadd %s398, 0
          %s404 = smul.addr %s26, 2
          %s405 = smul.addr %s404, 4
          %s406 = scalar_lea.hbm %s1, %s405
          %s408 = sshll.u32 %s406, 4
          %s409 = int_to_ptr.hbm [resolvable:$true] %s408
          %s410 = sshll.u32 %s401, 4
          %s411 = int_to_ptr.vmem [resolvable:$true] %s410
          %413 = dma.hbm_to_vmem [thread:$0]  %s409, 128, %s411, %s398
        $region60: #{tpu_custom_call.1} parent=51 // pred_fallthru
          _
        // Predicated region
        $region61: #{tpu_custom_call.1} parent=51 // pred_check
          %p414 = pneg %p98
        $region62: #{tpu_custom_call.1} parent=51 // pred_check_branch
          %416 = sbr.rel (%p414) target = $region64
        $region63: #{tpu_custom_call.1} parent=51 // pred_region
          %p417 = scmp.lt.s32.totalorder %s26, 1
          %s418 = scalar_select %p417, %s26, 1
          %s419 = scalar_lea.vmem %s2, %s418
        $region64: #{tpu_custom_call.1} parent=51 // pred_fallthru
          _
      $region52: #{tpu_custom_call.1} parent=5 // pred_fallthru
        _
      %p420 = scmp.le.s32.totalorder 1, %s26
      %p421 = scmp.lt.s32.totalorder %s26, 3
      %p422 = pnand %p420, %p421
      %p423 = pneg %p422
      // Predicated region
      $region65: #{tpu_custom_call.1} parent=5 // pred_check
        _
      $region66: #{tpu_custom_call.1} parent=5 // pred_check_branch
        %425 = sbr.rel (%p422) target = $region68
      $region67: #{tpu_custom_call.1} parent=5 // pred_region
        %s426 = ssub.s32 %s26, 1
        %s427 = sand.u32 %s65, 1
        %s428 = scalar_lea.sflag [#allocation3], %s427
        %s429 = sand.u32 %s65, 1
        %s430 = smul.addr %s429, 8
        %s431 = scalar_lea.vmem [#allocation2], %s430
        // Predicated region
        $region69: #{tpu_custom_call.1} parent=67 // pred_check
          %p432 = pneg %p78
        $region70: #{tpu_custom_call.1} parent=67 // pred_check_branch
          %434 = sbr.rel (%p432) target = $region72
        $region71: #{tpu_custom_call.1} parent=67 // pred_region
          %436 = dma.done %s428, 128
        $region72: #{tpu_custom_call.1} parent=67 // pred_fallthru
          _
        // Predicated region
        $region73: #{tpu_custom_call.1} parent=67 // pred_check
          %p437 = pneg %p125
        $region74: #{tpu_custom_call.1} parent=67 // pred_check_branch
          %439 = sbr.rel (%p437) target = $region76
        $region75: #{tpu_custom_call.1} parent=67 // pred_region
          %441 = dma.done [#allocation5], 16
        $region76: #{tpu_custom_call.1} parent=67 // pred_fallthru
          _
        // Predicated region
        $region77: #{tpu_custom_call.1} parent=67 // pred_check
          %p442 = pneg %p146
        $region78: #{tpu_custom_call.1} parent=67 // pred_check_branch
          %444 = sbr.rel (%p442) target = $region80
        $region79: #{tpu_custom_call.1} parent=67 // pred_region
          %446 = dma.done [#allocation8], 16
        $region80: #{tpu_custom_call.1} parent=67 // pred_fallthru
          _
        // Predicated region
        $region81: #{tpu_custom_call.1} parent=67 // pred_check
          %p447 = pneg %p167
        $region82: #{tpu_custom_call.1} parent=67 // pred_check_branch
          %449 = sbr.rel (%p447) target = $region84
        $region83: #{tpu_custom_call.1} parent=67 // pred_region
          %451 = dma.done [#allocation8], 16
        $region84: #{tpu_custom_call.1} parent=67 // pred_fallthru
          _
        %452 = sfence
        %p453 = scmp.lt.s32.totalorder %s31, 1
        %s454 = scalar_select %p453, %s31, 1
        %s455 = smul.addr %s454, 4
        %s456 = smul.addr %s455, 8
        %s457 = scalar_lea.vmem %s0, %s456
        %p458 = pneg %p52
        %p459 = pneg %p49
        %s460 = sand.u32 %s65, 1
        %s461 = scalar_lea.sflag [#allocation3], %s460
        %s462 = sand.u32 %s65, 1
        %s463 = smul.addr %s462, 8
        %s464 = scalar_lea.vmem [#allocation2], %s463
        %p465 = pneg %p78
        %p466 = pneg %p75
        %p467 = scmp.lt.s32.totalorder %s31, 1
        %s468 = scalar_select %p467, %s31, 1
        %s469 = scalar_lea.vmem %s2, %s468
        %p470 = pneg %p104
        %p471 = pneg %p101
        %p472 = pneg %p125
        %p473 = pneg %p122
        %p474 = pneg %p146
        %p475 = pneg %p143
        %p476 = pneg %p167
        %p477 = pneg %p164
        %p478 = pneg %p188
        %p479 = pneg %p185
        %p480 = pneg %p209
        %p481 = pneg %p206
        %p482 = pneg %p230
        %p483 = pneg %p227
        %p484 = pneg %p251
        %p485 = pneg %p248
        %p486 = pneg %p272
        %p487 = pneg %p269
        %p488 = pneg %p293
        %p489 = pneg %p290
        %p490 = pneg %p319
        %p491 = pneg %p316
        %s492 = sand.u32 %s306, 1
        %s493 = scalar_lea.sflag [#allocation4], %s492
        %s494 = sand.u32 %s306, 1
        %s495 = smul.addr %s494, 64
        %s496 = scalar_lea.vmem [#allocation10], %s495
        %p497 = scmp.lt.s32.totalorder %s31, 1
        %s498 = scalar_select %p497, %s31, 1
        %s499 = smul.addr %s498, 4
        %s500 = smul.addr %s499, 8
        %s501 = scalar_lea.vmem %s0, %s500
        %p502 = scmp.lt.s32.totalorder %s31, 1
        %s503 = scalar_select %p502, %s31, 1
        %s504 = scalar_lea.vmem %s2, %s503
        %v505 = vld [vmem:[%s431] sm:$0xff]
        %v506 = vld [vmem:[%s501] sm:$0xff]
        %v507 = vld [vmem:[%s501 + $0x8] sm:$0xff]
        %v508 = vld [vmem:[%s501 + $0x10] sm:$0xff]
        %v509 = vld [vmem:[%s501 + $0x18] sm:$0xff]
        %v510 = vld [vmem:[%s504] sm:$0x1]
        %v511 = vld [vmem:[%s6] sm:$0xff]
        %v512 = vld [vmem:[%s6 + $0x8] sm:$0xff]
        %v513 = vld [vmem:[%s6 + $0x10] sm:$0xff]
        %v514 = vld [vmem:[%s6 + $0x18] sm:$0xff]
        %v515 = vld [vmem:[%s7] sm:$0xff]
        %v516 = vld [vmem:[%s7 + $0x8] sm:$0xff]
        %v517 = vld [vmem:[%s7 + $0x10] sm:$0xff]
        %v518 = vld [vmem:[%s7 + $0x18] sm:$0xff]
        %520 = vset.pattern.permute.xlu0 0
        %521 = vperm.xlu0 %520, %v515
        %v522 = vpop.permute.xlu0 %521
        %525 = vset.pattern.permute.xlu0 0
        %526 = vperm.xlu0 %525, %v516
        %v527 = vpop.permute.xlu0 %526
        %530 = vset.pattern.permute.xlu0 0
        %531 = vperm.xlu0 %530, %v517
        %v532 = vpop.permute.xlu0 %531
        %535 = vset.pattern.permute.xlu0 0
        %536 = vperm.xlu0 %535, %v518
        %v537 = vpop.permute.xlu0 %536
        %540 = vst [vmem:[#allocation1] ss:$2 sm:$0xff] %v505
        %v541 = vld.sshfl [vmem:[#allocation1] sm:$0xff pattern:$0x75316420]
        %v542 = vld.sshfl [vmem:[#allocation1 + $0x8] sm:$0xff pattern:$0x75316420]
        %vm543 = vcmask 31744
        %v545 = vsel %vm543, %v511, 0
        %v548 = vsel %vm543, %v512, 0
        %v551 = vsel %vm543, %v513, 0
        %v554 = vsel %vm543, %v514, 0
        %vm556 = vcmask 1043456
        %v557 = vsel %vm556, %v541, 0
        %v559 = vsel %vm556, %v542, 0
        %561 = vmatpush.msra.mxu0 0.0
        %562 = vmatpush.msra.mxu0 0.0
        %563 = vmatpush.msra.mxu0 0.0
        %564 = vmatpush.msra.mxu0 0.0
        %565 = vmatpush.msra.mxu0 0.0
        %566 = vmatpush.msra.mxu0 0.0
        %567 = vmatpush.msra.mxu0 0.0
        %568 = vmatpush.msra.mxu0 0.0
        %569 = vmatpush.msra.mxu0 0.0
        %570 = vmatpush.msra.mxu0 0.0
        %571 = vmatpush.msra.mxu0 0.0
        %572 = vmatpush.msra.mxu0 0.0
        %573 = vmatpush.msra.mxu0 0.0
        %574 = vmatpush.msra.mxu0 0.0
        %575 = vmatpush.msra.mxu0 0.0
        %576 = vmatpush.msra.mxu0 %v557
        %577 = vmatmul.f32.gmra.mxu0 %v545
        %v578 = vpop.f32.mrf.mxu0
        %v579 = vadd.f32 %v522, %v578
        %580 = vmatmul.f32.gmra.mxu0 %v548
        %v581 = vpop.f32.mrf.mxu0
        %v582 = vadd.f32 %v527, %v581
        %583 = vmatmul.f32.gmra.mxu0 %v551
        %v584 = vpop.f32.mrf.mxu0
        %v585 = vadd.f32 %v532, %v584
        %586 = vmatmul.f32.gmra.mxu0 %v554
        %v587 = vpop.f32.mrf.mxu0
        %v588 = vadd.f32 %v537, %v587
        %589 = vdwg.mxu0
        %590 = vmatpush.msra.mxu0 0.0
        %591 = vmatpush.msra.mxu0 0.0
        %592 = vmatpush.msra.mxu0 0.0
        %593 = vmatpush.msra.mxu0 0.0
        %594 = vmatpush.msra.mxu0 0.0
        %595 = vmatpush.msra.mxu0 0.0
        %596 = vmatpush.msra.mxu0 0.0
        %597 = vmatpush.msra.mxu0 0.0
        %598 = vmatpush.msra.mxu0 0.0
        %599 = vmatpush.msra.mxu0 0.0
        %600 = vmatpush.msra.mxu0 0.0
        %601 = vmatpush.msra.mxu0 0.0
        %602 = vmatpush.msra.mxu0 0.0
        %603 = vmatpush.msra.mxu0 0.0
        %604 = vmatpush.msra.mxu0 0.0
        %605 = vmatpush.msra.mxu0 %v559
        %606 = vmatmul.f32.gmra.mxu0 %v545
        %v607 = vpop.f32.mrf.mxu0
        %v608 = vadd.f32 %v522, %v607
        %609 = vmatmul.f32.gmra.mxu0 %v548
        %v610 = vpop.f32.mrf.mxu0
        %v611 = vadd.f32 %v527, %v610
        %612 = vmatmul.f32.gmra.mxu0 %v551
        %v613 = vpop.f32.mrf.mxu0
        %v614 = vadd.f32 %v532, %v613
        %615 = vmatmul.f32.gmra.mxu0 %v554
        %v616 = vpop.f32.mrf.mxu0
        %v617 = vadd.f32 %v537, %v616
        %618 = vdwg.mxu0
        %v619 = vld [vmem:[%s8] sm:$0xff]
        %v620 = vld [vmem:[%s8 + $0x8] sm:$0xff]
        %v621 = vld [vmem:[%s8 + $0x10] sm:$0xff]
        %v622 = vld [vmem:[%s8 + $0x18] sm:$0xff]
        %v623 = vld [vmem:[%s9] sm:$0xff]
        %v624 = vld [vmem:[%s9 + $0x8] sm:$0xff]
        %v625 = vld [vmem:[%s9 + $0x10] sm:$0xff]
        %v626 = vld [vmem:[%s9 + $0x18] sm:$0xff]
        %628 = vset.pattern.permute.xlu0 0
        %629 = vperm.xlu0 %628, %v623
        %v630 = vpop.permute.xlu0 %629
        %633 = vset.pattern.permute.xlu0 0
        %634 = vperm.xlu0 %633, %v624
        %v635 = vpop.permute.xlu0 %634
        %638 = vset.pattern.permute.xlu0 0
        %639 = vperm.xlu0 %638, %v625
        %v640 = vpop.permute.xlu0 %639
        %643 = vset.pattern.permute.xlu0 0
        %644 = vperm.xlu0 %643, %v626
        %v645 = vpop.permute.xlu0 %644
        %vm647 = vcmask 261120
        %v649 = vsel %vm647, %v619, 0
        %v652 = vsel %vm647, %v620, 0
        %v655 = vsel %vm647, %v621, 0
        %v658 = vsel %vm647, %v622, 0
        %660 = vmatpush.msra.mxu0 0.0
        %661 = vmatpush.msra.mxu0 0.0
        %662 = vmatpush.msra.mxu0 0.0
        %663 = vmatpush.msra.mxu0 0.0
        %664 = vmatpush.msra.mxu0 0.0
        %665 = vmatpush.msra.mxu0 0.0
        %666 = vmatpush.msra.mxu0 0.0
        %667 = vmatpush.msra.mxu0 0.0
        %668 = vmatpush.msra.mxu0 0.0
        %669 = vmatpush.msra.mxu0 0.0
        %670 = vmatpush.msra.mxu0 0.0
        %671 = vmatpush.msra.mxu0 0.0
        %672 = vmatpush.msra.mxu0 %v509
        %673 = vmatpush.msra.mxu0 %v508
        %674 = vmatpush.msra.mxu0 %v507
        %675 = vmatpush.msra.mxu0 %v506
        %676 = vmatmul.f32.gmra.mxu0 %v649
        %v677 = vpop.f32.mrf.mxu0
        %v678 = vadd.f32 %v630, %v677
        %679 = vmatmul.f32.gmra.mxu0 %v652
        %v680 = vpop.f32.mrf.mxu0
        %v681 = vadd.f32 %v635, %v680
        %682 = vmatmul.f32.gmra.mxu0 %v655
        %v683 = vpop.f32.mrf.mxu0
        %v684 = vadd.f32 %v640, %v683
        %685 = vmatmul.f32.gmra.mxu0 %v658
        %v686 = vpop.f32.mrf.mxu0
        %v687 = vadd.f32 %v645, %v686
        %688 = vdwg.mxu0
        %v689 = vld [vmem:[%s10] sm:$0xff]
        %v690 = vld [vmem:[%s10 + $0x8] sm:$0xff]
        %v691 = vld [vmem:[%s10 + $0x10] sm:$0xff]
        %v692 = vld [vmem:[%s10 + $0x18] sm:$0xff]
        %v693 = vld [vmem:[%s11] sm:$0xff]
        %v694 = vld [vmem:[%s11 + $0x8] sm:$0xff]
        %v695 = vld [vmem:[%s11 + $0x10] sm:$0xff]
        %v696 = vld [vmem:[%s11 + $0x18] sm:$0xff]
        %698 = vset.pattern.permute.xlu0 0
        %699 = vperm.xlu0 %698, %v693
        %v700 = vpop.permute.xlu0 %699
        %703 = vset.pattern.permute.xlu0 0
        %704 = vperm.xlu0 %703, %v694
        %v705 = vpop.permute.xlu0 %704
        %708 = vset.pattern.permute.xlu0 0
        %709 = vperm.xlu0 %708, %v695
        %v710 = vpop.permute.xlu0 %709
        %713 = vset.pattern.permute.xlu0 0
        %714 = vperm.xlu0 %713, %v696
        %v715 = vpop.permute.xlu0 %714
        %v718 = vsel %vm647, %v689, 0
        %v721 = vsel %vm647, %v690, 0
        %v724 = vsel %vm647, %v691, 0
        %v727 = vsel %vm647, %v692, 0
        %729 = vmatpush.msra.mxu0 0.0
        %730 = vmatpush.msra.mxu0 0.0
        %731 = vmatpush.msra.mxu0 0.0
        %732 = vmatpush.msra.mxu0 0.0
        %733 = vmatpush.msra.mxu0 0.0
        %734 = vmatpush.msra.mxu0 0.0
        %735 = vmatpush.msra.mxu0 0.0
        %736 = vmatpush.msra.mxu0 0.0
        %737 = vmatpush.msra.mxu0 0.0
        %738 = vmatpush.msra.mxu0 0.0
        %739 = vmatpush.msra.mxu0 0.0
        %740 = vmatpush.msra.mxu0 0.0
        %741 = vmatpush.msra.mxu0 %v509
        %742 = vmatpush.msra.mxu0 %v508
        %743 = vmatpush.msra.mxu0 %v507
        %744 = vmatpush.msra.mxu0 %v506
        %745 = vmatmul.f32.gmra.mxu0 %v718
        %v746 = vpop.f32.mrf.mxu0
        %v747 = vadd.f32 %v700, %v746
        %748 = vmatmul.f32.gmra.mxu0 %v721
        %v749 = vpop.f32.mrf.mxu0
        %v750 = vadd.f32 %v705, %v749
        %751 = vmatmul.f32.gmra.mxu0 %v724
        %v752 = vpop.f32.mrf.mxu0
        %v753 = vadd.f32 %v710, %v752
        %754 = vmatmul.f32.gmra.mxu0 %v727
        %v755 = vpop.f32.mrf.mxu0
        %v756 = vadd.f32 %v715, %v755
        %757 = vdwg.mxu0
        %s758 = sld [smem:[#allocation6 + %s31]]
        %s759 = smax.f32 %s758, 1.0
        %v760 = vstv %s759
        %v761 = vrcp.pop %v760
        %v762 = vmul.f32 %v760, %v761
        %v763 = vsub.f32 1.0, %v762
        %v764 = vmul.f32 %v761, %v763
        %v765 = vadd.f32 %v761, %v764
        %vm766 = vweird.f32 %v760
        %vm767 = vweird.f32 %v761
        %vm768 = vmor %vm766, %vm767
        %v769 = vsel %vm768, %v761, %v765
        %v770 = vand.u32 2147483647, %v760
        %vm771 = vcmp.eq.f32.partialorder %v770, 8.507059e+37
        %v772 = vand.u32 %v760, 2147483648
        %v773 = vor.u32 1.1754944e-38, %v772
        %v774 = vsel %vm771, %v773, %v769
        %s775 = vtos %v774
        %v776 = vstv %s759
        %v777 = vrsqrt.pop %v776
        %v778 = vmul.f32 %v777, %v776
        %v779 = vmul.f32 %v778, %v777
        %v780 = vmul.f32 0.5, %v779
        %v781 = vsub.f32 1.5, %v780
        %v782 = vmul.f32 %v777, %v781
        %vm783 = vweird.f32 %v776
        %vm784 = vweird.f32 %v777
        %vm785 = vmor %vm783, %vm784
        %v786 = vsel %vm785, %v777, %v782
        %s787 = vtos %v786
        %v789 = vperm.slane %v510, 0
        %v791 = vmul.f32 %v678, %v789
        %v792 = vmul.f32 %v681, %v789
        %v793 = vmul.f32 %v684, %v789
        %v794 = vmul.f32 %v687, %v789
        %795 = vadd.xlane.f32.xlu0 %v791
        %v796 = vpop.xlane.xlu0 %795
        %797 = vadd.xlane.f32.xlu0 %v792
        %v798 = vpop.xlane.xlu0 %797
        %799 = vadd.xlane.f32.xlu0 %v793
        %v800 = vpop.xlane.xlu0 %799
        %801 = vadd.xlane.f32.xlu0 %v794
        %v802 = vpop.xlane.xlu0 %801
        %v803 = vstv %s775
        %v804 = vmul.f32 %v796, %v803
        %v805 = vmul.f32 %v798, %v803
        %v806 = vmul.f32 %v800, %v803
        %v807 = vmul.f32 %v802, %v803
        %v808 = vstv %s787
        %v809 = vmul.f32 %v678, %v808
        %v810 = vmul.f32 %v681, %v808
        %v811 = vmul.f32 %v684, %v808
        %v812 = vmul.f32 %v687, %v808
        %vm813 = vcmp.eq.f32.partialorder %v510, 0.0
        %v814 = vsel %vm813, -1e+30, 0.0
        %815 = vxpose.xlu0.b32.start [1/16] %v804, 128
        %816 = vxpose.xlu0.b32.cont [2/16] 0.0, 128
        %817 = vxpose.xlu0.b32.cont [3/16] 0.0, 128
        %818 = vxpose.xlu0.b32.cont [4/16] 0.0, 128
        %819 = vxpose.xlu0.b32.cont [5/16] 0.0, 128
        %820 = vxpose.xlu0.b32.cont [6/16] 0.0, 128
        %821 = vxpose.xlu0.b32.cont [7/16] 0.0, 128
        %822 = vxpose.xlu0.b32.cont [8/16] 0.0, 128
        %823 = vxpose.xlu0.b32.cont [9/16] 0.0, 128
        %824 = vxpose.xlu0.b32.cont [10/16] 0.0, 128
        %825 = vxpose.xlu0.b32.cont [11/16] 0.0, 128
        %826 = vxpose.xlu0.b32.cont [12/16] 0.0, 128
        %827 = vxpose.xlu0.b32.cont [13/16] 0.0, 128
        %828 = vxpose.xlu0.b32.cont [14/16] 0.0, 128
        %829 = vxpose.xlu0.b32.cont [15/16] 0.0, 128
        %830 = vxpose.xlu0.b32.end [16/16] 0.0, 128
        %v831 = vpop.trf.xlu0
        %v832 = vpop.trf.xlu0
        %v833 = vpop.trf.xlu0
        %v834 = vpop.trf.xlu0
        %v835 = vpop.trf.xlu0
        %v836 = vpop.trf.xlu0
        %v837 = vpop.trf.xlu0
        %v838 = vpop.trf.xlu0
        %v839 = vpop.trf.xlu0
        %v840 = vpop.trf.xlu0
        %v841 = vpop.trf.xlu0
        %v842 = vpop.trf.xlu0
        %v843 = vpop.trf.xlu0
        %v844 = vpop.trf.xlu0
        %v845 = vpop.trf.xlu0
        %v846 = vpop.trf.xlu0
        %vm847 = vcmask 64512
        %v849 = vsel %vm847, %v831, 0
        %851 = vmatpush.msra.mxu0 0.0
        %852 = vmatpush.msra.mxu0 0.0
        %853 = vmatpush.msra.mxu0 0.0
        %854 = vmatpush.msra.mxu0 0.0
        %855 = vmatpush.msra.mxu0 0.0
        %856 = vmatpush.msra.mxu0 0.0
        %857 = vmatpush.msra.mxu0 0.0
        %858 = vmatpush.msra.mxu0 0.0
        %859 = vmatpush.msra.mxu0 0.0
        %860 = vmatpush.msra.mxu0 0.0
        %861 = vmatpush.msra.mxu0 0.0
        %862 = vmatpush.msra.mxu0 0.0
        %863 = vmatpush.msra.mxu0 0.0
        %864 = vmatpush.msra.mxu0 0.0
        %865 = vmatpush.msra.mxu0 0.0
        %866 = vmatpush.msra.mxu0 %v579
        %867 = vmatmul.f32.gmra.mxu0 %v849
        %v868 = vpop.f32.mrf.mxu0
        %v869 = vadd.f32 0.0, %v868
        %870 = vdwg.mxu0
        %871 = vmatpush.msra.mxu0 0.0
        %872 = vmatpush.msra.mxu0 0.0
        %873 = vmatpush.msra.mxu0 0.0
        %874 = vmatpush.msra.mxu0 0.0
        %875 = vmatpush.msra.mxu0 0.0
        %876 = vmatpush.msra.mxu0 0.0
        %877 = vmatpush.msra.mxu0 0.0
        %878 = vmatpush.msra.mxu0 0.0
        %879 = vmatpush.msra.mxu0 0.0
        %880 = vmatpush.msra.mxu0 0.0
        %881 = vmatpush.msra.mxu0 0.0
        %882 = vmatpush.msra.mxu0 0.0
        %883 = vmatpush.msra.mxu0 0.0
        %884 = vmatpush.msra.mxu0 0.0
        %885 = vmatpush.msra.mxu0 0.0
        %886 = vmatpush.msra.mxu0 %v608
        %887 = vmatmul.f32.gmra.mxu0 %v849
        %v888 = vpop.f32.mrf.mxu0
        %v889 = vadd.f32 0.0, %v888
        %890 = vdwg.mxu0
        %s891 = sld [smem:[#allocation7]]
        %v892 = vstv %s891
        %v893 = vmul.f32 %v869, %v892
        %v894 = vmul.f32 %v889, %v892
        %s895 = sld [smem:[#allocation9]]
        %v896 = vstv %s895
        %v897 = vadd.f32 %v893, %v896
        %v898 = vadd.f32 %v894, %v896
        %v899 = vxor.u32 %v897, 2147483648
        %v900 = vxor.u32 %v898, 2147483648
        %v901 = vmul.f32 %v899, 1.442695
        %v902 = vpow.pop %v901
        %v903 = vmul.f32 %v900, 1.442695
        %v904 = vpow.pop %v903
        %v905 = vadd.f32 %v902, 1.0
        %v906 = vadd.f32 %v904, 1.0
        %v907 = vrcp.pop %v905
        %v908 = vmul.f32 %v905, %v907
        %v909 = vsub.f32 1.0, %v908
        %v910 = vmul.f32 %v907, %v909
        %v911 = vadd.f32 %v907, %v910
        %vm912 = vweird.f32 %v905
        %vm913 = vweird.f32 %v907
        %vm914 = vmor %vm912, %vm913
        %v915 = vsel %vm914, %v907, %v911
        %v916 = vand.u32 2147483647, %v905
        %vm917 = vcmp.eq.f32.partialorder %v916, 8.507059e+37
        %v918 = vand.u32 %v905, 2147483648
        %v919 = vor.u32 1.1754944e-38, %v918
        %v920 = vsel %vm917, %v919, %v915
        %v921 = vmul.f32 1.0, %v920
        %v922 = vrcp.pop %v906
        %v923 = vmul.f32 %v906, %v922
        %v924 = vsub.f32 1.0, %v923
        %v925 = vmul.f32 %v922, %v924
        %v926 = vadd.f32 %v922, %v925
        %vm927 = vweird.f32 %v906
        %vm928 = vweird.f32 %v922
        %vm929 = vmor %vm927, %vm928
        %v930 = vsel %vm929, %v922, %v926
        %v931 = vand.u32 2147483647, %v906
        %vm932 = vcmp.eq.f32.partialorder %v931, 8.507059e+37
        %v933 = vand.u32 %v906, 2147483648
        %v934 = vor.u32 1.1754944e-38, %v933
        %v935 = vsel %vm932, %v934, %v930
        %v936 = vmul.f32 1.0, %v935
        %v938 = vperm.slane %v814, 0
        %940 = vxpose.xlu0.b32.start [1/16] %v579, 128
        %941 = vxpose.xlu0.b32.cont [2/16] 0.0, 128
        %942 = vxpose.xlu0.b32.cont [3/16] 0.0, 128
        %943 = vxpose.xlu0.b32.cont [4/16] 0.0, 128
        %944 = vxpose.xlu0.b32.cont [5/16] 0.0, 128
        %945 = vxpose.xlu0.b32.cont [6/16] 0.0, 128
        %946 = vxpose.xlu0.b32.cont [7/16] 0.0, 128
        %947 = vxpose.xlu0.b32.cont [8/16] 0.0, 128
        %948 = vxpose.xlu0.b32.cont [9/16] 0.0, 128
        %949 = vxpose.xlu0.b32.cont [10/16] 0.0, 128
        %950 = vxpose.xlu0.b32.cont [11/16] 0.0, 128
        %951 = vxpose.xlu0.b32.cont [12/16] 0.0, 128
        %952 = vxpose.xlu0.b32.cont [13/16] 0.0, 128
        %953 = vxpose.xlu0.b32.cont [14/16] 0.0, 128
        %954 = vxpose.xlu0.b32.cont [15/16] 0.0, 128
        %955 = vxpose.xlu0.b32.end [16/16] 0.0, 128
        %v956 = vpop.trf.xlu0
        %v957 = vpop.trf.xlu0
        %v958 = vpop.trf.xlu0
        %v959 = vpop.trf.xlu0
        %v960 = vpop.trf.xlu0
        %v961 = vpop.trf.xlu0
        %v962 = vpop.trf.xlu0
        %v963 = vpop.trf.xlu0
        %v964 = vpop.trf.xlu0
        %v965 = vpop.trf.xlu0
        %v966 = vpop.trf.xlu0
        %v967 = vpop.trf.xlu0
        %v968 = vpop.trf.xlu0
        %v969 = vpop.trf.xlu0
        %v970 = vpop.trf.xlu0
        %v971 = vpop.trf.xlu0
        %972 = vxpose.xlu0.b32.start [1/16] %v608, 128
        %973 = vxpose.xlu0.b32.cont [2/16] 0.0, 128
        %974 = vxpose.xlu0.b32.cont [3/16] 0.0, 128
        %975 = vxpose.xlu0.b32.cont [4/16] 0.0, 128
        %976 = vxpose.xlu0.b32.cont [5/16] 0.0, 128
        %977 = vxpose.xlu0.b32.cont [6/16] 0.0, 128
        %978 = vxpose.xlu0.b32.cont [7/16] 0.0, 128
        %979 = vxpose.xlu0.b32.cont [8/16] 0.0, 128
        %980 = vxpose.xlu0.b32.cont [9/16] 0.0, 128
        %981 = vxpose.xlu0.b32.cont [10/16] 0.0, 128
        %982 = vxpose.xlu0.b32.cont [11/16] 0.0, 128
        %983 = vxpose.xlu0.b32.cont [12/16] 0.0, 128
        %984 = vxpose.xlu0.b32.cont [13/16] 0.0, 128
        %985 = vxpose.xlu0.b32.cont [14/16] 0.0, 128
        %986 = vxpose.xlu0.b32.cont [15/16] 0.0, 128
        %987 = vxpose.xlu0.b32.end [16/16] 0.0, 128
        %v988 = vpop.trf.xlu0
        %v989 = vpop.trf.xlu0
        %v990 = vpop.trf.xlu0
        %v991 = vpop.trf.xlu0
        %v992 = vpop.trf.xlu0
        %v993 = vpop.trf.xlu0
        %v994 = vpop.trf.xlu0
        %v995 = vpop.trf.xlu0
        %v996 = vpop.trf.xlu0
        %v997 = vpop.trf.xlu0
        %v998 = vpop.trf.xlu0
        %v999 = vpop.trf.xlu0
        %v1000 = vpop.trf.xlu0
        %v1001 = vpop.trf.xlu0
        %v1002 = vpop.trf.xlu0
        %v1003 = vpop.trf.xlu0
        %v1005 = vsel %vm847, %v956, 0
        %v1008 = vsel %vm847, %v957, 0
        %v1011 = vsel %vm847, %v958, 0
        %v1014 = vsel %vm847, %v959, 0
        %v1017 = vsel %vm847, %v960, 0
        %v1020 = vsel %vm847, %v961, 0
        %v1023 = vsel %vm847, %v962, 0
        %v1026 = vsel %vm847, %v963, 0
        %v1029 = vsel %vm847, %v964, 0
        %v1032 = vsel %vm847, %v965, 0
        %v1035 = vsel %vm847, %v966, 0
        %v1038 = vsel %vm847, %v967, 0
        %v1041 = vsel %vm847, %v968, 0
        %v1044 = vsel %vm847, %v969, 0
        %v1047 = vsel %vm847, %v970, 0
        %v1050 = vsel %vm847, %v971, 0
        %v1053 = vsel %vm847, %v988, 0
        %v1056 = vsel %vm847, %v989, 0
        %v1059 = vsel %vm847, %v990, 0
        %v1062 = vsel %vm847, %v991, 0
        %v1065 = vsel %vm847, %v992, 0
        %v1068 = vsel %vm847, %v993, 0
        %v1071 = vsel %vm847, %v994, 0
        %v1074 = vsel %vm847, %v995, 0
        %v1077 = vsel %vm847, %v996, 0
        %v1080 = vsel %vm847, %v997, 0
        %v1083 = vsel %vm847, %v998, 0
        %v1086 = vsel %vm847, %v999, 0
        %v1089 = vsel %vm847, %v1000, 0
        %v1092 = vsel %vm847, %v1001, 0
        %v1095 = vsel %vm847, %v1002, 0
        %v1098 = vsel %vm847, %v1003, 0
        %1100 = vmatpush.msra.mxu0 0.0
        %1101 = vmatpush.msra.mxu0 0.0
        %1102 = vmatpush.msra.mxu0 0.0
        %1103 = vmatpush.msra.mxu0 0.0
        %1104 = vmatpush.msra.mxu0 0.0
        %1105 = vmatpush.msra.mxu0 0.0
        %1106 = vmatpush.msra.mxu0 0.0
        %1107 = vmatpush.msra.mxu0 0.0
        %1108 = vmatpush.msra.mxu0 0.0
        %1109 = vmatpush.msra.mxu0 0.0
        %1110 = vmatpush.msra.mxu0 0.0
        %1111 = vmatpush.msra.mxu0 0.0
        %1112 = vmatpush.msra.mxu0 0.0
        %1113 = vmatpush.msra.mxu0 0.0
        %1114 = vmatpush.msra.mxu0 0.0
        %1115 = vmatpush.msra.mxu0 %v809
        %1116 = vmatmul.f32.gmra.mxu0 %v1005
        %v1117 = vpop.f32.mrf.mxu0
        %v1118 = vadd.f32 %v938, %v1117
        %1119 = vmatmul.f32.gmra.mxu0 %v1008
        %v1120 = vpop.f32.mrf.mxu0
        %v1121 = vadd.f32 %v938, %v1120
        %1122 = vmatmul.f32.gmra.mxu0 %v1011
        %v1123 = vpop.f32.mrf.mxu0
        %v1124 = vadd.f32 %v938, %v1123
        %1125 = vmatmul.f32.gmra.mxu0 %v1014
        %v1126 = vpop.f32.mrf.mxu0
        %v1127 = vadd.f32 %v938, %v1126
        %1128 = vmatmul.f32.gmra.mxu0 %v1017
        %v1129 = vpop.f32.mrf.mxu0
        %v1130 = vadd.f32 %v938, %v1129
        %1131 = vmatmul.f32.gmra.mxu0 %v1020
        %v1132 = vpop.f32.mrf.mxu0
        %v1133 = vadd.f32 %v938, %v1132
        %1134 = vmatmul.f32.gmra.mxu0 %v1023
        %v1135 = vpop.f32.mrf.mxu0
        %v1136 = vadd.f32 %v938, %v1135
        %1137 = vmatmul.f32.gmra.mxu0 %v1026
        %v1138 = vpop.f32.mrf.mxu0
        %v1139 = vadd.f32 %v938, %v1138
        %1140 = vmatmul.f32.gmra.mxu0 %v1029
        %v1141 = vpop.f32.mrf.mxu0
        %v1142 = vadd.f32 %v938, %v1141
        %1143 = vmatmul.f32.gmra.mxu0 %v1032
        %v1144 = vpop.f32.mrf.mxu0
        %v1145 = vadd.f32 %v938, %v1144
        %1146 = vmatmul.f32.gmra.mxu0 %v1035
        %v1147 = vpop.f32.mrf.mxu0
        %v1148 = vadd.f32 %v938, %v1147
        %1149 = vmatmul.f32.gmra.mxu0 %v1038
        %v1150 = vpop.f32.mrf.mxu0
        %v1151 = vadd.f32 %v938, %v1150
        %1152 = vmatmul.f32.gmra.mxu0 %v1041
        %v1153 = vpop.f32.mrf.mxu0
        %v1154 = vadd.f32 %v938, %v1153
        %1155 = vmatmul.f32.gmra.mxu0 %v1044
        %v1156 = vpop.f32.mrf.mxu0
        %v1157 = vadd.f32 %v938, %v1156
        %1158 = vmatmul.f32.gmra.mxu0 %v1047
        %v1159 = vpop.f32.mrf.mxu0
        %v1160 = vadd.f32 %v938, %v1159
        %1161 = vmatmul.f32.gmra.mxu0 %v1050
        %v1162 = vpop.f32.mrf.mxu0
        %v1163 = vadd.f32 %v938, %v1162
        %1164 = vmatmul.f32.gmra.mxu0 %v1053
        %v1165 = vpop.f32.mrf.mxu0
        %v1166 = vadd.f32 %v938, %v1165
        %1167 = vmatmul.f32.gmra.mxu0 %v1056
        %v1168 = vpop.f32.mrf.mxu0
        %v1169 = vadd.f32 %v938, %v1168
        %1170 = vmatmul.f32.gmra.mxu0 %v1059
        %v1171 = vpop.f32.mrf.mxu0
        %v1172 = vadd.f32 %v938, %v1171
        %1173 = vmatmul.f32.gmra.mxu0 %v1062
        %v1174 = vpop.f32.mrf.mxu0
        %v1175 = vadd.f32 %v938, %v1174
        %1176 = vmatmul.f32.gmra.mxu0 %v1065
        %v1177 = vpop.f32.mrf.mxu0
        %v1178 = vadd.f32 %v938, %v1177
        %1179 = vmatmul.f32.gmra.mxu0 %v1068
        %v1180 = vpop.f32.mrf.mxu0
        %v1181 = vadd.f32 %v938, %v1180
        %1182 = vmatmul.f32.gmra.mxu0 %v1071
        %v1183 = vpop.f32.mrf.mxu0
        %v1184 = vadd.f32 %v938, %v1183
        %1185 = vmatmul.f32.gmra.mxu0 %v1074
        %v1186 = vpop.f32.mrf.mxu0
        %v1187 = vadd.f32 %v938, %v1186
        %1188 = vmatmul.f32.gmra.mxu0 %v1077
        %v1189 = vpop.f32.mrf.mxu0
        %v1190 = vadd.f32 %v938, %v1189
        %1191 = vmatmul.f32.gmra.mxu0 %v1080
        %v1192 = vpop.f32.mrf.mxu0
        %v1193 = vadd.f32 %v938, %v1192
        %1194 = vmatmul.f32.gmra.mxu0 %v1083
        %v1195 = vpop.f32.mrf.mxu0
        %v1196 = vadd.f32 %v938, %v1195
        %1197 = vmatmul.f32.gmra.mxu0 %v1086
        %v1198 = vpop.f32.mrf.mxu0
        %v1199 = vadd.f32 %v938, %v1198
        %1200 = vmatmul.f32.gmra.mxu0 %v1089
        %v1201 = vpop.f32.mrf.mxu0
        %v1202 = vadd.f32 %v938, %v1201
        %1203 = vmatmul.f32.gmra.mxu0 %v1092
        %v1204 = vpop.f32.mrf.mxu0
        %v1205 = vadd.f32 %v938, %v1204
        %1206 = vmatmul.f32.gmra.mxu0 %v1095
        %v1207 = vpop.f32.mrf.mxu0
        %v1208 = vadd.f32 %v938, %v1207
        %1209 = vmatmul.f32.gmra.mxu0 %v1098
        %v1210 = vpop.f32.mrf.mxu0
        %v1211 = vadd.f32 %v938, %v1210
        %1212 = vdwg.mxu0
        %1213 = vmax.xlane.f32.xlu0 %v1118
        %v1214 = vpop.xlane.xlu0 %1213
        %1215 = vmax.xlane.f32.xlu0 %v1121
        %v1216 = vpop.xlane.xlu0 %1215
        %1217 = vmax.xlane.f32.xlu0 %v1124
        %v1218 = vpop.xlane.xlu0 %1217
        %1219 = vmax.xlane.f32.xlu0 %v1127
        %v1220 = vpop.xlane.xlu0 %1219
        %1221 = vmax.xlane.f32.xlu0 %v1130
        %v1222 = vpop.xlane.xlu0 %1221
        %1223 = vmax.xlane.f32.xlu0 %v1133
        %v1224 = vpop.xlane.xlu0 %1223
        %1225 = vmax.xlane.f32.xlu0 %v1136
        %v1226 = vpop.xlane.xlu0 %1225
        %1227 = vmax.xlane.f32.xlu0 %v1139
        %v1228 = vpop.xlane.xlu0 %1227
        %1229 = vmax.xlane.f32.xlu0 %v1142
        %v1230 = vpop.xlane.xlu0 %1229
        %1231 = vmax.xlane.f32.xlu0 %v1145
        %v1232 = vpop.xlane.xlu0 %1231
        %1233 = vmax.xlane.f32.xlu0 %v1148
        %v1234 = vpop.xlane.xlu0 %1233
        %1235 = vmax.xlane.f32.xlu0 %v1151
        %v1236 = vpop.xlane.xlu0 %1235
        %1237 = vmax.xlane.f32.xlu0 %v1154
        %v1238 = vpop.xlane.xlu0 %1237
        %1239 = vmax.xlane.f32.xlu0 %v1157
        %v1240 = vpop.xlane.xlu0 %1239
        %1241 = vmax.xlane.f32.xlu0 %v1160
        %v1242 = vpop.xlane.xlu0 %1241
        %1243 = vmax.xlane.f32.xlu0 %v1163
        %v1244 = vpop.xlane.xlu0 %1243
        %1245 = vmax.xlane.f32.xlu0 %v1166
        %v1246 = vpop.xlane.xlu0 %1245
        %1247 = vmax.xlane.f32.xlu0 %v1169
        %v1248 = vpop.xlane.xlu0 %1247
        %1249 = vmax.xlane.f32.xlu0 %v1172
        %v1250 = vpop.xlane.xlu0 %1249
        %1251 = vmax.xlane.f32.xlu0 %v1175
        %v1252 = vpop.xlane.xlu0 %1251
        %1253 = vmax.xlane.f32.xlu0 %v1178
        %v1254 = vpop.xlane.xlu0 %1253
        %1255 = vmax.xlane.f32.xlu0 %v1181
        %v1256 = vpop.xlane.xlu0 %1255
        %1257 = vmax.xlane.f32.xlu0 %v1184
        %v1258 = vpop.xlane.xlu0 %1257
        %1259 = vmax.xlane.f32.xlu0 %v1187
        %v1260 = vpop.xlane.xlu0 %1259
        %1261 = vmax.xlane.f32.xlu0 %v1190
        %v1262 = vpop.xlane.xlu0 %1261
        %1263 = vmax.xlane.f32.xlu0 %v1193
        %v1264 = vpop.xlane.xlu0 %1263
        %1265 = vmax.xlane.f32.xlu0 %v1196
        %v1266 = vpop.xlane.xlu0 %1265
        %1267 = vmax.xlane.f32.xlu0 %v1199
        %v1268 = vpop.xlane.xlu0 %1267
        %1269 = vmax.xlane.f32.xlu0 %v1202
        %v1270 = vpop.xlane.xlu0 %1269
        %1271 = vmax.xlane.f32.xlu0 %v1205
        %v1272 = vpop.xlane.xlu0 %1271
        %1273 = vmax.xlane.f32.xlu0 %v1208
        %v1274 = vpop.xlane.xlu0 %1273
        %1275 = vmax.xlane.f32.xlu0 %v1211
        %v1276 = vpop.xlane.xlu0 %1275
        %v1277 = vsub.f32 %v1118, %v1214
        %v1278 = vsub.f32 %v1121, %v1216
        %v1279 = vsub.f32 %v1124, %v1218
        %v1280 = vsub.f32 %v1127, %v1220
        %v1281 = vsub.f32 %v1130, %v1222
        %v1282 = vsub.f32 %v1133, %v1224
        %v1283 = vsub.f32 %v1136, %v1226
        %v1284 = vsub.f32 %v1139, %v1228
        %v1285 = vsub.f32 %v1142, %v1230
        %v1286 = vsub.f32 %v1145, %v1232
        %v1287 = vsub.f32 %v1148, %v1234
        %v1288 = vsub.f32 %v1151, %v1236
        %v1289 = vsub.f32 %v1154, %v1238
        %v1290 = vsub.f32 %v1157, %v1240
        %v1291 = vsub.f32 %v1160, %v1242
        %v1292 = vsub.f32 %v1163, %v1244
        %v1293 = vsub.f32 %v1166, %v1246
        %v1294 = vsub.f32 %v1169, %v1248
        %v1295 = vsub.f32 %v1172, %v1250
        %v1296 = vsub.f32 %v1175, %v1252
        %v1297 = vsub.f32 %v1178, %v1254
        %v1298 = vsub.f32 %v1181, %v1256
        %v1299 = vsub.f32 %v1184, %v1258
        %v1300 = vsub.f32 %v1187, %v1260
        %v1301 = vsub.f32 %v1190, %v1262
        %v1302 = vsub.f32 %v1193, %v1264
        %v1303 = vsub.f32 %v1196, %v1266
        %v1304 = vsub.f32 %v1199, %v1268
        %v1305 = vsub.f32 %v1202, %v1270
        %v1306 = vsub.f32 %v1205, %v1272
        %v1307 = vsub.f32 %v1208, %v1274
        %v1308 = vsub.f32 %v1211, %v1276
        %v1309 = vmul.f32 %v1277, 1.442695
        %v1310 = vpow.pop %v1309
        %v1311 = vmul.f32 %v1278, 1.442695
        %v1312 = vpow.pop %v1311
        %v1313 = vmul.f32 %v1279, 1.442695
        %v1314 = vpow.pop %v1313
        %v1315 = vmul.f32 %v1280, 1.442695
        %v1316 = vpow.pop %v1315
        %v1317 = vmul.f32 %v1281, 1.442695
        %v1318 = vpow.pop %v1317
        %v1319 = vmul.f32 %v1282, 1.442695
        %v1320 = vpow.pop %v1319
        %v1321 = vmul.f32 %v1283, 1.442695
        %v1322 = vpow.pop %v1321
        %v1323 = vmul.f32 %v1284, 1.442695
        %v1324 = vpow.pop %v1323
        %v1325 = vmul.f32 %v1285, 1.442695
        %v1326 = vpow.pop %v1325
        %v1327 = vmul.f32 %v1286, 1.442695
        %v1328 = vpow.pop %v1327
        %v1329 = vmul.f32 %v1287, 1.442695
        %v1330 = vpow.pop %v1329
        %v1331 = vmul.f32 %v1288, 1.442695
        %v1332 = vpow.pop %v1331
        %v1333 = vmul.f32 %v1289, 1.442695
        %v1334 = vpow.pop %v1333
        %v1335 = vmul.f32 %v1290, 1.442695
        %v1336 = vpow.pop %v1335
        %v1337 = vmul.f32 %v1291, 1.442695
        %v1338 = vpow.pop %v1337
        %v1339 = vmul.f32 %v1292, 1.442695
        %v1340 = vpow.pop %v1339
        %v1341 = vmul.f32 %v1293, 1.442695
        %v1342 = vpow.pop %v1341
        %v1343 = vmul.f32 %v1294, 1.442695
        %v1344 = vpow.pop %v1343
        %v1345 = vmul.f32 %v1295, 1.442695
        %v1346 = vpow.pop %v1345
        %v1347 = vmul.f32 %v1296, 1.442695
        %v1348 = vpow.pop %v1347
        %v1349 = vmul.f32 %v1297, 1.442695
        %v1350 = vpow.pop %v1349
        %v1351 = vmul.f32 %v1298, 1.442695
        %v1352 = vpow.pop %v1351
        %v1353 = vmul.f32 %v1299, 1.442695
        %v1354 = vpow.pop %v1353
        %v1355 = vmul.f32 %v1300, 1.442695
        %v1356 = vpow.pop %v1355
        %v1357 = vmul.f32 %v1301, 1.442695
        %v1358 = vpow.pop %v1357
        %v1359 = vmul.f32 %v1302, 1.442695
        %v1360 = vpow.pop %v1359
        %v1361 = vmul.f32 %v1303, 1.442695
        %v1362 = vpow.pop %v1361
        %v1363 = vmul.f32 %v1304, 1.442695
        %v1364 = vpow.pop %v1363
        %v1365 = vmul.f32 %v1305, 1.442695
        %v1366 = vpow.pop %v1365
        %v1367 = vmul.f32 %v1306, 1.442695
        %v1368 = vpow.pop %v1367
        %v1369 = vmul.f32 %v1307, 1.442695
        %v1370 = vpow.pop %v1369
        %v1371 = vmul.f32 %v1308, 1.442695
        %v1372 = vpow.pop %v1371
        %1373 = vadd.xlane.f32.xlu0 %v1310
        %v1374 = vpop.xlane.xlu0 %1373
        %1375 = vadd.xlane.f32.xlu0 %v1312
        %v1376 = vpop.xlane.xlu0 %1375
        %1377 = vadd.xlane.f32.xlu0 %v1314
        %v1378 = vpop.xlane.xlu0 %1377
        %1379 = vadd.xlane.f32.xlu0 %v1316
        %v1380 = vpop.xlane.xlu0 %1379
        %1381 = vadd.xlane.f32.xlu0 %v1318
        %v1382 = vpop.xlane.xlu0 %1381
        %1383 = vadd.xlane.f32.xlu0 %v1320
        %v1384 = vpop.xlane.xlu0 %1383
        %1385 = vadd.xlane.f32.xlu0 %v1322
        %v1386 = vpop.xlane.xlu0 %1385
        %1387 = vadd.xlane.f32.xlu0 %v1324
        %v1388 = vpop.xlane.xlu0 %1387
        %1389 = vadd.xlane.f32.xlu0 %v1326
        %v1390 = vpop.xlane.xlu0 %1389
        %1391 = vadd.xlane.f32.xlu0 %v1328
        %v1392 = vpop.xlane.xlu0 %1391
        %1393 = vadd.xlane.f32.xlu0 %v1330
        %v1394 = vpop.xlane.xlu0 %1393
        %1395 = vadd.xlane.f32.xlu0 %v1332
        %v1396 = vpop.xlane.xlu0 %1395
        %1397 = vadd.xlane.f32.xlu0 %v1334
        %v1398 = vpop.xlane.xlu0 %1397
        %1399 = vadd.xlane.f32.xlu0 %v1336
        %v1400 = vpop.xlane.xlu0 %1399
        %1401 = vadd.xlane.f32.xlu0 %v1338
        %v1402 = vpop.xlane.xlu0 %1401
        %1403 = vadd.xlane.f32.xlu0 %v1340
        %v1404 = vpop.xlane.xlu0 %1403
        %1405 = vadd.xlane.f32.xlu0 %v1342
        %v1406 = vpop.xlane.xlu0 %1405
        %1407 = vadd.xlane.f32.xlu0 %v1344
        %v1408 = vpop.xlane.xlu0 %1407
        %1409 = vadd.xlane.f32.xlu0 %v1346
        %v1410 = vpop.xlane.xlu0 %1409
        %1411 = vadd.xlane.f32.xlu0 %v1348
        %v1412 = vpop.xlane.xlu0 %1411
        %1413 = vadd.xlane.f32.xlu0 %v1350
        %v1414 = vpop.xlane.xlu0 %1413
        %1415 = vadd.xlane.f32.xlu0 %v1352
        %v1416 = vpop.xlane.xlu0 %1415
        %1417 = vadd.xlane.f32.xlu0 %v1354
        %v1418 = vpop.xlane.xlu0 %1417
        %1419 = vadd.xlane.f32.xlu0 %v1356
        %v1420 = vpop.xlane.xlu0 %1419
        %1421 = vadd.xlane.f32.xlu0 %v1358
        %v1422 = vpop.xlane.xlu0 %1421
        %1423 = vadd.xlane.f32.xlu0 %v1360
        %v1424 = vpop.xlane.xlu0 %1423
        %1425 = vadd.xlane.f32.xlu0 %v1362
        %v1426 = vpop.xlane.xlu0 %1425
        %1427 = vadd.xlane.f32.xlu0 %v1364
        %v1428 = vpop.xlane.xlu0 %1427
        %1429 = vadd.xlane.f32.xlu0 %v1366
        %v1430 = vpop.xlane.xlu0 %1429
        %1431 = vadd.xlane.f32.xlu0 %v1368
        %v1432 = vpop.xlane.xlu0 %1431
        %1433 = vadd.xlane.f32.xlu0 %v1370
        %v1434 = vpop.xlane.xlu0 %1433
        %1435 = vadd.xlane.f32.xlu0 %v1372
        %v1436 = vpop.xlane.xlu0 %1435
        %v1437 = vrcp.pop %v1374
        %v1438 = vrcp.pop %v1376
        %v1439 = vrcp.pop %v1378
        %v1440 = vrcp.pop %v1380
        %v1441 = vrcp.pop %v1382
        %v1442 = vrcp.pop %v1384
        %v1443 = vrcp.pop %v1386
        %v1444 = vrcp.pop %v1388
        %v1445 = vrcp.pop %v1390
        %v1446 = vrcp.pop %v1392
        %v1447 = vrcp.pop %v1394
        %v1448 = vrcp.pop %v1396
        %v1449 = vrcp.pop %v1398
        %v1450 = vrcp.pop %v1400
        %v1451 = vrcp.pop %v1402
        %v1452 = vrcp.pop %v1404
        %v1453 = vrcp.pop %v1406
        %v1454 = vrcp.pop %v1408
        %v1455 = vrcp.pop %v1410
        %v1456 = vrcp.pop %v1412
        %v1457 = vrcp.pop %v1414
        %v1458 = vrcp.pop %v1416
        %v1459 = vrcp.pop %v1418
        %v1460 = vrcp.pop %v1420
        %v1461 = vrcp.pop %v1422
        %v1462 = vrcp.pop %v1424
        %v1463 = vrcp.pop %v1426
        %v1464 = vrcp.pop %v1428
        %v1465 = vrcp.pop %v1430
        %v1466 = vrcp.pop %v1432
        %v1467 = vrcp.pop %v1434
        %v1468 = vrcp.pop %v1436
        %v1469 = vmul.f32 %v1310, %v1437
        %v1470 = vmul.f32 %v1312, %v1438
        %v1471 = vmul.f32 %v1314, %v1439
        %v1472 = vmul.f32 %v1316, %v1440
        %v1473 = vmul.f32 %v1318, %v1441
        %v1474 = vmul.f32 %v1320, %v1442
        %v1475 = vmul.f32 %v1322, %v1443
        %v1476 = vmul.f32 %v1324, %v1444
        %v1477 = vmul.f32 %v1326, %v1445
        %v1478 = vmul.f32 %v1328, %v1446
        %v1479 = vmul.f32 %v1330, %v1447
        %v1480 = vmul.f32 %v1332, %v1448
        %v1481 = vmul.f32 %v1334, %v1449
        %v1482 = vmul.f32 %v1336, %v1450
        %v1483 = vmul.f32 %v1338, %v1451
        %v1484 = vmul.f32 %v1340, %v1452
        %v1485 = vmul.f32 %v1342, %v1453
        %v1486 = vmul.f32 %v1344, %v1454
        %v1487 = vmul.f32 %v1346, %v1455
        %v1488 = vmul.f32 %v1348, %v1456
        %v1489 = vmul.f32 %v1350, %v1457
        %v1490 = vmul.f32 %v1352, %v1458
        %v1491 = vmul.f32 %v1354, %v1459
        %v1492 = vmul.f32 %v1356, %v1460
        %v1493 = vmul.f32 %v1358, %v1461
        %v1494 = vmul.f32 %v1360, %v1462
        %v1495 = vmul.f32 %v1362, %v1463
        %v1496 = vmul.f32 %v1364, %v1464
        %v1497 = vmul.f32 %v1366, %v1465
        %v1498 = vmul.f32 %v1368, %v1466
        %v1499 = vmul.f32 %v1370, %v1467
        %v1500 = vmul.f32 %v1372, %v1468
        %1501 = vmatpush.xpose.msra.mxu0 %v1484
        %1502 = vmatpush.xpose.msra.mxu0 %v1483
        %1503 = vmatpush.xpose.msra.mxu0 %v1482
        %1504 = vmatpush.xpose.msra.mxu0 %v1481
        %1505 = vmatpush.xpose.msra.mxu0 %v1480
        %1506 = vmatpush.xpose.msra.mxu0 %v1479
        %1507 = vmatpush.xpose.msra.mxu0 %v1478
        %1508 = vmatpush.xpose.msra.mxu0 %v1477
        %1509 = vmatpush.xpose.msra.mxu0 %v1476
        %1510 = vmatpush.xpose.msra.mxu0 %v1475
        %1511 = vmatpush.xpose.msra.mxu0 %v1474
        %1512 = vmatpush.xpose.msra.mxu0 %v1473
        %1513 = vmatpush.xpose.msra.mxu0 %v1472
        %1514 = vmatpush.xpose.msra.mxu0 %v1471
        %1515 = vmatpush.xpose.msra.mxu0 %v1470
        %1516 = vmatpush.xpose.msra.mxu0 %v1469
        %1517 = vmatmul.f32.gmra.mxu0 %v747
        %v1518 = vpop.f32.mrf.mxu0
        %v1519 = vadd.f32 0.0, %v1518
        %1520 = vdwg.mxu0
        %1521 = vmatpush.xpose.msra.mxu0 %v1500
        %1522 = vmatpush.xpose.msra.mxu0 %v1499
        %1523 = vmatpush.xpose.msra.mxu0 %v1498
        %1524 = vmatpush.xpose.msra.mxu0 %v1497
        %1525 = vmatpush.xpose.msra.mxu0 %v1496
        %1526 = vmatpush.xpose.msra.mxu0 %v1495
        %1527 = vmatpush.xpose.msra.mxu0 %v1494
        %1528 = vmatpush.xpose.msra.mxu0 %v1493
        %1529 = vmatpush.xpose.msra.mxu0 %v1492
        %1530 = vmatpush.xpose.msra.mxu0 %v1491
        %1531 = vmatpush.xpose.msra.mxu0 %v1490
        %1532 = vmatpush.xpose.msra.mxu0 %v1489
        %1533 = vmatpush.xpose.msra.mxu0 %v1488
        %1534 = vmatpush.xpose.msra.mxu0 %v1487
        %1535 = vmatpush.xpose.msra.mxu0 %v1486
        %1536 = vmatpush.xpose.msra.mxu0 %v1485
        %1537 = vmatmul.f32.gmra.mxu0 %v747
        %v1538 = vpop.f32.mrf.mxu0
        %v1539 = vadd.f32 0.0, %v1538
        %1540 = vdwg.mxu0
        %v1541 = vperm.slane %v921, 0
        %v1542 = vperm.slane %v936, 0
        %v1543 = vmul.f32 %v1519, %v1541
        %v1544 = vmul.f32 %v1539, %v1542
        %1545 = vst [vmem:[%s496] sm:$0xff] %v1543
        %1546 = vst [vmem:[%s496 + $0x8] sm:$0xff] %v1544
        %1547 = vxpose.xlu0.b32.start [1/16] %v805, 128
        %1548 = vxpose.xlu0.b32.cont [2/16] 0.0, 128
        %1549 = vxpose.xlu0.b32.cont [3/16] 0.0, 128
        %1550 = vxpose.xlu0.b32.cont [4/16] 0.0, 128
        %1551 = vxpose.xlu0.b32.cont [5/16] 0.0, 128
        %1552 = vxpose.xlu0.b32.cont [6/16] 0.0, 128
        %1553 = vxpose.xlu0.b32.cont [7/16] 0.0, 128
        %1554 = vxpose.xlu0.b32.cont [8/16] 0.0, 128
        %1555 = vxpose.xlu0.b32.cont [9/16] 0.0, 128
        %1556 = vxpose.xlu0.b32.cont [10/16] 0.0, 128
        %1557 = vxpose.xlu0.b32.cont [11/16] 0.0, 128
        %1558 = vxpose.xlu0.b32.cont [12/16] 0.0, 128
        %1559 = vxpose.xlu0.b32.cont [13/16] 0.0, 128
        %1560 = vxpose.xlu0.b32.cont [14/16] 0.0, 128
        %1561 = vxpose.xlu0.b32.cont [15/16] 0.0, 128
        %1562 = vxpose.xlu0.b32.end [16/16] 0.0, 128
        %v1563 = vpop.trf.xlu0
        %v1564 = vpop.trf.xlu0
        %v1565 = vpop.trf.xlu0
        %v1566 = vpop.trf.xlu0
        %v1567 = vpop.trf.xlu0
        %v1568 = vpop.trf.xlu0
        %v1569 = vpop.trf.xlu0
        %v1570 = vpop.trf.xlu0
        %v1571 = vpop.trf.xlu0
        %v1572 = vpop.trf.xlu0
        %v1573 = vpop.trf.xlu0
        %v1574 = vpop.trf.xlu0
        %v1575 = vpop.trf.xlu0
        %v1576 = vpop.trf.xlu0
        %v1577 = vpop.trf.xlu0
        %v1578 = vpop.trf.xlu0
        %v1580 = vsel %vm847, %v1563, 0
        %1582 = vmatpush.msra.mxu0 0.0
        %1583 = vmatpush.msra.mxu0 0.0
        %1584 = vmatpush.msra.mxu0 0.0
        %1585 = vmatpush.msra.mxu0 0.0
        %1586 = vmatpush.msra.mxu0 0.0
        %1587 = vmatpush.msra.mxu0 0.0
        %1588 = vmatpush.msra.mxu0 0.0
        %1589 = vmatpush.msra.mxu0 0.0
        %1590 = vmatpush.msra.mxu0 0.0
        %1591 = vmatpush.msra.mxu0 0.0
        %1592 = vmatpush.msra.mxu0 0.0
        %1593 = vmatpush.msra.mxu0 0.0
        %1594 = vmatpush.msra.mxu0 0.0
        %1595 = vmatpush.msra.mxu0 0.0
        %1596 = vmatpush.msra.mxu0 0.0
        %1597 = vmatpush.msra.mxu0 %v582
        %1598 = vmatmul.f32.gmra.mxu0 %v1580
        %v1599 = vpop.f32.mrf.mxu0
        %v1600 = vadd.f32 0.0, %v1599
        %1601 = vdwg.mxu0
        %1602 = vmatpush.msra.mxu0 0.0
        %1603 = vmatpush.msra.mxu0 0.0
        %1604 = vmatpush.msra.mxu0 0.0
        %1605 = vmatpush.msra.mxu0 0.0
        %1606 = vmatpush.msra.mxu0 0.0
        %1607 = vmatpush.msra.mxu0 0.0
        %1608 = vmatpush.msra.mxu0 0.0
        %1609 = vmatpush.msra.mxu0 0.0
        %1610 = vmatpush.msra.mxu0 0.0
        %1611 = vmatpush.msra.mxu0 0.0
        %1612 = vmatpush.msra.mxu0 0.0
        %1613 = vmatpush.msra.mxu0 0.0
        %1614 = vmatpush.msra.mxu0 0.0
        %1615 = vmatpush.msra.mxu0 0.0
        %1616 = vmatpush.msra.mxu0 0.0
        %1617 = vmatpush.msra.mxu0 %v611
        %1618 = vmatmul.f32.gmra.mxu0 %v1580
        %v1619 = vpop.f32.mrf.mxu0
        %v1620 = vadd.f32 0.0, %v1619
        %1621 = vdwg.mxu0
        %s1622 = sld [smem:[#allocation7 + $0x1]]
        %v1623 = vstv %s1622
        %v1624 = vmul.f32 %v1600, %v1623
        %v1625 = vmul.f32 %v1620, %v1623
        %s1626 = sld [smem:[#allocation9 + $0x1]]
        %v1627 = vstv %s1626
        %v1628 = vadd.f32 %v1624, %v1627
        %v1629 = vadd.f32 %v1625, %v1627
        %v1630 = vxor.u32 %v1628, 2147483648
        %v1631 = vxor.u32 %v1629, 2147483648
        %v1632 = vmul.f32 %v1630, 1.442695
        %v1633 = vpow.pop %v1632
        %v1634 = vmul.f32 %v1631, 1.442695
        %v1635 = vpow.pop %v1634
        %v1636 = vadd.f32 %v1633, 1.0
        %v1637 = vadd.f32 %v1635, 1.0
        %v1638 = vrcp.pop %v1636
        %v1639 = vmul.f32 %v1636, %v1638
        %v1640 = vsub.f32 1.0, %v1639
        %v1641 = vmul.f32 %v1638, %v1640
        %v1642 = vadd.f32 %v1638, %v1641
        %vm1643 = vweird.f32 %v1636
        %vm1644 = vweird.f32 %v1638
        %vm1645 = vmor %vm1643, %vm1644
        %v1646 = vsel %vm1645, %v1638, %v1642
        %v1647 = vand.u32 2147483647, %v1636
        %vm1648 = vcmp.eq.f32.partialorder %v1647, 8.507059e+37
        %v1649 = vand.u32 %v1636, 2147483648
        %v1650 = vor.u32 1.1754944e-38, %v1649
        %v1651 = vsel %vm1648, %v1650, %v1646
        %v1652 = vmul.f32 1.0, %v1651
        %v1653 = vrcp.pop %v1637
        %v1654 = vmul.f32 %v1637, %v1653
        %v1655 = vsub.f32 1.0, %v1654
        %v1656 = vmul.f32 %v1653, %v1655
        %v1657 = vadd.f32 %v1653, %v1656
        %vm1658 = vweird.f32 %v1637
        %vm1659 = vweird.f32 %v1653
        %vm1660 = vmor %vm1658, %vm1659
        %v1661 = vsel %vm1660, %v1653, %v1657
        %v1662 = vand.u32 2147483647, %v1637
        %vm1663 = vcmp.eq.f32.partialorder %v1662, 8.507059e+37
        %v1664 = vand.u32 %v1637, 2147483648
        %v1665 = vor.u32 1.1754944e-38, %v1664
        %v1666 = vsel %vm1663, %v1665, %v1661
        %v1667 = vmul.f32 1.0, %v1666
        %1668 = vxpose.xlu0.b32.start [1/16] %v582, 128
        %1669 = vxpose.xlu0.b32.cont [2/16] 0.0, 128
        %1670 = vxpose.xlu0.b32.cont [3/16] 0.0, 128
        %1671 = vxpose.xlu0.b32.cont [4/16] 0.0, 128
        %1672 = vxpose.xlu0.b32.cont [5/16] 0.0, 128
        %1673 = vxpose.xlu0.b32.cont [6/16] 0.0, 128
        %1674 = vxpose.xlu0.b32.cont [7/16] 0.0, 128
        %1675 = vxpose.xlu0.b32.cont [8/16] 0.0, 128
        %1676 = vxpose.xlu0.b32.cont [9/16] 0.0, 128
        %1677 = vxpose.xlu0.b32.cont [10/16] 0.0, 128
        %1678 = vxpose.xlu0.b32.cont [11/16] 0.0, 128
        %1679 = vxpose.xlu0.b32.cont [12/16] 0.0, 128
        %1680 = vxpose.xlu0.b32.cont [13/16] 0.0, 128
        %1681 = vxpose.xlu0.b32.cont [14/16] 0.0, 128
        %1682 = vxpose.xlu0.b32.cont [15/16] 0.0, 128
        %1683 = vxpose.xlu0.b32.end [16/16] 0.0, 128
        %v1684 = vpop.trf.xlu0
        %v1685 = vpop.trf.xlu0
        %v1686 = vpop.trf.xlu0
        %v1687 = vpop.trf.xlu0
        %v1688 = vpop.trf.xlu0
        %v1689 = vpop.trf.xlu0
        %v1690 = vpop.trf.xlu0
        %v1691 = vpop.trf.xlu0
        %v1692 = vpop.trf.xlu0
        %v1693 = vpop.trf.xlu0
        %v1694 = vpop.trf.xlu0
        %v1695 = vpop.trf.xlu0
        %v1696 = vpop.trf.xlu0
        %v1697 = vpop.trf.xlu0
        %v1698 = vpop.trf.xlu0
        %v1699 = vpop.trf.xlu0
        %1700 = vxpose.xlu0.b32.start [1/16] %v611, 128
        %1701 = vxpose.xlu0.b32.cont [2/16] 0.0, 128
        %1702 = vxpose.xlu0.b32.cont [3/16] 0.0, 128
        %1703 = vxpose.xlu0.b32.cont [4/16] 0.0, 128
        %1704 = vxpose.xlu0.b32.cont [5/16] 0.0, 128
        %1705 = vxpose.xlu0.b32.cont [6/16] 0.0, 128
        %1706 = vxpose.xlu0.b32.cont [7/16] 0.0, 128
        %1707 = vxpose.xlu0.b32.cont [8/16] 0.0, 128
        %1708 = vxpose.xlu0.b32.cont [9/16] 0.0, 128
        %1709 = vxpose.xlu0.b32.cont [10/16] 0.0, 128
        %1710 = vxpose.xlu0.b32.cont [11/16] 0.0, 128
        %1711 = vxpose.xlu0.b32.cont [12/16] 0.0, 128
        %1712 = vxpose.xlu0.b32.cont [13/16] 0.0, 128
        %1713 = vxpose.xlu0.b32.cont [14/16] 0.0, 128
        %1714 = vxpose.xlu0.b32.cont [15/16] 0.0, 128
        %1715 = vxpose.xlu0.b32.end [16/16] 0.0, 128
        %v1716 = vpop.trf.xlu0
        %v1717 = vpop.trf.xlu0
        %v1718 = vpop.trf.xlu0
        %v1719 = vpop.trf.xlu0
        %v1720 = vpop.trf.xlu0
        %v1721 = vpop.trf.xlu0
        %v1722 = vpop.trf.xlu0
        %v1723 = vpop.trf.xlu0
        %v1724 = vpop.trf.xlu0
        %v1725 = vpop.trf.xlu0
        %v1726 = vpop.trf.xlu0
        %v1727 = vpop.trf.xlu0
        %v1728 = vpop.trf.xlu0
        %v1729 = vpop.trf.xlu0
        %v1730 = vpop.trf.xlu0
        %v1731 = vpop.trf.xlu0
        %v1733 = vsel %vm847, %v1684, 0
        %v1736 = vsel %vm847, %v1685, 0
        %v1739 = vsel %vm847, %v1686, 0
        %v1742 = vsel %vm847, %v1687, 0
        %v1745 = vsel %vm847, %v1688, 0
        %v1748 = vsel %vm847, %v1689, 0
        %v1751 = vsel %vm847, %v1690, 0
        %v1754 = vsel %vm847, %v1691, 0
        %v1757 = vsel %vm847, %v1692, 0
        %v1760 = vsel %vm847, %v1693, 0
        %v1763 = vsel %vm847, %v1694, 0
        %v1766 = vsel %vm847, %v1695, 0
        %v1769 = vsel %vm847, %v1696, 0
        %v1772 = vsel %vm847, %v1697, 0
        %v1775 = vsel %vm847, %v1698, 0
        %v1778 = vsel %vm847, %v1699, 0
        %v1781 = vsel %vm847, %v1716, 0
        %v1784 = vsel %vm847, %v1717, 0
        %v1787 = vsel %vm847, %v1718, 0
        %v1790 = vsel %vm847, %v1719, 0
        %v1793 = vsel %vm847, %v1720, 0
        %v1796 = vsel %vm847, %v1721, 0
        %v1799 = vsel %vm847, %v1722, 0
        %v1802 = vsel %vm847, %v1723, 0
        %v1805 = vsel %vm847, %v1724, 0
        %v1808 = vsel %vm847, %v1725, 0
        %v1811 = vsel %vm847, %v1726, 0
        %v1814 = vsel %vm847, %v1727, 0
        %v1817 = vsel %vm847, %v1728, 0
        %v1820 = vsel %vm847, %v1729, 0
        %v1823 = vsel %vm847, %v1730, 0
        %v1826 = vsel %vm847, %v1731, 0
        %1828 = vmatpush.msra.mxu0 0.0
        %1829 = vmatpush.msra.mxu0 0.0
        %1830 = vmatpush.msra.mxu0 0.0
        %1831 = vmatpush.msra.mxu0 0.0
        %1832 = vmatpush.msra.mxu0 0.0
        %1833 = vmatpush.msra.mxu0 0.0
        %1834 = vmatpush.msra.mxu0 0.0
        %1835 = vmatpush.msra.mxu0 0.0
        %1836 = vmatpush.msra.mxu0 0.0
        %1837 = vmatpush.msra.mxu0 0.0
        %1838 = vmatpush.msra.mxu0 0.0
        %1839 = vmatpush.msra.mxu0 0.0
        %1840 = vmatpush.msra.mxu0 0.0
        %1841 = vmatpush.msra.mxu0 0.0
        %1842 = vmatpush.msra.mxu0 0.0
        %1843 = vmatpush.msra.mxu0 %v810
        %1844 = vmatmul.f32.gmra.mxu0 %v1733
        %v1845 = vpop.f32.mrf.mxu0
        %v1846 = vadd.f32 %v938, %v1845
        %1847 = vmatmul.f32.gmra.mxu0 %v1736
        %v1848 = vpop.f32.mrf.mxu0
        %v1849 = vadd.f32 %v938, %v1848
        %1850 = vmatmul.f32.gmra.mxu0 %v1739
        %v1851 = vpop.f32.mrf.mxu0
        %v1852 = vadd.f32 %v938, %v1851
        %1853 = vmatmul.f32.gmra.mxu0 %v1742
        %v1854 = vpop.f32.mrf.mxu0
        %v1855 = vadd.f32 %v938, %v1854
        %1856 = vmatmul.f32.gmra.mxu0 %v1745
        %v1857 = vpop.f32.mrf.mxu0
        %v1858 = vadd.f32 %v938, %v1857
        %1859 = vmatmul.f32.gmra.mxu0 %v1748
        %v1860 = vpop.f32.mrf.mxu0
        %v1861 = vadd.f32 %v938, %v1860
        %1862 = vmatmul.f32.gmra.mxu0 %v1751
        %v1863 = vpop.f32.mrf.mxu0
        %v1864 = vadd.f32 %v938, %v1863
        %1865 = vmatmul.f32.gmra.mxu0 %v1754
        %v1866 = vpop.f32.mrf.mxu0
        %v1867 = vadd.f32 %v938, %v1866
        %1868 = vmatmul.f32.gmra.mxu0 %v1757
        %v1869 = vpop.f32.mrf.mxu0
        %v1870 = vadd.f32 %v938, %v1869
        %1871 = vmatmul.f32.gmra.mxu0 %v1760
        %v1872 = vpop.f32.mrf.mxu0
        %v1873 = vadd.f32 %v938, %v1872
        %1874 = vmatmul.f32.gmra.mxu0 %v1763
        %v1875 = vpop.f32.mrf.mxu0
        %v1876 = vadd.f32 %v938, %v1875
        %1877 = vmatmul.f32.gmra.mxu0 %v1766
        %v1878 = vpop.f32.mrf.mxu0
        %v1879 = vadd.f32 %v938, %v1878
        %1880 = vmatmul.f32.gmra.mxu0 %v1769
        %v1881 = vpop.f32.mrf.mxu0
        %v1882 = vadd.f32 %v938, %v1881
        %1883 = vmatmul.f32.gmra.mxu0 %v1772
        %v1884 = vpop.f32.mrf.mxu0
        %v1885 = vadd.f32 %v938, %v1884
        %1886 = vmatmul.f32.gmra.mxu0 %v1775
        %v1887 = vpop.f32.mrf.mxu0
        %v1888 = vadd.f32 %v938, %v1887
        %1889 = vmatmul.f32.gmra.mxu0 %v1778
        %v1890 = vpop.f32.mrf.mxu0
        %v1891 = vadd.f32 %v938, %v1890
        %1892 = vmatmul.f32.gmra.mxu0 %v1781
        %v1893 = vpop.f32.mrf.mxu0
        %v1894 = vadd.f32 %v938, %v1893
        %1895 = vmatmul.f32.gmra.mxu0 %v1784
        %v1896 = vpop.f32.mrf.mxu0
        %v1897 = vadd.f32 %v938, %v1896
        %1898 = vmatmul.f32.gmra.mxu0 %v1787
        %v1899 = vpop.f32.mrf.mxu0
        %v1900 = vadd.f32 %v938, %v1899
        %1901 = vmatmul.f32.gmra.mxu0 %v1790
        %v1902 = vpop.f32.mrf.mxu0
        %v1903 = vadd.f32 %v938, %v1902
        %1904 = vmatmul.f32.gmra.mxu0 %v1793
        %v1905 = vpop.f32.mrf.mxu0
        %v1906 = vadd.f32 %v938, %v1905
        %1907 = vmatmul.f32.gmra.mxu0 %v1796
        %v1908 = vpop.f32.mrf.mxu0
        %v1909 = vadd.f32 %v938, %v1908
        %1910 = vmatmul.f32.gmra.mxu0 %v1799
        %v1911 = vpop.f32.mrf.mxu0
        %v1912 = vadd.f32 %v938, %v1911
        %1913 = vmatmul.f32.gmra.mxu0 %v1802
        %v1914 = vpop.f32.mrf.mxu0
        %v1915 = vadd.f32 %v938, %v1914
        %1916 = vmatmul.f32.gmra.mxu0 %v1805
        %v1917 = vpop.f32.mrf.mxu0
        %v1918 = vadd.f32 %v938, %v1917
        %1919 = vmatmul.f32.gmra.mxu0 %v1808
        %v1920 = vpop.f32.mrf.mxu0
        %v1921 = vadd.f32 %v938, %v1920
        %1922 = vmatmul.f32.gmra.mxu0 %v1811
        %v1923 = vpop.f32.mrf.mxu0
        %v1924 = vadd.f32 %v938, %v1923
        %1925 = vmatmul.f32.gmra.mxu0 %v1814
        %v1926 = vpop.f32.mrf.mxu0
        %v1927 = vadd.f32 %v938, %v1926
        %1928 = vmatmul.f32.gmra.mxu0 %v1817
        %v1929 = vpop.f32.mrf.mxu0
        %v1930 = vadd.f32 %v938, %v1929
        %1931 = vmatmul.f32.gmra.mxu0 %v1820
        %v1932 = vpop.f32.mrf.mxu0
        %v1933 = vadd.f32 %v938, %v1932
        %1934 = vmatmul.f32.gmra.mxu0 %v1823
        %v1935 = vpop.f32.mrf.mxu0
        %v1936 = vadd.f32 %v938, %v1935
        %1937 = vmatmul.f32.gmra.mxu0 %v1826
        %v1938 = vpop.f32.mrf.mxu0
        %v1939 = vadd.f32 %v938, %v1938
        %1940 = vdwg.mxu0
        %1941 = vmax.xlane.f32.xlu0 %v1846
        %v1942 = vpop.xlane.xlu0 %1941
        %1943 = vmax.xlane.f32.xlu0 %v1849
        %v1944 = vpop.xlane.xlu0 %1943
        %1945 = vmax.xlane.f32.xlu0 %v1852
        %v1946 = vpop.xlane.xlu0 %1945
        %1947 = vmax.xlane.f32.xlu0 %v1855
        %v1948 = vpop.xlane.xlu0 %1947
        %1949 = vmax.xlane.f32.xlu0 %v1858
        %v1950 = vpop.xlane.xlu0 %1949
        %1951 = vmax.xlane.f32.xlu0 %v1861
        %v1952 = vpop.xlane.xlu0 %1951
        %1953 = vmax.xlane.f32.xlu0 %v1864
        %v1954 = vpop.xlane.xlu0 %1953
        %1955 = vmax.xlane.f32.xlu0 %v1867
        %v1956 = vpop.xlane.xlu0 %1955
        %1957 = vmax.xlane.f32.xlu0 %v1870
        %v1958 = vpop.xlane.xlu0 %1957
        %1959 = vmax.xlane.f32.xlu0 %v1873
        %v1960 = vpop.xlane.xlu0 %1959
        %1961 = vmax.xlane.f32.xlu0 %v1876
        %v1962 = vpop.xlane.xlu0 %1961
        %1963 = vmax.xlane.f32.xlu0 %v1879
        %v1964 = vpop.xlane.xlu0 %1963
        %1965 = vmax.xlane.f32.xlu0 %v1882
        %v1966 = vpop.xlane.xlu0 %1965
        %1967 = vmax.xlane.f32.xlu0 %v1885
        %v1968 = vpop.xlane.xlu0 %1967
        %1969 = vmax.xlane.f32.xlu0 %v1888
        %v1970 = vpop.xlane.xlu0 %1969
        %1971 = vmax.xlane.f32.xlu0 %v1891
        %v1972 = vpop.xlane.xlu0 %1971
        %1973 = vmax.xlane.f32.xlu0 %v1894
        %v1974 = vpop.xlane.xlu0 %1973
        %1975 = vmax.xlane.f32.xlu0 %v1897
        %v1976 = vpop.xlane.xlu0 %1975
        %1977 = vmax.xlane.f32.xlu0 %v1900
        %v1978 = vpop.xlane.xlu0 %1977
        %1979 = vmax.xlane.f32.xlu0 %v1903
        %v1980 = vpop.xlane.xlu0 %1979
        %1981 = vmax.xlane.f32.xlu0 %v1906
        %v1982 = vpop.xlane.xlu0 %1981
        %1983 = vmax.xlane.f32.xlu0 %v1909
        %v1984 = vpop.xlane.xlu0 %1983
        %1985 = vmax.xlane.f32.xlu0 %v1912
        %v1986 = vpop.xlane.xlu0 %1985
        %1987 = vmax.xlane.f32.xlu0 %v1915
        %v1988 = vpop.xlane.xlu0 %1987
        %1989 = vmax.xlane.f32.xlu0 %v1918
        %v1990 = vpop.xlane.xlu0 %1989
        %1991 = vmax.xlane.f32.xlu0 %v1921
        %v1992 = vpop.xlane.xlu0 %1991
        %1993 = vmax.xlane.f32.xlu0 %v1924
        %v1994 = vpop.xlane.xlu0 %1993
        %1995 = vmax.xlane.f32.xlu0 %v1927
        %v1996 = vpop.xlane.xlu0 %1995
        %1997 = vmax.xlane.f32.xlu0 %v1930
        %v1998 = vpop.xlane.xlu0 %1997
        %1999 = vmax.xlane.f32.xlu0 %v1933
        %v2000 = vpop.xlane.xlu0 %1999
        %2001 = vmax.xlane.f32.xlu0 %v1936
        %v2002 = vpop.xlane.xlu0 %2001
        %2003 = vmax.xlane.f32.xlu0 %v1939
        %v2004 = vpop.xlane.xlu0 %2003
        %v2005 = vsub.f32 %v1846, %v1942
        %v2006 = vsub.f32 %v1849, %v1944
        %v2007 = vsub.f32 %v1852, %v1946
        %v2008 = vsub.f32 %v1855, %v1948
        %v2009 = vsub.f32 %v1858, %v1950
        %v2010 = vsub.f32 %v1861, %v1952
        %v2011 = vsub.f32 %v1864, %v1954
        %v2012 = vsub.f32 %v1867, %v1956
        %v2013 = vsub.f32 %v1870, %v1958
        %v2014 = vsub.f32 %v1873, %v1960
        %v2015 = vsub.f32 %v1876, %v1962
        %v2016 = vsub.f32 %v1879, %v1964
        %v2017 = vsub.f32 %v1882, %v1966
        %v2018 = vsub.f32 %v1885, %v1968
        %v2019 = vsub.f32 %v1888, %v1970
        %v2020 = vsub.f32 %v1891, %v1972
        %v2021 = vsub.f32 %v1894, %v1974
        %v2022 = vsub.f32 %v1897, %v1976
        %v2023 = vsub.f32 %v1900, %v1978
        %v2024 = vsub.f32 %v1903, %v1980
        %v2025 = vsub.f32 %v1906, %v1982
        %v2026 = vsub.f32 %v1909, %v1984
        %v2027 = vsub.f32 %v1912, %v1986
        %v2028 = vsub.f32 %v1915, %v1988
        %v2029 = vsub.f32 %v1918, %v1990
        %v2030 = vsub.f32 %v1921, %v1992
        %v2031 = vsub.f32 %v1924, %v1994
        %v2032 = vsub.f32 %v1927, %v1996
        %v2033 = vsub.f32 %v1930, %v1998
        %v2034 = vsub.f32 %v1933, %v2000
        %v2035 = vsub.f32 %v1936, %v2002
        %v2036 = vsub.f32 %v1939, %v2004
        %v2037 = vmul.f32 %v2005, 1.442695
        %v2038 = vpow.pop %v2037
        %v2039 = vmul.f32 %v2006, 1.442695
        %v2040 = vpow.pop %v2039
        %v2041 = vmul.f32 %v2007, 1.442695
        %v2042 = vpow.pop %v2041
        %v2043 = vmul.f32 %v2008, 1.442695
        %v2044 = vpow.pop %v2043
        %v2045 = vmul.f32 %v2009, 1.442695
        %v2046 = vpow.pop %v2045
        %v2047 = vmul.f32 %v2010, 1.442695
        %v2048 = vpow.pop %v2047
        %v2049 = vmul.f32 %v2011, 1.442695
        %v2050 = vpow.pop %v2049
        %v2051 = vmul.f32 %v2012, 1.442695
        %v2052 = vpow.pop %v2051
        %v2053 = vmul.f32 %v2013, 1.442695
        %v2054 = vpow.pop %v2053
        %v2055 = vmul.f32 %v2014, 1.442695
        %v2056 = vpow.pop %v2055
        %v2057 = vmul.f32 %v2015, 1.442695
        %v2058 = vpow.pop %v2057
        %v2059 = vmul.f32 %v2016, 1.442695
        %v2060 = vpow.pop %v2059
        %v2061 = vmul.f32 %v2017, 1.442695
        %v2062 = vpow.pop %v2061
        %v2063 = vmul.f32 %v2018, 1.442695
        %v2064 = vpow.pop %v2063
        %v2065 = vmul.f32 %v2019, 1.442695
        %v2066 = vpow.pop %v2065
        %v2067 = vmul.f32 %v2020, 1.442695
        %v2068 = vpow.pop %v2067
        %v2069 = vmul.f32 %v2021, 1.442695
        %v2070 = vpow.pop %v2069
        %v2071 = vmul.f32 %v2022, 1.442695
        %v2072 = vpow.pop %v2071
        %v2073 = vmul.f32 %v2023, 1.442695
        %v2074 = vpow.pop %v2073
        %v2075 = vmul.f32 %v2024, 1.442695
        %v2076 = vpow.pop %v2075
        %v2077 = vmul.f32 %v2025, 1.442695
        %v2078 = vpow.pop %v2077
        %v2079 = vmul.f32 %v2026, 1.442695
        %v2080 = vpow.pop %v2079
        %v2081 = vmul.f32 %v2027, 1.442695
        %v2082 = vpow.pop %v2081
        %v2083 = vmul.f32 %v2028, 1.442695
        %v2084 = vpow.pop %v2083
        %v2085 = vmul.f32 %v2029, 1.442695
        %v2086 = vpow.pop %v2085
        %v2087 = vmul.f32 %v2030, 1.442695
        %v2088 = vpow.pop %v2087
        %v2089 = vmul.f32 %v2031, 1.442695
        %v2090 = vpow.pop %v2089
        %v2091 = vmul.f32 %v2032, 1.442695
        %v2092 = vpow.pop %v2091
        %v2093 = vmul.f32 %v2033, 1.442695
        %v2094 = vpow.pop %v2093
        %v2095 = vmul.f32 %v2034, 1.442695
        %v2096 = vpow.pop %v2095
        %v2097 = vmul.f32 %v2035, 1.442695
        %v2098 = vpow.pop %v2097
        %v2099 = vmul.f32 %v2036, 1.442695
        %v2100 = vpow.pop %v2099
        %2101 = vadd.xlane.f32.xlu0 %v2038
        %v2102 = vpop.xlane.xlu0 %2101
        %2103 = vadd.xlane.f32.xlu0 %v2040
        %v2104 = vpop.xlane.xlu0 %2103
        %2105 = vadd.xlane.f32.xlu0 %v2042
        %v2106 = vpop.xlane.xlu0 %2105
        %2107 = vadd.xlane.f32.xlu0 %v2044
        %v2108 = vpop.xlane.xlu0 %2107
        %2109 = vadd.xlane.f32.xlu0 %v2046
        %v2110 = vpop.xlane.xlu0 %2109
        %2111 = vadd.xlane.f32.xlu0 %v2048
        %v2112 = vpop.xlane.xlu0 %2111
        %2113 = vadd.xlane.f32.xlu0 %v2050
        %v2114 = vpop.xlane.xlu0 %2113
        %2115 = vadd.xlane.f32.xlu0 %v2052
        %v2116 = vpop.xlane.xlu0 %2115
        %2117 = vadd.xlane.f32.xlu0 %v2054
        %v2118 = vpop.xlane.xlu0 %2117
        %2119 = vadd.xlane.f32.xlu0 %v2056
        %v2120 = vpop.xlane.xlu0 %2119
        %2121 = vadd.xlane.f32.xlu0 %v2058
        %v2122 = vpop.xlane.xlu0 %2121
        %2123 = vadd.xlane.f32.xlu0 %v2060
        %v2124 = vpop.xlane.xlu0 %2123
        %2125 = vadd.xlane.f32.xlu0 %v2062
        %v2126 = vpop.xlane.xlu0 %2125
        %2127 = vadd.xlane.f32.xlu0 %v2064
        %v2128 = vpop.xlane.xlu0 %2127
        %2129 = vadd.xlane.f32.xlu0 %v2066
        %v2130 = vpop.xlane.xlu0 %2129
        %2131 = vadd.xlane.f32.xlu0 %v2068
        %v2132 = vpop.xlane.xlu0 %2131
        %2133 = vadd.xlane.f32.xlu0 %v2070
        %v2134 = vpop.xlane.xlu0 %2133
        %2135 = vadd.xlane.f32.xlu0 %v2072
        %v2136 = vpop.xlane.xlu0 %2135
        %2137 = vadd.xlane.f32.xlu0 %v2074
        %v2138 = vpop.xlane.xlu0 %2137
        %2139 = vadd.xlane.f32.xlu0 %v2076
        %v2140 = vpop.xlane.xlu0 %2139
        %2141 = vadd.xlane.f32.xlu0 %v2078
        %v2142 = vpop.xlane.xlu0 %2141
        %2143 = vadd.xlane.f32.xlu0 %v2080
        %v2144 = vpop.xlane.xlu0 %2143
        %2145 = vadd.xlane.f32.xlu0 %v2082
        %v2146 = vpop.xlane.xlu0 %2145
        %2147 = vadd.xlane.f32.xlu0 %v2084
        %v2148 = vpop.xlane.xlu0 %2147
        %2149 = vadd.xlane.f32.xlu0 %v2086
        %v2150 = vpop.xlane.xlu0 %2149
        %2151 = vadd.xlane.f32.xlu0 %v2088
        %v2152 = vpop.xlane.xlu0 %2151
        %2153 = vadd.xlane.f32.xlu0 %v2090
        %v2154 = vpop.xlane.xlu0 %2153
        %2155 = vadd.xlane.f32.xlu0 %v2092
        %v2156 = vpop.xlane.xlu0 %2155
        %2157 = vadd.xlane.f32.xlu0 %v2094
        %v2158 = vpop.xlane.xlu0 %2157
        %2159 = vadd.xlane.f32.xlu0 %v2096
        %v2160 = vpop.xlane.xlu0 %2159
        %2161 = vadd.xlane.f32.xlu0 %v2098
        %v2162 = vpop.xlane.xlu0 %2161
        %2163 = vadd.xlane.f32.xlu0 %v2100
        %v2164 = vpop.xlane.xlu0 %2163
        %v2165 = vrcp.pop %v2102
        %v2166 = vrcp.pop %v2104
        %v2167 = vrcp.pop %v2106
        %v2168 = vrcp.pop %v2108
        %v2169 = vrcp.pop %v2110
        %v2170 = vrcp.pop %v2112
        %v2171 = vrcp.pop %v2114
        %v2172 = vrcp.pop %v2116
        %v2173 = vrcp.pop %v2118
        %v2174 = vrcp.pop %v2120
        %v2175 = vrcp.pop %v2122
        %v2176 = vrcp.pop %v2124
        %v2177 = vrcp.pop %v2126
        %v2178 = vrcp.pop %v2128
        %v2179 = vrcp.pop %v2130
        %v2180 = vrcp.pop %v2132
        %v2181 = vrcp.pop %v2134
        %v2182 = vrcp.pop %v2136
        %v2183 = vrcp.pop %v2138
        %v2184 = vrcp.pop %v2140
        %v2185 = vrcp.pop %v2142
        %v2186 = vrcp.pop %v2144
        %v2187 = vrcp.pop %v2146
        %v2188 = vrcp.pop %v2148
        %v2189 = vrcp.pop %v2150
        %v2190 = vrcp.pop %v2152
        %v2191 = vrcp.pop %v2154
        %v2192 = vrcp.pop %v2156
        %v2193 = vrcp.pop %v2158
        %v2194 = vrcp.pop %v2160
        %v2195 = vrcp.pop %v2162
        %v2196 = vrcp.pop %v2164
        %v2197 = vmul.f32 %v2038, %v2165
        %v2198 = vmul.f32 %v2040, %v2166
        %v2199 = vmul.f32 %v2042, %v2167
        %v2200 = vmul.f32 %v2044, %v2168
        %v2201 = vmul.f32 %v2046, %v2169
        %v2202 = vmul.f32 %v2048, %v2170
        %v2203 = vmul.f32 %v2050, %v2171
        %v2204 = vmul.f32 %v2052, %v2172
        %v2205 = vmul.f32 %v2054, %v2173
        %v2206 = vmul.f32 %v2056, %v2174
        %v2207 = vmul.f32 %v2058, %v2175
        %v2208 = vmul.f32 %v2060, %v2176
        %v2209 = vmul.f32 %v2062, %v2177
        %v2210 = vmul.f32 %v2064, %v2178
        %v2211 = vmul.f32 %v2066, %v2179
        %v2212 = vmul.f32 %v2068, %v2180
        %v2213 = vmul.f32 %v2070, %v2181
        %v2214 = vmul.f32 %v2072, %v2182
        %v2215 = vmul.f32 %v2074, %v2183
        %v2216 = vmul.f32 %v2076, %v2184
        %v2217 = vmul.f32 %v2078, %v2185
        %v2218 = vmul.f32 %v2080, %v2186
        %v2219 = vmul.f32 %v2082, %v2187
        %v2220 = vmul.f32 %v2084, %v2188
        %v2221 = vmul.f32 %v2086, %v2189
        %v2222 = vmul.f32 %v2088, %v2190
        %v2223 = vmul.f32 %v2090, %v2191
        %v2224 = vmul.f32 %v2092, %v2192
        %v2225 = vmul.f32 %v2094, %v2193
        %v2226 = vmul.f32 %v2096, %v2194
        %v2227 = vmul.f32 %v2098, %v2195
        %v2228 = vmul.f32 %v2100, %v2196
        %2229 = vmatpush.xpose.msra.mxu0 %v2212
        %2230 = vmatpush.xpose.msra.mxu0 %v2211
        %2231 = vmatpush.xpose.msra.mxu0 %v2210
        %2232 = vmatpush.xpose.msra.mxu0 %v2209
        %2233 = vmatpush.xpose.msra.mxu0 %v2208
        %2234 = vmatpush.xpose.msra.mxu0 %v2207
        %2235 = vmatpush.xpose.msra.mxu0 %v2206
        %2236 = vmatpush.xpose.msra.mxu0 %v2205
        %2237 = vmatpush.xpose.msra.mxu0 %v2204
        %2238 = vmatpush.xpose.msra.mxu0 %v2203
        %2239 = vmatpush.xpose.msra.mxu0 %v2202
        %2240 = vmatpush.xpose.msra.mxu0 %v2201
        %2241 = vmatpush.xpose.msra.mxu0 %v2200
        %2242 = vmatpush.xpose.msra.mxu0 %v2199
        %2243 = vmatpush.xpose.msra.mxu0 %v2198
        %2244 = vmatpush.xpose.msra.mxu0 %v2197
        %2245 = vmatmul.f32.gmra.mxu0 %v750
        %v2246 = vpop.f32.mrf.mxu0
        %v2247 = vadd.f32 0.0, %v2246
        %2248 = vdwg.mxu0
        %2249 = vmatpush.xpose.msra.mxu0 %v2228
        %2250 = vmatpush.xpose.msra.mxu0 %v2227
        %2251 = vmatpush.xpose.msra.mxu0 %v2226
        %2252 = vmatpush.xpose.msra.mxu0 %v2225
        %2253 = vmatpush.xpose.msra.mxu0 %v2224
        %2254 = vmatpush.xpose.msra.mxu0 %v2223
        %2255 = vmatpush.xpose.msra.mxu0 %v2222
        %2256 = vmatpush.xpose.msra.mxu0 %v2221
        %2257 = vmatpush.xpose.msra.mxu0 %v2220
        %2258 = vmatpush.xpose.msra.mxu0 %v2219
        %2259 = vmatpush.xpose.msra.mxu0 %v2218
        %2260 = vmatpush.xpose.msra.mxu0 %v2217
        %2261 = vmatpush.xpose.msra.mxu0 %v2216
        %2262 = vmatpush.xpose.msra.mxu0 %v2215
        %2263 = vmatpush.xpose.msra.mxu0 %v2214
        %2264 = vmatpush.xpose.msra.mxu0 %v2213
        %2265 = vmatmul.f32.gmra.mxu0 %v750
        %v2266 = vpop.f32.mrf.mxu0
        %v2267 = vadd.f32 0.0, %v2266
        %2268 = vdwg.mxu0
        %v2269 = vperm.slane %v1652, 0
        %v2270 = vperm.slane %v1667, 0
        %v2271 = vmul.f32 %v2247, %v2269
        %v2272 = vmul.f32 %v2267, %v2270
        %2273 = vst [vmem:[%s496 + $0x10] sm:$0xff] %v2271
        %2274 = vst [vmem:[%s496 + $0x18] sm:$0xff] %v2272
        %2275 = vxpose.xlu0.b32.start [1/16] %v806, 128
        %2276 = vxpose.xlu0.b32.cont [2/16] 0.0, 128
        %2277 = vxpose.xlu0.b32.cont [3/16] 0.0, 128
        %2278 = vxpose.xlu0.b32.cont [4/16] 0.0, 128
        %2279 = vxpose.xlu0.b32.cont [5/16] 0.0, 128
        %2280 = vxpose.xlu0.b32.cont [6/16] 0.0, 128
        %2281 = vxpose.xlu0.b32.cont [7/16] 0.0, 128
        %2282 = vxpose.xlu0.b32.cont [8/16] 0.0, 128
        %2283 = vxpose.xlu0.b32.cont [9/16] 0.0, 128
        %2284 = vxpose.xlu0.b32.cont [10/16] 0.0, 128
        %2285 = vxpose.xlu0.b32.cont [11/16] 0.0, 128
        %2286 = vxpose.xlu0.b32.cont [12/16] 0.0, 128
        %2287 = vxpose.xlu0.b32.cont [13/16] 0.0, 128
        %2288 = vxpose.xlu0.b32.cont [14/16] 0.0, 128
        %2289 = vxpose.xlu0.b32.cont [15/16] 0.0, 128
        %2290 = vxpose.xlu0.b32.end [16/16] 0.0, 128
        %v2291 = vpop.trf.xlu0
        %v2292 = vpop.trf.xlu0
        %v2293 = vpop.trf.xlu0
        %v2294 = vpop.trf.xlu0
        %v2295 = vpop.trf.xlu0
        %v2296 = vpop.trf.xlu0
        %v2297 = vpop.trf.xlu0
        %v2298 = vpop.trf.xlu0
        %v2299 = vpop.trf.xlu0
        %v2300 = vpop.trf.xlu0
        %v2301 = vpop.trf.xlu0
        %v2302 = vpop.trf.xlu0
        %v2303 = vpop.trf.xlu0
        %v2304 = vpop.trf.xlu0
        %v2305 = vpop.trf.xlu0
        %v2306 = vpop.trf.xlu0
        %v2308 = vsel %vm847, %v2291, 0
        %2310 = vmatpush.msra.mxu0 0.0
        %2311 = vmatpush.msra.mxu0 0.0
        %2312 = vmatpush.msra.mxu0 0.0
        %2313 = vmatpush.msra.mxu0 0.0
        %2314 = vmatpush.msra.mxu0 0.0
        %2315 = vmatpush.msra.mxu0 0.0
        %2316 = vmatpush.msra.mxu0 0.0
        %2317 = vmatpush.msra.mxu0 0.0
        %2318 = vmatpush.msra.mxu0 0.0
        %2319 = vmatpush.msra.mxu0 0.0
        %2320 = vmatpush.msra.mxu0 0.0
        %2321 = vmatpush.msra.mxu0 0.0
        %2322 = vmatpush.msra.mxu0 0.0
        %2323 = vmatpush.msra.mxu0 0.0
        %2324 = vmatpush.msra.mxu0 0.0
        %2325 = vmatpush.msra.mxu0 %v585
        %2326 = vmatmul.f32.gmra.mxu0 %v2308
        %v2327 = vpop.f32.mrf.mxu0
        %v2328 = vadd.f32 0.0, %v2327
        %2329 = vdwg.mxu0
        %2330 = vmatpush.msra.mxu0 0.0
        %2331 = vmatpush.msra.mxu0 0.0
        %2332 = vmatpush.msra.mxu0 0.0
        %2333 = vmatpush.msra.mxu0 0.0
        %2334 = vmatpush.msra.mxu0 0.0
        %2335 = vmatpush.msra.mxu0 0.0
        %2336 = vmatpush.msra.mxu0 0.0
        %2337 = vmatpush.msra.mxu0 0.0
        %2338 = vmatpush.msra.mxu0 0.0
        %2339 = vmatpush.msra.mxu0 0.0
        %2340 = vmatpush.msra.mxu0 0.0
        %2341 = vmatpush.msra.mxu0 0.0
        %2342 = vmatpush.msra.mxu0 0.0
        %2343 = vmatpush.msra.mxu0 0.0
        %2344 = vmatpush.msra.mxu0 0.0
        %2345 = vmatpush.msra.mxu0 %v614
        %2346 = vmatmul.f32.gmra.mxu0 %v2308
        %v2347 = vpop.f32.mrf.mxu0
        %v2348 = vadd.f32 0.0, %v2347
        %2349 = vdwg.mxu0
        %s2350 = sld [smem:[#allocation7 + $0x2]]
        %v2351 = vstv %s2350
        %v2352 = vmul.f32 %v2328, %v2351
        %v2353 = vmul.f32 %v2348, %v2351
        %s2354 = sld [smem:[#allocation9 + $0x2]]
        %v2355 = vstv %s2354
        %v2356 = vadd.f32 %v2352, %v2355
        %v2357 = vadd.f32 %v2353, %v2355
        %v2358 = vxor.u32 %v2356, 2147483648
        %v2359 = vxor.u32 %v2357, 2147483648
        %v2360 = vmul.f32 %v2358, 1.442695
        %v2361 = vpow.pop %v2360
        %v2362 = vmul.f32 %v2359, 1.442695
        %v2363 = vpow.pop %v2362
        %v2364 = vadd.f32 %v2361, 1.0
        %v2365 = vadd.f32 %v2363, 1.0
        %v2366 = vrcp.pop %v2364
        %v2367 = vmul.f32 %v2364, %v2366
        %v2368 = vsub.f32 1.0, %v2367
        %v2369 = vmul.f32 %v2366, %v2368
        %v2370 = vadd.f32 %v2366, %v2369
        %vm2371 = vweird.f32 %v2364
        %vm2372 = vweird.f32 %v2366
        %vm2373 = vmor %vm2371, %vm2372
        %v2374 = vsel %vm2373, %v2366, %v2370
        %v2375 = vand.u32 2147483647, %v2364
        %vm2376 = vcmp.eq.f32.partialorder %v2375, 8.507059e+37
        %v2377 = vand.u32 %v2364, 2147483648
        %v2378 = vor.u32 1.1754944e-38, %v2377
        %v2379 = vsel %vm2376, %v2378, %v2374
        %v2380 = vmul.f32 1.0, %v2379
        %v2381 = vrcp.pop %v2365
        %v2382 = vmul.f32 %v2365, %v2381
        %v2383 = vsub.f32 1.0, %v2382
        %v2384 = vmul.f32 %v2381, %v2383
        %v2385 = vadd.f32 %v2381, %v2384
        %vm2386 = vweird.f32 %v2365
        %vm2387 = vweird.f32 %v2381
        %vm2388 = vmor %vm2386, %vm2387
        %v2389 = vsel %vm2388, %v2381, %v2385
        %v2390 = vand.u32 2147483647, %v2365
        %vm2391 = vcmp.eq.f32.partialorder %v2390, 8.507059e+37
        %v2392 = vand.u32 %v2365, 2147483648
        %v2393 = vor.u32 1.1754944e-38, %v2392
        %v2394 = vsel %vm2391, %v2393, %v2389
        %v2395 = vmul.f32 1.0, %v2394
        %2396 = vxpose.xlu0.b32.start [1/16] %v585, 128
        %2397 = vxpose.xlu0.b32.cont [2/16] 0.0, 128
        %2398 = vxpose.xlu0.b32.cont [3/16] 0.0, 128
        %2399 = vxpose.xlu0.b32.cont [4/16] 0.0, 128
        %2400 = vxpose.xlu0.b32.cont [5/16] 0.0, 128
        %2401 = vxpose.xlu0.b32.cont [6/16] 0.0, 128
        %2402 = vxpose.xlu0.b32.cont [7/16] 0.0, 128
        %2403 = vxpose.xlu0.b32.cont [8/16] 0.0, 128
        %2404 = vxpose.xlu0.b32.cont [9/16] 0.0, 128
        %2405 = vxpose.xlu0.b32.cont [10/16] 0.0, 128
        %2406 = vxpose.xlu0.b32.cont [11/16] 0.0, 128
        %2407 = vxpose.xlu0.b32.cont [12/16] 0.0, 128
        %2408 = vxpose.xlu0.b32.cont [13/16] 0.0, 128
        %2409 = vxpose.xlu0.b32.cont [14/16] 0.0, 128
        %2410 = vxpose.xlu0.b32.cont [15/16] 0.0, 128
        %2411 = vxpose.xlu0.b32.end [16/16] 0.0, 128
        %v2412 = vpop.trf.xlu0
        %v2413 = vpop.trf.xlu0
        %v2414 = vpop.trf.xlu0
        %v2415 = vpop.trf.xlu0
        %v2416 = vpop.trf.xlu0
        %v2417 = vpop.trf.xlu0
        %v2418 = vpop.trf.xlu0
        %v2419 = vpop.trf.xlu0
        %v2420 = vpop.trf.xlu0
        %v2421 = vpop.trf.xlu0
        %v2422 = vpop.trf.xlu0
        %v2423 = vpop.trf.xlu0
        %v2424 = vpop.trf.xlu0
        %v2425 = vpop.trf.xlu0
        %v2426 = vpop.trf.xlu0
        %v2427 = vpop.trf.xlu0
        %2428 = vxpose.xlu0.b32.start [1/16] %v614, 128
        %2429 = vxpose.xlu0.b32.cont [2/16] 0.0, 128
        %2430 = vxpose.xlu0.b32.cont [3/16] 0.0, 128
        %2431 = vxpose.xlu0.b32.cont [4/16] 0.0, 128
        %2432 = vxpose.xlu0.b32.cont [5/16] 0.0, 128
        %2433 = vxpose.xlu0.b32.cont [6/16] 0.0, 128
        %2434 = vxpose.xlu0.b32.cont [7/16] 0.0, 128
        %2435 = vxpose.xlu0.b32.cont [8/16] 0.0, 128
        %2436 = vxpose.xlu0.b32.cont [9/16] 0.0, 128
        %2437 = vxpose.xlu0.b32.cont [10/16] 0.0, 128
        %2438 = vxpose.xlu0.b32.cont [11/16] 0.0, 128
        %2439 = vxpose.xlu0.b32.cont [12/16] 0.0, 128
        %2440 = vxpose.xlu0.b32.cont [13/16] 0.0, 128
        %2441 = vxpose.xlu0.b32.cont [14/16] 0.0, 128
        %2442 = vxpose.xlu0.b32.cont [15/16] 0.0, 128
        %2443 = vxpose.xlu0.b32.end [16/16] 0.0, 128
        %v2444 = vpop.trf.xlu0
        %v2445 = vpop.trf.xlu0
        %v2446 = vpop.trf.xlu0
        %v2447 = vpop.trf.xlu0
        %v2448 = vpop.trf.xlu0
        %v2449 = vpop.trf.xlu0
        %v2450 = vpop.trf.xlu0
        %v2451 = vpop.trf.xlu0
        %v2452 = vpop.trf.xlu0
        %v2453 = vpop.trf.xlu0
        %v2454 = vpop.trf.xlu0
        %v2455 = vpop.trf.xlu0
        %v2456 = vpop.trf.xlu0
        %v2457 = vpop.trf.xlu0
        %v2458 = vpop.trf.xlu0
        %v2459 = vpop.trf.xlu0
        %v2461 = vsel %vm847, %v2412, 0
        %v2464 = vsel %vm847, %v2413, 0
        %v2467 = vsel %vm847, %v2414, 0
        %v2470 = vsel %vm847, %v2415, 0
        %v2473 = vsel %vm847, %v2416, 0
        %v2476 = vsel %vm847, %v2417, 0
        %v2479 = vsel %vm847, %v2418, 0
        %v2482 = vsel %vm847, %v2419, 0
        %v2485 = vsel %vm847, %v2420, 0
        %v2488 = vsel %vm847, %v2421, 0
        %v2491 = vsel %vm847, %v2422, 0
        %v2494 = vsel %vm847, %v2423, 0
        %v2497 = vsel %vm847, %v2424, 0
        %v2500 = vsel %vm847, %v2425, 0
        %v2503 = vsel %vm847, %v2426, 0
        %v2506 = vsel %vm847, %v2427, 0
        %v2509 = vsel %vm847, %v2444, 0
        %v2512 = vsel %vm847, %v2445, 0
        %v2515 = vsel %vm847, %v2446, 0
        %v2518 = vsel %vm847, %v2447, 0
        %v2521 = vsel %vm847, %v2448, 0
        %v2524 = vsel %vm847, %v2449, 0
        %v2527 = vsel %vm847, %v2450, 0
        %v2530 = vsel %vm847, %v2451, 0
        %v2533 = vsel %vm847, %v2452, 0
        %v2536 = vsel %vm847, %v2453, 0
        %v2539 = vsel %vm847, %v2454, 0
        %v2542 = vsel %vm847, %v2455, 0
        %v2545 = vsel %vm847, %v2456, 0
        %v2548 = vsel %vm847, %v2457, 0
        %v2551 = vsel %vm847, %v2458, 0
        %v2554 = vsel %vm847, %v2459, 0
        %2556 = vmatpush.msra.mxu0 0.0
        %2557 = vmatpush.msra.mxu0 0.0
        %2558 = vmatpush.msra.mxu0 0.0
        %2559 = vmatpush.msra.mxu0 0.0
        %2560 = vmatpush.msra.mxu0 0.0
        %2561 = vmatpush.msra.mxu0 0.0
        %2562 = vmatpush.msra.mxu0 0.0
        %2563 = vmatpush.msra.mxu0 0.0
        %2564 = vmatpush.msra.mxu0 0.0
        %2565 = vmatpush.msra.mxu0 0.0
        %2566 = vmatpush.msra.mxu0 0.0
        %2567 = vmatpush.msra.mxu0 0.0
        %2568 = vmatpush.msra.mxu0 0.0
        %2569 = vmatpush.msra.mxu0 0.0
        %2570 = vmatpush.msra.mxu0 0.0
        %2571 = vmatpush.msra.mxu0 %v811
        %2572 = vmatmul.f32.gmra.mxu0 %v2461
        %v2573 = vpop.f32.mrf.mxu0
        %v2574 = vadd.f32 %v938, %v2573
        %2575 = vmatmul.f32.gmra.mxu0 %v2464
        %v2576 = vpop.f32.mrf.mxu0
        %v2577 = vadd.f32 %v938, %v2576
        %2578 = vmatmul.f32.gmra.mxu0 %v2467
        %v2579 = vpop.f32.mrf.mxu0
        %v2580 = vadd.f32 %v938, %v2579
        %2581 = vmatmul.f32.gmra.mxu0 %v2470
        %v2582 = vpop.f32.mrf.mxu0
        %v2583 = vadd.f32 %v938, %v2582
        %2584 = vmatmul.f32.gmra.mxu0 %v2473
        %v2585 = vpop.f32.mrf.mxu0
        %v2586 = vadd.f32 %v938, %v2585
        %2587 = vmatmul.f32.gmra.mxu0 %v2476
        %v2588 = vpop.f32.mrf.mxu0
        %v2589 = vadd.f32 %v938, %v2588
        %2590 = vmatmul.f32.gmra.mxu0 %v2479
        %v2591 = vpop.f32.mrf.mxu0
        %v2592 = vadd.f32 %v938, %v2591
        %2593 = vmatmul.f32.gmra.mxu0 %v2482
        %v2594 = vpop.f32.mrf.mxu0
        %v2595 = vadd.f32 %v938, %v2594
        %2596 = vmatmul.f32.gmra.mxu0 %v2485
        %v2597 = vpop.f32.mrf.mxu0
        %v2598 = vadd.f32 %v938, %v2597
        %2599 = vmatmul.f32.gmra.mxu0 %v2488
        %v2600 = vpop.f32.mrf.mxu0
        %v2601 = vadd.f32 %v938, %v2600
        %2602 = vmatmul.f32.gmra.mxu0 %v2491
        %v2603 = vpop.f32.mrf.mxu0
        %v2604 = vadd.f32 %v938, %v2603
        %2605 = vmatmul.f32.gmra.mxu0 %v2494
        %v2606 = vpop.f32.mrf.mxu0
        %v2607 = vadd.f32 %v938, %v2606
        %2608 = vmatmul.f32.gmra.mxu0 %v2497
        %v2609 = vpop.f32.mrf.mxu0
        %v2610 = vadd.f32 %v938, %v2609
        %2611 = vmatmul.f32.gmra.mxu0 %v2500
        %v2612 = vpop.f32.mrf.mxu0
        %v2613 = vadd.f32 %v938, %v2612
        %2614 = vmatmul.f32.gmra.mxu0 %v2503
        %v2615 = vpop.f32.mrf.mxu0
        %v2616 = vadd.f32 %v938, %v2615
        %2617 = vmatmul.f32.gmra.mxu0 %v2506
        %v2618 = vpop.f32.mrf.mxu0
        %v2619 = vadd.f32 %v938, %v2618
        %2620 = vmatmul.f32.gmra.mxu0 %v2509
        %v2621 = vpop.f32.mrf.mxu0
        %v2622 = vadd.f32 %v938, %v2621
        %2623 = vmatmul.f32.gmra.mxu0 %v2512
        %v2624 = vpop.f32.mrf.mxu0
        %v2625 = vadd.f32 %v938, %v2624
        %2626 = vmatmul.f32.gmra.mxu0 %v2515
        %v2627 = vpop.f32.mrf.mxu0
        %v2628 = vadd.f32 %v938, %v2627
        %2629 = vmatmul.f32.gmra.mxu0 %v2518
        %v2630 = vpop.f32.mrf.mxu0
        %v2631 = vadd.f32 %v938, %v2630
        %2632 = vmatmul.f32.gmra.mxu0 %v2521
        %v2633 = vpop.f32.mrf.mxu0
        %v2634 = vadd.f32 %v938, %v2633
        %2635 = vmatmul.f32.gmra.mxu0 %v2524
        %v2636 = vpop.f32.mrf.mxu0
        %v2637 = vadd.f32 %v938, %v2636
        %2638 = vmatmul.f32.gmra.mxu0 %v2527
        %v2639 = vpop.f32.mrf.mxu0
        %v2640 = vadd.f32 %v938, %v2639
        %2641 = vmatmul.f32.gmra.mxu0 %v2530
        %v2642 = vpop.f32.mrf.mxu0
        %v2643 = vadd.f32 %v938, %v2642
        %2644 = vmatmul.f32.gmra.mxu0 %v2533
        %v2645 = vpop.f32.mrf.mxu0
        %v2646 = vadd.f32 %v938, %v2645
        %2647 = vmatmul.f32.gmra.mxu0 %v2536
        %v2648 = vpop.f32.mrf.mxu0
        %v2649 = vadd.f32 %v938, %v2648
        %2650 = vmatmul.f32.gmra.mxu0 %v2539
        %v2651 = vpop.f32.mrf.mxu0
        %v2652 = vadd.f32 %v938, %v2651
        %2653 = vmatmul.f32.gmra.mxu0 %v2542
        %v2654 = vpop.f32.mrf.mxu0
        %v2655 = vadd.f32 %v938, %v2654
        %2656 = vmatmul.f32.gmra.mxu0 %v2545
        %v2657 = vpop.f32.mrf.mxu0
        %v2658 = vadd.f32 %v938, %v2657
        %2659 = vmatmul.f32.gmra.mxu0 %v2548
        %v2660 = vpop.f32.mrf.mxu0
        %v2661 = vadd.f32 %v938, %v2660
        %2662 = vmatmul.f32.gmra.mxu0 %v2551
        %v2663 = vpop.f32.mrf.mxu0
        %v2664 = vadd.f32 %v938, %v2663
        %2665 = vmatmul.f32.gmra.mxu0 %v2554
        %v2666 = vpop.f32.mrf.mxu0
        %v2667 = vadd.f32 %v938, %v2666
        %2668 = vdwg.mxu0
        %2669 = vmax.xlane.f32.xlu0 %v2574
        %v2670 = vpop.xlane.xlu0 %2669
        %2671 = vmax.xlane.f32.xlu0 %v2577
        %v2672 = vpop.xlane.xlu0 %2671
        %2673 = vmax.xlane.f32.xlu0 %v2580
        %v2674 = vpop.xlane.xlu0 %2673
        %2675 = vmax.xlane.f32.xlu0 %v2583
        %v2676 = vpop.xlane.xlu0 %2675
        %2677 = vmax.xlane.f32.xlu0 %v2586
        %v2678 = vpop.xlane.xlu0 %2677
        %2679 = vmax.xlane.f32.xlu0 %v2589
        %v2680 = vpop.xlane.xlu0 %2679
        %2681 = vmax.xlane.f32.xlu0 %v2592
        %v2682 = vpop.xlane.xlu0 %2681
        %2683 = vmax.xlane.f32.xlu0 %v2595
        %v2684 = vpop.xlane.xlu0 %2683
        %2685 = vmax.xlane.f32.xlu0 %v2598
        %v2686 = vpop.xlane.xlu0 %2685
        %2687 = vmax.xlane.f32.xlu0 %v2601
        %v2688 = vpop.xlane.xlu0 %2687
        %2689 = vmax.xlane.f32.xlu0 %v2604
        %v2690 = vpop.xlane.xlu0 %2689
        %2691 = vmax.xlane.f32.xlu0 %v2607
        %v2692 = vpop.xlane.xlu0 %2691
        %2693 = vmax.xlane.f32.xlu0 %v2610
        %v2694 = vpop.xlane.xlu0 %2693
        %2695 = vmax.xlane.f32.xlu0 %v2613
        %v2696 = vpop.xlane.xlu0 %2695
        %2697 = vmax.xlane.f32.xlu0 %v2616
        %v2698 = vpop.xlane.xlu0 %2697
        %2699 = vmax.xlane.f32.xlu0 %v2619
        %v2700 = vpop.xlane.xlu0 %2699
        %2701 = vmax.xlane.f32.xlu0 %v2622
        %v2702 = vpop.xlane.xlu0 %2701
        %2703 = vmax.xlane.f32.xlu0 %v2625
        %v2704 = vpop.xlane.xlu0 %2703
        %2705 = vmax.xlane.f32.xlu0 %v2628
        %v2706 = vpop.xlane.xlu0 %2705
        %2707 = vmax.xlane.f32.xlu0 %v2631
        %v2708 = vpop.xlane.xlu0 %2707
        %2709 = vmax.xlane.f32.xlu0 %v2634
        %v2710 = vpop.xlane.xlu0 %2709
        %2711 = vmax.xlane.f32.xlu0 %v2637
        %v2712 = vpop.xlane.xlu0 %2711
        %2713 = vmax.xlane.f32.xlu0 %v2640
        %v2714 = vpop.xlane.xlu0 %2713
        %2715 = vmax.xlane.f32.xlu0 %v2643
        %v2716 = vpop.xlane.xlu0 %2715
        %2717 = vmax.xlane.f32.xlu0 %v2646
        %v2718 = vpop.xlane.xlu0 %2717
        %2719 = vmax.xlane.f32.xlu0 %v2649
        %v2720 = vpop.xlane.xlu0 %2719
        %2721 = vmax.xlane.f32.xlu0 %v2652
        %v2722 = vpop.xlane.xlu0 %2721
        %2723 = vmax.xlane.f32.xlu0 %v2655
        %v2724 = vpop.xlane.xlu0 %2723
        %2725 = vmax.xlane.f32.xlu0 %v2658
        %v2726 = vpop.xlane.xlu0 %2725
        %2727 = vmax.xlane.f32.xlu0 %v2661
        %v2728 = vpop.xlane.xlu0 %2727
        %2729 = vmax.xlane.f32.xlu0 %v2664
        %v2730 = vpop.xlane.xlu0 %2729
        %2731 = vmax.xlane.f32.xlu0 %v2667
        %v2732 = vpop.xlane.xlu0 %2731
        %v2733 = vsub.f32 %v2574, %v2670
        %v2734 = vsub.f32 %v2577, %v2672
        %v2735 = vsub.f32 %v2580, %v2674
        %v2736 = vsub.f32 %v2583, %v2676
        %v2737 = vsub.f32 %v2586, %v2678
        %v2738 = vsub.f32 %v2589, %v2680
        %v2739 = vsub.f32 %v2592, %v2682
        %v2740 = vsub.f32 %v2595, %v2684
        %v2741 = vsub.f32 %v2598, %v2686
        %v2742 = vsub.f32 %v2601, %v2688
        %v2743 = vsub.f32 %v2604, %v2690
        %v2744 = vsub.f32 %v2607, %v2692
        %v2745 = vsub.f32 %v2610, %v2694
        %v2746 = vsub.f32 %v2613, %v2696
        %v2747 = vsub.f32 %v2616, %v2698
        %v2748 = vsub.f32 %v2619, %v2700
        %v2749 = vsub.f32 %v2622, %v2702
        %v2750 = vsub.f32 %v2625, %v2704
        %v2751 = vsub.f32 %v2628, %v2706
        %v2752 = vsub.f32 %v2631, %v2708
        %v2753 = vsub.f32 %v2634, %v2710
        %v2754 = vsub.f32 %v2637, %v2712
        %v2755 = vsub.f32 %v2640, %v2714
        %v2756 = vsub.f32 %v2643, %v2716
        %v2757 = vsub.f32 %v2646, %v2718
        %v2758 = vsub.f32 %v2649, %v2720
        %v2759 = vsub.f32 %v2652, %v2722
        %v2760 = vsub.f32 %v2655, %v2724
        %v2761 = vsub.f32 %v2658, %v2726
        %v2762 = vsub.f32 %v2661, %v2728
        %v2763 = vsub.f32 %v2664, %v2730
        %v2764 = vsub.f32 %v2667, %v2732
        %v2765 = vmul.f32 %v2733, 1.442695
        %v2766 = vpow.pop %v2765
        %v2767 = vmul.f32 %v2734, 1.442695
        %v2768 = vpow.pop %v2767
        %v2769 = vmul.f32 %v2735, 1.442695
        %v2770 = vpow.pop %v2769
        %v2771 = vmul.f32 %v2736, 1.442695
        %v2772 = vpow.pop %v2771
        %v2773 = vmul.f32 %v2737, 1.442695
        %v2774 = vpow.pop %v2773
        %v2775 = vmul.f32 %v2738, 1.442695
        %v2776 = vpow.pop %v2775
        %v2777 = vmul.f32 %v2739, 1.442695
        %v2778 = vpow.pop %v2777
        %v2779 = vmul.f32 %v2740, 1.442695
        %v2780 = vpow.pop %v2779
        %v2781 = vmul.f32 %v2741, 1.442695
        %v2782 = vpow.pop %v2781
        %v2783 = vmul.f32 %v2742, 1.442695
        %v2784 = vpow.pop %v2783
        %v2785 = vmul.f32 %v2743, 1.442695
        %v2786 = vpow.pop %v2785
        %v2787 = vmul.f32 %v2744, 1.442695
        %v2788 = vpow.pop %v2787
        %v2789 = vmul.f32 %v2745, 1.442695
        %v2790 = vpow.pop %v2789
        %v2791 = vmul.f32 %v2746, 1.442695
        %v2792 = vpow.pop %v2791
        %v2793 = vmul.f32 %v2747, 1.442695
        %v2794 = vpow.pop %v2793
        %v2795 = vmul.f32 %v2748, 1.442695
        %v2796 = vpow.pop %v2795
        %v2797 = vmul.f32 %v2749, 1.442695
        %v2798 = vpow.pop %v2797
        %v2799 = vmul.f32 %v2750, 1.442695
        %v2800 = vpow.pop %v2799
        %v2801 = vmul.f32 %v2751, 1.442695
        %v2802 = vpow.pop %v2801
        %v2803 = vmul.f32 %v2752, 1.442695
        %v2804 = vpow.pop %v2803
        %v2805 = vmul.f32 %v2753, 1.442695
        %v2806 = vpow.pop %v2805
        %v2807 = vmul.f32 %v2754, 1.442695
        %v2808 = vpow.pop %v2807
        %v2809 = vmul.f32 %v2755, 1.442695
        %v2810 = vpow.pop %v2809
        %v2811 = vmul.f32 %v2756, 1.442695
        %v2812 = vpow.pop %v2811
        %v2813 = vmul.f32 %v2757, 1.442695
        %v2814 = vpow.pop %v2813
        %v2815 = vmul.f32 %v2758, 1.442695
        %v2816 = vpow.pop %v2815
        %v2817 = vmul.f32 %v2759, 1.442695
        %v2818 = vpow.pop %v2817
        %v2819 = vmul.f32 %v2760, 1.442695
        %v2820 = vpow.pop %v2819
        %v2821 = vmul.f32 %v2761, 1.442695
        %v2822 = vpow.pop %v2821
        %v2823 = vmul.f32 %v2762, 1.442695
        %v2824 = vpow.pop %v2823
        %v2825 = vmul.f32 %v2763, 1.442695
        %v2826 = vpow.pop %v2825
        %v2827 = vmul.f32 %v2764, 1.442695
        %v2828 = vpow.pop %v2827
        %2829 = vadd.xlane.f32.xlu0 %v2766
        %v2830 = vpop.xlane.xlu0 %2829
        %2831 = vadd.xlane.f32.xlu0 %v2768
        %v2832 = vpop.xlane.xlu0 %2831
        %2833 = vadd.xlane.f32.xlu0 %v2770
        %v2834 = vpop.xlane.xlu0 %2833
        %2835 = vadd.xlane.f32.xlu0 %v2772
        %v2836 = vpop.xlane.xlu0 %2835
        %2837 = vadd.xlane.f32.xlu0 %v2774
        %v2838 = vpop.xlane.xlu0 %2837
        %2839 = vadd.xlane.f32.xlu0 %v2776
        %v2840 = vpop.xlane.xlu0 %2839
        %2841 = vadd.xlane.f32.xlu0 %v2778
        %v2842 = vpop.xlane.xlu0 %2841
        %2843 = vadd.xlane.f32.xlu0 %v2780
        %v2844 = vpop.xlane.xlu0 %2843
        %2845 = vadd.xlane.f32.xlu0 %v2782
        %v2846 = vpop.xlane.xlu0 %2845
        %2847 = vadd.xlane.f32.xlu0 %v2784
        %v2848 = vpop.xlane.xlu0 %2847
        %2849 = vadd.xlane.f32.xlu0 %v2786
        %v2850 = vpop.xlane.xlu0 %2849
        %2851 = vadd.xlane.f32.xlu0 %v2788
        %v2852 = vpop.xlane.xlu0 %2851
        %2853 = vadd.xlane.f32.xlu0 %v2790
        %v2854 = vpop.xlane.xlu0 %2853
        %2855 = vadd.xlane.f32.xlu0 %v2792
        %v2856 = vpop.xlane.xlu0 %2855
        %2857 = vadd.xlane.f32.xlu0 %v2794
        %v2858 = vpop.xlane.xlu0 %2857
        %2859 = vadd.xlane.f32.xlu0 %v2796
        %v2860 = vpop.xlane.xlu0 %2859
        %2861 = vadd.xlane.f32.xlu0 %v2798
        %v2862 = vpop.xlane.xlu0 %2861
        %2863 = vadd.xlane.f32.xlu0 %v2800
        %v2864 = vpop.xlane.xlu0 %2863
        %2865 = vadd.xlane.f32.xlu0 %v2802
        %v2866 = vpop.xlane.xlu0 %2865
        %2867 = vadd.xlane.f32.xlu0 %v2804
        %v2868 = vpop.xlane.xlu0 %2867
        %2869 = vadd.xlane.f32.xlu0 %v2806
        %v2870 = vpop.xlane.xlu0 %2869
        %2871 = vadd.xlane.f32.xlu0 %v2808
        %v2872 = vpop.xlane.xlu0 %2871
        %2873 = vadd.xlane.f32.xlu0 %v2810
        %v2874 = vpop.xlane.xlu0 %2873
        %2875 = vadd.xlane.f32.xlu0 %v2812
        %v2876 = vpop.xlane.xlu0 %2875
        %2877 = vadd.xlane.f32.xlu0 %v2814
        %v2878 = vpop.xlane.xlu0 %2877
        %2879 = vadd.xlane.f32.xlu0 %v2816
        %v2880 = vpop.xlane.xlu0 %2879
        %2881 = vadd.xlane.f32.xlu0 %v2818
        %v2882 = vpop.xlane.xlu0 %2881
        %2883 = vadd.xlane.f32.xlu0 %v2820
        %v2884 = vpop.xlane.xlu0 %2883
        %2885 = vadd.xlane.f32.xlu0 %v2822
        %v2886 = vpop.xlane.xlu0 %2885
        %2887 = vadd.xlane.f32.xlu0 %v2824
        %v2888 = vpop.xlane.xlu0 %2887
        %2889 = vadd.xlane.f32.xlu0 %v2826
        %v2890 = vpop.xlane.xlu0 %2889
        %2891 = vadd.xlane.f32.xlu0 %v2828
        %v2892 = vpop.xlane.xlu0 %2891
        %v2893 = vrcp.pop %v2830
        %v2894 = vrcp.pop %v2832
        %v2895 = vrcp.pop %v2834
        %v2896 = vrcp.pop %v2836
        %v2897 = vrcp.pop %v2838
        %v2898 = vrcp.pop %v2840
        %v2899 = vrcp.pop %v2842
        %v2900 = vrcp.pop %v2844
        %v2901 = vrcp.pop %v2846
        %v2902 = vrcp.pop %v2848
        %v2903 = vrcp.pop %v2850
        %v2904 = vrcp.pop %v2852
        %v2905 = vrcp.pop %v2854
        %v2906 = vrcp.pop %v2856
        %v2907 = vrcp.pop %v2858
        %v2908 = vrcp.pop %v2860
        %v2909 = vrcp.pop %v2862
        %v2910 = vrcp.pop %v2864
        %v2911 = vrcp.pop %v2866
        %v2912 = vrcp.pop %v2868
        %v2913 = vrcp.pop %v2870
        %v2914 = vrcp.pop %v2872
        %v2915 = vrcp.pop %v2874
        %v2916 = vrcp.pop %v2876
        %v2917 = vrcp.pop %v2878
        %v2918 = vrcp.pop %v2880
        %v2919 = vrcp.pop %v2882
        %v2920 = vrcp.pop %v2884
        %v2921 = vrcp.pop %v2886
        %v2922 = vrcp.pop %v2888
        %v2923 = vrcp.pop %v2890
        %v2924 = vrcp.pop %v2892
        %v2925 = vmul.f32 %v2766, %v2893
        %v2926 = vmul.f32 %v2768, %v2894
        %v2927 = vmul.f32 %v2770, %v2895
        %v2928 = vmul.f32 %v2772, %v2896
        %v2929 = vmul.f32 %v2774, %v2897
        %v2930 = vmul.f32 %v2776, %v2898
        %v2931 = vmul.f32 %v2778, %v2899
        %v2932 = vmul.f32 %v2780, %v2900
        %v2933 = vmul.f32 %v2782, %v2901
        %v2934 = vmul.f32 %v2784, %v2902
        %v2935 = vmul.f32 %v2786, %v2903
        %v2936 = vmul.f32 %v2788, %v2904
        %v2937 = vmul.f32 %v2790, %v2905
        %v2938 = vmul.f32 %v2792, %v2906
        %v2939 = vmul.f32 %v2794, %v2907
        %v2940 = vmul.f32 %v2796, %v2908
        %v2941 = vmul.f32 %v2798, %v2909
        %v2942 = vmul.f32 %v2800, %v2910
        %v2943 = vmul.f32 %v2802, %v2911
        %v2944 = vmul.f32 %v2804, %v2912
        %v2945 = vmul.f32 %v2806, %v2913
        %v2946 = vmul.f32 %v2808, %v2914
        %v2947 = vmul.f32 %v2810, %v2915
        %v2948 = vmul.f32 %v2812, %v2916
        %v2949 = vmul.f32 %v2814, %v2917
        %v2950 = vmul.f32 %v2816, %v2918
        %v2951 = vmul.f32 %v2818, %v2919
        %v2952 = vmul.f32 %v2820, %v2920
        %v2953 = vmul.f32 %v2822, %v2921
        %v2954 = vmul.f32 %v2824, %v2922
        %v2955 = vmul.f32 %v2826, %v2923
        %v2956 = vmul.f32 %v2828, %v2924
        %2957 = vmatpush.xpose.msra.mxu0 %v2940
        %2958 = vmatpush.xpose.msra.mxu0 %v2939
        %2959 = vmatpush.xpose.msra.mxu0 %v2938
        %2960 = vmatpush.xpose.msra.mxu0 %v2937
        %2961 = vmatpush.xpose.msra.mxu0 %v2936
        %2962 = vmatpush.xpose.msra.mxu0 %v2935
        %2963 = vmatpush.xpose.msra.mxu0 %v2934
        %2964 = vmatpush.xpose.msra.mxu0 %v2933
        %2965 = vmatpush.xpose.msra.mxu0 %v2932
        %2966 = vmatpush.xpose.msra.mxu0 %v2931
        %2967 = vmatpush.xpose.msra.mxu0 %v2930
        %2968 = vmatpush.xpose.msra.mxu0 %v2929
        %2969 = vmatpush.xpose.msra.mxu0 %v2928
        %2970 = vmatpush.xpose.msra.mxu0 %v2927
        %2971 = vmatpush.xpose.msra.mxu0 %v2926
        %2972 = vmatpush.xpose.msra.mxu0 %v2925
        %2973 = vmatmul.f32.gmra.mxu0 %v753
        %v2974 = vpop.f32.mrf.mxu0
        %v2975 = vadd.f32 0.0, %v2974
        %2976 = vdwg.mxu0
        %2977 = vmatpush.xpose.msra.mxu0 %v2956
        %2978 = vmatpush.xpose.msra.mxu0 %v2955
        %2979 = vmatpush.xpose.msra.mxu0 %v2954
        %2980 = vmatpush.xpose.msra.mxu0 %v2953
        %2981 = vmatpush.xpose.msra.mxu0 %v2952
        %2982 = vmatpush.xpose.msra.mxu0 %v2951
        %2983 = vmatpush.xpose.msra.mxu0 %v2950
        %2984 = vmatpush.xpose.msra.mxu0 %v2949
        %2985 = vmatpush.xpose.msra.mxu0 %v2948
        %2986 = vmatpush.xpose.msra.mxu0 %v2947
        %2987 = vmatpush.xpose.msra.mxu0 %v2946
        %2988 = vmatpush.xpose.msra.mxu0 %v2945
        %2989 = vmatpush.xpose.msra.mxu0 %v2944
        %2990 = vmatpush.xpose.msra.mxu0 %v2943
        %2991 = vmatpush.xpose.msra.mxu0 %v2942
        %2992 = vmatpush.xpose.msra.mxu0 %v2941
        %2993 = vmatmul.f32.gmra.mxu0 %v753
        %v2994 = vpop.f32.mrf.mxu0
        %v2995 = vadd.f32 0.0, %v2994
        %2996 = vdwg.mxu0
        %v2997 = vperm.slane %v2380, 0
        %v2998 = vperm.slane %v2395, 0
        %v2999 = vmul.f32 %v2975, %v2997
        %v3000 = vmul.f32 %v2995, %v2998
        %3001 = vst [vmem:[%s496 + $0x20] sm:$0xff] %v2999
        %3002 = vst [vmem:[%s496 + $0x28] sm:$0xff] %v3000
        %3003 = vxpose.xlu0.b32.start [1/16] %v807, 128
        %3004 = vxpose.xlu0.b32.cont [2/16] 0.0, 128
        %3005 = vxpose.xlu0.b32.cont [3/16] 0.0, 128
        %3006 = vxpose.xlu0.b32.cont [4/16] 0.0, 128
        %3007 = vxpose.xlu0.b32.cont [5/16] 0.0, 128
        %3008 = vxpose.xlu0.b32.cont [6/16] 0.0, 128
        %3009 = vxpose.xlu0.b32.cont [7/16] 0.0, 128
        %3010 = vxpose.xlu0.b32.cont [8/16] 0.0, 128
        %3011 = vxpose.xlu0.b32.cont [9/16] 0.0, 128
        %3012 = vxpose.xlu0.b32.cont [10/16] 0.0, 128
        %3013 = vxpose.xlu0.b32.cont [11/16] 0.0, 128
        %3014 = vxpose.xlu0.b32.cont [12/16] 0.0, 128
        %3015 = vxpose.xlu0.b32.cont [13/16] 0.0, 128
        %3016 = vxpose.xlu0.b32.cont [14/16] 0.0, 128
        %3017 = vxpose.xlu0.b32.cont [15/16] 0.0, 128
        %3018 = vxpose.xlu0.b32.end [16/16] 0.0, 128
        %v3019 = vpop.trf.xlu0
        %v3020 = vpop.trf.xlu0
        %v3021 = vpop.trf.xlu0
        %v3022 = vpop.trf.xlu0
        %v3023 = vpop.trf.xlu0
        %v3024 = vpop.trf.xlu0
        %v3025 = vpop.trf.xlu0
        %v3026 = vpop.trf.xlu0
        %v3027 = vpop.trf.xlu0
        %v3028 = vpop.trf.xlu0
        %v3029 = vpop.trf.xlu0
        %v3030 = vpop.trf.xlu0
        %v3031 = vpop.trf.xlu0
        %v3032 = vpop.trf.xlu0
        %v3033 = vpop.trf.xlu0
        %v3034 = vpop.trf.xlu0
        %v3036 = vsel %vm847, %v3019, 0
        %3038 = vmatpush.msra.mxu0 0.0
        %3039 = vmatpush.msra.mxu0 0.0
        %3040 = vmatpush.msra.mxu0 0.0
        %3041 = vmatpush.msra.mxu0 0.0
        %3042 = vmatpush.msra.mxu0 0.0
        %3043 = vmatpush.msra.mxu0 0.0
        %3044 = vmatpush.msra.mxu0 0.0
        %3045 = vmatpush.msra.mxu0 0.0
        %3046 = vmatpush.msra.mxu0 0.0
        %3047 = vmatpush.msra.mxu0 0.0
        %3048 = vmatpush.msra.mxu0 0.0
        %3049 = vmatpush.msra.mxu0 0.0
        %3050 = vmatpush.msra.mxu0 0.0
        %3051 = vmatpush.msra.mxu0 0.0
        %3052 = vmatpush.msra.mxu0 0.0
        %3053 = vmatpush.msra.mxu0 %v588
        %3054 = vmatmul.f32.gmra.mxu0 %v3036
        %v3055 = vpop.f32.mrf.mxu0
        %v3056 = vadd.f32 0.0, %v3055
        %3057 = vdwg.mxu0
        %3058 = vmatpush.msra.mxu0 0.0
        %3059 = vmatpush.msra.mxu0 0.0
        %3060 = vmatpush.msra.mxu0 0.0
        %3061 = vmatpush.msra.mxu0 0.0
        %3062 = vmatpush.msra.mxu0 0.0
        %3063 = vmatpush.msra.mxu0 0.0
        %3064 = vmatpush.msra.mxu0 0.0
        %3065 = vmatpush.msra.mxu0 0.0
        %3066 = vmatpush.msra.mxu0 0.0
        %3067 = vmatpush.msra.mxu0 0.0
        %3068 = vmatpush.msra.mxu0 0.0
        %3069 = vmatpush.msra.mxu0 0.0
        %3070 = vmatpush.msra.mxu0 0.0
        %3071 = vmatpush.msra.mxu0 0.0
        %3072 = vmatpush.msra.mxu0 0.0
        %3073 = vmatpush.msra.mxu0 %v617
        %3074 = vmatmul.f32.gmra.mxu0 %v3036
        %v3075 = vpop.f32.mrf.mxu0
        %v3076 = vadd.f32 0.0, %v3075
        %3077 = vdwg.mxu0
        %s3078 = sld [smem:[#allocation7 + $0x3]]
        %v3079 = vstv %s3078
        %v3080 = vmul.f32 %v3056, %v3079
        %v3081 = vmul.f32 %v3076, %v3079
        %s3082 = sld [smem:[#allocation9 + $0x3]]
        %v3083 = vstv %s3082
        %v3084 = vadd.f32 %v3080, %v3083
        %v3085 = vadd.f32 %v3081, %v3083
        %v3086 = vxor.u32 %v3084, 2147483648
        %v3087 = vxor.u32 %v3085, 2147483648
        %v3088 = vmul.f32 %v3086, 1.442695
        %v3089 = vpow.pop %v3088
        %v3090 = vmul.f32 %v3087, 1.442695
        %v3091 = vpow.pop %v3090
        %v3092 = vadd.f32 %v3089, 1.0
        %v3093 = vadd.f32 %v3091, 1.0
        %v3094 = vrcp.pop %v3092
        %v3095 = vmul.f32 %v3092, %v3094
        %v3096 = vsub.f32 1.0, %v3095
        %v3097 = vmul.f32 %v3094, %v3096
        %v3098 = vadd.f32 %v3094, %v3097
        %vm3099 = vweird.f32 %v3092
        %vm3100 = vweird.f32 %v3094
        %vm3101 = vmor %vm3099, %vm3100
        %v3102 = vsel %vm3101, %v3094, %v3098
        %v3103 = vand.u32 2147483647, %v3092
        %vm3104 = vcmp.eq.f32.partialorder %v3103, 8.507059e+37
        %v3105 = vand.u32 %v3092, 2147483648
        %v3106 = vor.u32 1.1754944e-38, %v3105
        %v3107 = vsel %vm3104, %v3106, %v3102
        %v3108 = vmul.f32 1.0, %v3107
        %v3109 = vrcp.pop %v3093
        %v3110 = vmul.f32 %v3093, %v3109
        %v3111 = vsub.f32 1.0, %v3110
        %v3112 = vmul.f32 %v3109, %v3111
        %v3113 = vadd.f32 %v3109, %v3112
        %vm3114 = vweird.f32 %v3093
        %vm3115 = vweird.f32 %v3109
        %vm3116 = vmor %vm3114, %vm3115
        %v3117 = vsel %vm3116, %v3109, %v3113
        %v3118 = vand.u32 2147483647, %v3093
        %vm3119 = vcmp.eq.f32.partialorder %v3118, 8.507059e+37
        %v3120 = vand.u32 %v3093, 2147483648
        %v3121 = vor.u32 1.1754944e-38, %v3120
        %v3122 = vsel %vm3119, %v3121, %v3117
        %v3123 = vmul.f32 1.0, %v3122
        %3124 = vxpose.xlu0.b32.start [1/16] %v588, 128
        %3125 = vxpose.xlu0.b32.cont [2/16] 0.0, 128
        %3126 = vxpose.xlu0.b32.cont [3/16] 0.0, 128
        %3127 = vxpose.xlu0.b32.cont [4/16] 0.0, 128
        %3128 = vxpose.xlu0.b32.cont [5/16] 0.0, 128
        %3129 = vxpose.xlu0.b32.cont [6/16] 0.0, 128
        %3130 = vxpose.xlu0.b32.cont [7/16] 0.0, 128
        %3131 = vxpose.xlu0.b32.cont [8/16] 0.0, 128
        %3132 = vxpose.xlu0.b32.cont [9/16] 0.0, 128
        %3133 = vxpose.xlu0.b32.cont [10/16] 0.0, 128
        %3134 = vxpose.xlu0.b32.cont [11/16] 0.0, 128
        %3135 = vxpose.xlu0.b32.cont [12/16] 0.0, 128
        %3136 = vxpose.xlu0.b32.cont [13/16] 0.0, 128
        %3137 = vxpose.xlu0.b32.cont [14/16] 0.0, 128
        %3138 = vxpose.xlu0.b32.cont [15/16] 0.0, 128
        %3139 = vxpose.xlu0.b32.end [16/16] 0.0, 128
        %v3140 = vpop.trf.xlu0
        %v3141 = vpop.trf.xlu0
        %v3142 = vpop.trf.xlu0
        %v3143 = vpop.trf.xlu0
        %v3144 = vpop.trf.xlu0
        %v3145 = vpop.trf.xlu0
        %v3146 = vpop.trf.xlu0
        %v3147 = vpop.trf.xlu0
        %v3148 = vpop.trf.xlu0
        %v3149 = vpop.trf.xlu0
        %v3150 = vpop.trf.xlu0
        %v3151 = vpop.trf.xlu0
        %v3152 = vpop.trf.xlu0
        %v3153 = vpop.trf.xlu0
        %v3154 = vpop.trf.xlu0
        %v3155 = vpop.trf.xlu0
        %3156 = vxpose.xlu0.b32.start [1/16] %v617, 128
        %3157 = vxpose.xlu0.b32.cont [2/16] 0.0, 128
        %3158 = vxpose.xlu0.b32.cont [3/16] 0.0, 128
        %3159 = vxpose.xlu0.b32.cont [4/16] 0.0, 128
        %3160 = vxpose.xlu0.b32.cont [5/16] 0.0, 128
        %3161 = vxpose.xlu0.b32.cont [6/16] 0.0, 128
        %3162 = vxpose.xlu0.b32.cont [7/16] 0.0, 128
        %3163 = vxpose.xlu0.b32.cont [8/16] 0.0, 128
        %3164 = vxpose.xlu0.b32.cont [9/16] 0.0, 128
        %3165 = vxpose.xlu0.b32.cont [10/16] 0.0, 128
        %3166 = vxpose.xlu0.b32.cont [11/16] 0.0, 128
        %3167 = vxpose.xlu0.b32.cont [12/16] 0.0, 128
        %3168 = vxpose.xlu0.b32.cont [13/16] 0.0, 128
        %3169 = vxpose.xlu0.b32.cont [14/16] 0.0, 128
        %3170 = vxpose.xlu0.b32.cont [15/16] 0.0, 128
        %3171 = vxpose.xlu0.b32.end [16/16] 0.0, 128
        %v3172 = vpop.trf.xlu0
        %v3173 = vpop.trf.xlu0
        %v3174 = vpop.trf.xlu0
        %v3175 = vpop.trf.xlu0
        %v3176 = vpop.trf.xlu0
        %v3177 = vpop.trf.xlu0
        %v3178 = vpop.trf.xlu0
        %v3179 = vpop.trf.xlu0
        %v3180 = vpop.trf.xlu0
        %v3181 = vpop.trf.xlu0
        %v3182 = vpop.trf.xlu0
        %v3183 = vpop.trf.xlu0
        %v3184 = vpop.trf.xlu0
        %v3185 = vpop.trf.xlu0
        %v3186 = vpop.trf.xlu0
        %v3187 = vpop.trf.xlu0
        %v3189 = vsel %vm847, %v3140, 0
        %v3192 = vsel %vm847, %v3141, 0
        %v3195 = vsel %vm847, %v3142, 0
        %v3198 = vsel %vm847, %v3143, 0
        %v3201 = vsel %vm847, %v3144, 0
        %v3204 = vsel %vm847, %v3145, 0
        %v3207 = vsel %vm847, %v3146, 0
        %v3210 = vsel %vm847, %v3147, 0
        %v3213 = vsel %vm847, %v3148, 0
        %v3216 = vsel %vm847, %v3149, 0
        %v3219 = vsel %vm847, %v3150, 0
        %v3222 = vsel %vm847, %v3151, 0
        %v3225 = vsel %vm847, %v3152, 0
        %v3228 = vsel %vm847, %v3153, 0
        %v3231 = vsel %vm847, %v3154, 0
        %v3234 = vsel %vm847, %v3155, 0
        %v3237 = vsel %vm847, %v3172, 0
        %v3240 = vsel %vm847, %v3173, 0
        %v3243 = vsel %vm847, %v3174, 0
        %v3246 = vsel %vm847, %v3175, 0
        %v3249 = vsel %vm847, %v3176, 0
        %v3252 = vsel %vm847, %v3177, 0
        %v3255 = vsel %vm847, %v3178, 0
        %v3258 = vsel %vm847, %v3179, 0
        %v3261 = vsel %vm847, %v3180, 0
        %v3264 = vsel %vm847, %v3181, 0
        %v3267 = vsel %vm847, %v3182, 0
        %v3270 = vsel %vm847, %v3183, 0
        %v3273 = vsel %vm847, %v3184, 0
        %v3276 = vsel %vm847, %v3185, 0
        %v3279 = vsel %vm847, %v3186, 0
        %v3282 = vsel %vm847, %v3187, 0
        %3284 = vmatpush.msra.mxu0 0.0
        %3285 = vmatpush.msra.mxu0 0.0
        %3286 = vmatpush.msra.mxu0 0.0
        %3287 = vmatpush.msra.mxu0 0.0
        %3288 = vmatpush.msra.mxu0 0.0
        %3289 = vmatpush.msra.mxu0 0.0
        %3290 = vmatpush.msra.mxu0 0.0
        %3291 = vmatpush.msra.mxu0 0.0
        %3292 = vmatpush.msra.mxu0 0.0
        %3293 = vmatpush.msra.mxu0 0.0
        %3294 = vmatpush.msra.mxu0 0.0
        %3295 = vmatpush.msra.mxu0 0.0
        %3296 = vmatpush.msra.mxu0 0.0
        %3297 = vmatpush.msra.mxu0 0.0
        %3298 = vmatpush.msra.mxu0 0.0
        %3299 = vmatpush.msra.mxu0 %v812
        %3300 = vmatmul.f32.gmra.mxu0 %v3189
        %v3301 = vpop.f32.mrf.mxu0
        %v3302 = vadd.f32 %v938, %v3301
        %3303 = vmatmul.f32.gmra.mxu0 %v3192
        %v3304 = vpop.f32.mrf.mxu0
        %v3305 = vadd.f32 %v938, %v3304
        %3306 = vmatmul.f32.gmra.mxu0 %v3195
        %v3307 = vpop.f32.mrf.mxu0
        %v3308 = vadd.f32 %v938, %v3307
        %3309 = vmatmul.f32.gmra.mxu0 %v3198
        %v3310 = vpop.f32.mrf.mxu0
        %v3311 = vadd.f32 %v938, %v3310
        %3312 = vmatmul.f32.gmra.mxu0 %v3201
        %v3313 = vpop.f32.mrf.mxu0
        %v3314 = vadd.f32 %v938, %v3313
        %3315 = vmatmul.f32.gmra.mxu0 %v3204
        %v3316 = vpop.f32.mrf.mxu0
        %v3317 = vadd.f32 %v938, %v3316
        %3318 = vmatmul.f32.gmra.mxu0 %v3207
        %v3319 = vpop.f32.mrf.mxu0
        %v3320 = vadd.f32 %v938, %v3319
        %3321 = vmatmul.f32.gmra.mxu0 %v3210
        %v3322 = vpop.f32.mrf.mxu0
        %v3323 = vadd.f32 %v938, %v3322
        %3324 = vmatmul.f32.gmra.mxu0 %v3213
        %v3325 = vpop.f32.mrf.mxu0
        %v3326 = vadd.f32 %v938, %v3325
        %3327 = vmatmul.f32.gmra.mxu0 %v3216
        %v3328 = vpop.f32.mrf.mxu0
        %v3329 = vadd.f32 %v938, %v3328
        %3330 = vmatmul.f32.gmra.mxu0 %v3219
        %v3331 = vpop.f32.mrf.mxu0
        %v3332 = vadd.f32 %v938, %v3331
        %3333 = vmatmul.f32.gmra.mxu0 %v3222
        %v3334 = vpop.f32.mrf.mxu0
        %v3335 = vadd.f32 %v938, %v3334
        %3336 = vmatmul.f32.gmra.mxu0 %v3225
        %v3337 = vpop.f32.mrf.mxu0
        %v3338 = vadd.f32 %v938, %v3337
        %3339 = vmatmul.f32.gmra.mxu0 %v3228
        %v3340 = vpop.f32.mrf.mxu0
        %v3341 = vadd.f32 %v938, %v3340
        %3342 = vmatmul.f32.gmra.mxu0 %v3231
        %v3343 = vpop.f32.mrf.mxu0
        %v3344 = vadd.f32 %v938, %v3343
        %3345 = vmatmul.f32.gmra.mxu0 %v3234
        %v3346 = vpop.f32.mrf.mxu0
        %v3347 = vadd.f32 %v938, %v3346
        %3348 = vmatmul.f32.gmra.mxu0 %v3237
        %v3349 = vpop.f32.mrf.mxu0
        %v3350 = vadd.f32 %v938, %v3349
        %3351 = vmatmul.f32.gmra.mxu0 %v3240
        %v3352 = vpop.f32.mrf.mxu0
        %v3353 = vadd.f32 %v938, %v3352
        %3354 = vmatmul.f32.gmra.mxu0 %v3243
        %v3355 = vpop.f32.mrf.mxu0
        %v3356 = vadd.f32 %v938, %v3355
        %3357 = vmatmul.f32.gmra.mxu0 %v3246
        %v3358 = vpop.f32.mrf.mxu0
        %v3359 = vadd.f32 %v938, %v3358
        %3360 = vmatmul.f32.gmra.mxu0 %v3249
        %v3361 = vpop.f32.mrf.mxu0
        %v3362 = vadd.f32 %v938, %v3361
        %3363 = vmatmul.f32.gmra.mxu0 %v3252
        %v3364 = vpop.f32.mrf.mxu0
        %v3365 = vadd.f32 %v938, %v3364
        %3366 = vmatmul.f32.gmra.mxu0 %v3255
        %v3367 = vpop.f32.mrf.mxu0
        %v3368 = vadd.f32 %v938, %v3367
        %3369 = vmatmul.f32.gmra.mxu0 %v3258
        %v3370 = vpop.f32.mrf.mxu0
        %v3371 = vadd.f32 %v938, %v3370
        %3372 = vmatmul.f32.gmra.mxu0 %v3261
        %v3373 = vpop.f32.mrf.mxu0
        %v3374 = vadd.f32 %v938, %v3373
        %3375 = vmatmul.f32.gmra.mxu0 %v3264
        %v3376 = vpop.f32.mrf.mxu0
        %v3377 = vadd.f32 %v938, %v3376
        %3378 = vmatmul.f32.gmra.mxu0 %v3267
        %v3379 = vpop.f32.mrf.mxu0
        %v3380 = vadd.f32 %v938, %v3379
        %3381 = vmatmul.f32.gmra.mxu0 %v3270
        %v3382 = vpop.f32.mrf.mxu0
        %v3383 = vadd.f32 %v938, %v3382
        %3384 = vmatmul.f32.gmra.mxu0 %v3273
        %v3385 = vpop.f32.mrf.mxu0
        %v3386 = vadd.f32 %v938, %v3385
        %3387 = vmatmul.f32.gmra.mxu0 %v3276
        %v3388 = vpop.f32.mrf.mxu0
        %v3389 = vadd.f32 %v938, %v3388
        %3390 = vmatmul.f32.gmra.mxu0 %v3279
        %v3391 = vpop.f32.mrf.mxu0
        %v3392 = vadd.f32 %v938, %v3391
        %3393 = vmatmul.f32.gmra.mxu0 %v3282
        %v3394 = vpop.f32.mrf.mxu0
        %v3395 = vadd.f32 %v938, %v3394
        %3396 = vdwg.mxu0
        %3397 = vmax.xlane.f32.xlu0 %v3302
        %v3398 = vpop.xlane.xlu0 %3397
        %3399 = vmax.xlane.f32.xlu0 %v3305
        %v3400 = vpop.xlane.xlu0 %3399
        %3401 = vmax.xlane.f32.xlu0 %v3308
        %v3402 = vpop.xlane.xlu0 %3401
        %3403 = vmax.xlane.f32.xlu0 %v3311
        %v3404 = vpop.xlane.xlu0 %3403
        %3405 = vmax.xlane.f32.xlu0 %v3314
        %v3406 = vpop.xlane.xlu0 %3405
        %3407 = vmax.xlane.f32.xlu0 %v3317
        %v3408 = vpop.xlane.xlu0 %3407
        %3409 = vmax.xlane.f32.xlu0 %v3320
        %v3410 = vpop.xlane.xlu0 %3409
        %3411 = vmax.xlane.f32.xlu0 %v3323
        %v3412 = vpop.xlane.xlu0 %3411
        %3413 = vmax.xlane.f32.xlu0 %v3326
        %v3414 = vpop.xlane.xlu0 %3413
        %3415 = vmax.xlane.f32.xlu0 %v3329
        %v3416 = vpop.xlane.xlu0 %3415
        %3417 = vmax.xlane.f32.xlu0 %v3332
        %v3418 = vpop.xlane.xlu0 %3417
        %3419 = vmax.xlane.f32.xlu0 %v3335
        %v3420 = vpop.xlane.xlu0 %3419
        %3421 = vmax.xlane.f32.xlu0 %v3338
        %v3422 = vpop.xlane.xlu0 %3421
        %3423 = vmax.xlane.f32.xlu0 %v3341
        %v3424 = vpop.xlane.xlu0 %3423
        %3425 = vmax.xlane.f32.xlu0 %v3344
        %v3426 = vpop.xlane.xlu0 %3425
        %3427 = vmax.xlane.f32.xlu0 %v3347
        %v3428 = vpop.xlane.xlu0 %3427
        %3429 = vmax.xlane.f32.xlu0 %v3350
        %v3430 = vpop.xlane.xlu0 %3429
        %3431 = vmax.xlane.f32.xlu0 %v3353
        %v3432 = vpop.xlane.xlu0 %3431
        %3433 = vmax.xlane.f32.xlu0 %v3356
        %v3434 = vpop.xlane.xlu0 %3433
        %3435 = vmax.xlane.f32.xlu0 %v3359
        %v3436 = vpop.xlane.xlu0 %3435
        %3437 = vmax.xlane.f32.xlu0 %v3362
        %v3438 = vpop.xlane.xlu0 %3437
        %3439 = vmax.xlane.f32.xlu0 %v3365
        %v3440 = vpop.xlane.xlu0 %3439
        %3441 = vmax.xlane.f32.xlu0 %v3368
        %v3442 = vpop.xlane.xlu0 %3441
        %3443 = vmax.xlane.f32.xlu0 %v3371
        %v3444 = vpop.xlane.xlu0 %3443
        %3445 = vmax.xlane.f32.xlu0 %v3374
        %v3446 = vpop.xlane.xlu0 %3445
        %3447 = vmax.xlane.f32.xlu0 %v3377
        %v3448 = vpop.xlane.xlu0 %3447
        %3449 = vmax.xlane.f32.xlu0 %v3380
        %v3450 = vpop.xlane.xlu0 %3449
        %3451 = vmax.xlane.f32.xlu0 %v3383
        %v3452 = vpop.xlane.xlu0 %3451
        %3453 = vmax.xlane.f32.xlu0 %v3386
        %v3454 = vpop.xlane.xlu0 %3453
        %3455 = vmax.xlane.f32.xlu0 %v3389
        %v3456 = vpop.xlane.xlu0 %3455
        %3457 = vmax.xlane.f32.xlu0 %v3392
        %v3458 = vpop.xlane.xlu0 %3457
        %3459 = vmax.xlane.f32.xlu0 %v3395
        %v3460 = vpop.xlane.xlu0 %3459
        %v3461 = vsub.f32 %v3302, %v3398
        %v3462 = vsub.f32 %v3305, %v3400
        %v3463 = vsub.f32 %v3308, %v3402
        %v3464 = vsub.f32 %v3311, %v3404
        %v3465 = vsub.f32 %v3314, %v3406
        %v3466 = vsub.f32 %v3317, %v3408
        %v3467 = vsub.f32 %v3320, %v3410
        %v3468 = vsub.f32 %v3323, %v3412
        %v3469 = vsub.f32 %v3326, %v3414
        %v3470 = vsub.f32 %v3329, %v3416
        %v3471 = vsub.f32 %v3332, %v3418
        %v3472 = vsub.f32 %v3335, %v3420
        %v3473 = vsub.f32 %v3338, %v3422
        %v3474 = vsub.f32 %v3341, %v3424
        %v3475 = vsub.f32 %v3344, %v3426
        %v3476 = vsub.f32 %v3347, %v3428
        %v3477 = vsub.f32 %v3350, %v3430
        %v3478 = vsub.f32 %v3353, %v3432
        %v3479 = vsub.f32 %v3356, %v3434
        %v3480 = vsub.f32 %v3359, %v3436
        %v3481 = vsub.f32 %v3362, %v3438
        %v3482 = vsub.f32 %v3365, %v3440
        %v3483 = vsub.f32 %v3368, %v3442
        %v3484 = vsub.f32 %v3371, %v3444
        %v3485 = vsub.f32 %v3374, %v3446
        %v3486 = vsub.f32 %v3377, %v3448
        %v3487 = vsub.f32 %v3380, %v3450
        %v3488 = vsub.f32 %v3383, %v3452
        %v3489 = vsub.f32 %v3386, %v3454
        %v3490 = vsub.f32 %v3389, %v3456
        %v3491 = vsub.f32 %v3392, %v3458
        %v3492 = vsub.f32 %v3395, %v3460
        %v3493 = vmul.f32 %v3461, 1.442695
        %v3494 = vpow.pop %v3493
        %v3495 = vmul.f32 %v3462, 1.442695
        %v3496 = vpow.pop %v3495
        %v3497 = vmul.f32 %v3463, 1.442695
        %v3498 = vpow.pop %v3497
        %v3499 = vmul.f32 %v3464, 1.442695
        %v3500 = vpow.pop %v3499
        %v3501 = vmul.f32 %v3465, 1.442695
        %v3502 = vpow.pop %v3501
        %v3503 = vmul.f32 %v3466, 1.442695
        %v3504 = vpow.pop %v3503
        %v3505 = vmul.f32 %v3467, 1.442695
        %v3506 = vpow.pop %v3505
        %v3507 = vmul.f32 %v3468, 1.442695
        %v3508 = vpow.pop %v3507
        %v3509 = vmul.f32 %v3469, 1.442695
        %v3510 = vpow.pop %v3509
        %v3511 = vmul.f32 %v3470, 1.442695
        %v3512 = vpow.pop %v3511
        %v3513 = vmul.f32 %v3471, 1.442695
        %v3514 = vpow.pop %v3513
        %v3515 = vmul.f32 %v3472, 1.442695
        %v3516 = vpow.pop %v3515
        %v3517 = vmul.f32 %v3473, 1.442695
        %v3518 = vpow.pop %v3517
        %v3519 = vmul.f32 %v3474, 1.442695
        %v3520 = vpow.pop %v3519
        %v3521 = vmul.f32 %v3475, 1.442695
        %v3522 = vpow.pop %v3521
        %v3523 = vmul.f32 %v3476, 1.442695
        %v3524 = vpow.pop %v3523
        %v3525 = vmul.f32 %v3477, 1.442695
        %v3526 = vpow.pop %v3525
        %v3527 = vmul.f32 %v3478, 1.442695
        %v3528 = vpow.pop %v3527
        %v3529 = vmul.f32 %v3479, 1.442695
        %v3530 = vpow.pop %v3529
        %v3531 = vmul.f32 %v3480, 1.442695
        %v3532 = vpow.pop %v3531
        %v3533 = vmul.f32 %v3481, 1.442695
        %v3534 = vpow.pop %v3533
        %v3535 = vmul.f32 %v3482, 1.442695
        %v3536 = vpow.pop %v3535
        %v3537 = vmul.f32 %v3483, 1.442695
        %v3538 = vpow.pop %v3537
        %v3539 = vmul.f32 %v3484, 1.442695
        %v3540 = vpow.pop %v3539
        %v3541 = vmul.f32 %v3485, 1.442695
        %v3542 = vpow.pop %v3541
        %v3543 = vmul.f32 %v3486, 1.442695
        %v3544 = vpow.pop %v3543
        %v3545 = vmul.f32 %v3487, 1.442695
        %v3546 = vpow.pop %v3545
        %v3547 = vmul.f32 %v3488, 1.442695
        %v3548 = vpow.pop %v3547
        %v3549 = vmul.f32 %v3489, 1.442695
        %v3550 = vpow.pop %v3549
        %v3551 = vmul.f32 %v3490, 1.442695
        %v3552 = vpow.pop %v3551
        %v3553 = vmul.f32 %v3491, 1.442695
        %v3554 = vpow.pop %v3553
        %v3555 = vmul.f32 %v3492, 1.442695
        %v3556 = vpow.pop %v3555
        %3557 = vadd.xlane.f32.xlu0 %v3494
        %v3558 = vpop.xlane.xlu0 %3557
        %3559 = vadd.xlane.f32.xlu0 %v3496
        %v3560 = vpop.xlane.xlu0 %3559
        %3561 = vadd.xlane.f32.xlu0 %v3498
        %v3562 = vpop.xlane.xlu0 %3561
        %3563 = vadd.xlane.f32.xlu0 %v3500
        %v3564 = vpop.xlane.xlu0 %3563
        %3565 = vadd.xlane.f32.xlu0 %v3502
        %v3566 = vpop.xlane.xlu0 %3565
        %3567 = vadd.xlane.f32.xlu0 %v3504
        %v3568 = vpop.xlane.xlu0 %3567
        %3569 = vadd.xlane.f32.xlu0 %v3506
        %v3570 = vpop.xlane.xlu0 %3569
        %3571 = vadd.xlane.f32.xlu0 %v3508
        %v3572 = vpop.xlane.xlu0 %3571
        %3573 = vadd.xlane.f32.xlu0 %v3510
        %v3574 = vpop.xlane.xlu0 %3573
        %3575 = vadd.xlane.f32.xlu0 %v3512
        %v3576 = vpop.xlane.xlu0 %3575
        %3577 = vadd.xlane.f32.xlu0 %v3514
        %v3578 = vpop.xlane.xlu0 %3577
        %3579 = vadd.xlane.f32.xlu0 %v3516
        %v3580 = vpop.xlane.xlu0 %3579
        %3581 = vadd.xlane.f32.xlu0 %v3518
        %v3582 = vpop.xlane.xlu0 %3581
        %3583 = vadd.xlane.f32.xlu0 %v3520
        %v3584 = vpop.xlane.xlu0 %3583
        %3585 = vadd.xlane.f32.xlu0 %v3522
        %v3586 = vpop.xlane.xlu0 %3585
        %3587 = vadd.xlane.f32.xlu0 %v3524
        %v3588 = vpop.xlane.xlu0 %3587
        %3589 = vadd.xlane.f32.xlu0 %v3526
        %v3590 = vpop.xlane.xlu0 %3589
        %3591 = vadd.xlane.f32.xlu0 %v3528
        %v3592 = vpop.xlane.xlu0 %3591
        %3593 = vadd.xlane.f32.xlu0 %v3530
        %v3594 = vpop.xlane.xlu0 %3593
        %3595 = vadd.xlane.f32.xlu0 %v3532
        %v3596 = vpop.xlane.xlu0 %3595
        %3597 = vadd.xlane.f32.xlu0 %v3534
        %v3598 = vpop.xlane.xlu0 %3597
        %3599 = vadd.xlane.f32.xlu0 %v3536
        %v3600 = vpop.xlane.xlu0 %3599
        %3601 = vadd.xlane.f32.xlu0 %v3538
        %v3602 = vpop.xlane.xlu0 %3601
        %3603 = vadd.xlane.f32.xlu0 %v3540
        %v3604 = vpop.xlane.xlu0 %3603
        %3605 = vadd.xlane.f32.xlu0 %v3542
        %v3606 = vpop.xlane.xlu0 %3605
        %3607 = vadd.xlane.f32.xlu0 %v3544
        %v3608 = vpop.xlane.xlu0 %3607
        %3609 = vadd.xlane.f32.xlu0 %v3546
        %v3610 = vpop.xlane.xlu0 %3609
        %3611 = vadd.xlane.f32.xlu0 %v3548
        %v3612 = vpop.xlane.xlu0 %3611
        %3613 = vadd.xlane.f32.xlu0 %v3550
        %v3614 = vpop.xlane.xlu0 %3613
        %3615 = vadd.xlane.f32.xlu0 %v3552
        %v3616 = vpop.xlane.xlu0 %3615
        %3617 = vadd.xlane.f32.xlu0 %v3554
        %v3618 = vpop.xlane.xlu0 %3617
        %3619 = vadd.xlane.f32.xlu0 %v3556
        %v3620 = vpop.xlane.xlu0 %3619
        %v3621 = vrcp.pop %v3558
        %v3622 = vrcp.pop %v3560
        %v3623 = vrcp.pop %v3562
        %v3624 = vrcp.pop %v3564
        %v3625 = vrcp.pop %v3566
        %v3626 = vrcp.pop %v3568
        %v3627 = vrcp.pop %v3570
        %v3628 = vrcp.pop %v3572
        %v3629 = vrcp.pop %v3574
        %v3630 = vrcp.pop %v3576
        %v3631 = vrcp.pop %v3578
        %v3632 = vrcp.pop %v3580
        %v3633 = vrcp.pop %v3582
        %v3634 = vrcp.pop %v3584
        %v3635 = vrcp.pop %v3586
        %v3636 = vrcp.pop %v3588
        %v3637 = vrcp.pop %v3590
        %v3638 = vrcp.pop %v3592
        %v3639 = vrcp.pop %v3594
        %v3640 = vrcp.pop %v3596
        %v3641 = vrcp.pop %v3598
        %v3642 = vrcp.pop %v3600
        %v3643 = vrcp.pop %v3602
        %v3644 = vrcp.pop %v3604
        %v3645 = vrcp.pop %v3606
        %v3646 = vrcp.pop %v3608
        %v3647 = vrcp.pop %v3610
        %v3648 = vrcp.pop %v3612
        %v3649 = vrcp.pop %v3614
        %v3650 = vrcp.pop %v3616
        %v3651 = vrcp.pop %v3618
        %v3652 = vrcp.pop %v3620
        %v3653 = vmul.f32 %v3494, %v3621
        %v3654 = vmul.f32 %v3496, %v3622
        %v3655 = vmul.f32 %v3498, %v3623
        %v3656 = vmul.f32 %v3500, %v3624
        %v3657 = vmul.f32 %v3502, %v3625
        %v3658 = vmul.f32 %v3504, %v3626
        %v3659 = vmul.f32 %v3506, %v3627
        %v3660 = vmul.f32 %v3508, %v3628
        %v3661 = vmul.f32 %v3510, %v3629
        %v3662 = vmul.f32 %v3512, %v3630
        %v3663 = vmul.f32 %v3514, %v3631
        %v3664 = vmul.f32 %v3516, %v3632
        %v3665 = vmul.f32 %v3518, %v3633
        %v3666 = vmul.f32 %v3520, %v3634
        %v3667 = vmul.f32 %v3522, %v3635
        %v3668 = vmul.f32 %v3524, %v3636
        %v3669 = vmul.f32 %v3526, %v3637
        %v3670 = vmul.f32 %v3528, %v3638
        %v3671 = vmul.f32 %v3530, %v3639
        %v3672 = vmul.f32 %v3532, %v3640
        %v3673 = vmul.f32 %v3534, %v3641
        %v3674 = vmul.f32 %v3536, %v3642
        %v3675 = vmul.f32 %v3538, %v3643
        %v3676 = vmul.f32 %v3540, %v3644
        %v3677 = vmul.f32 %v3542, %v3645
        %v3678 = vmul.f32 %v3544, %v3646
        %v3679 = vmul.f32 %v3546, %v3647
        %v3680 = vmul.f32 %v3548, %v3648
        %v3681 = vmul.f32 %v3550, %v3649
        %v3682 = vmul.f32 %v3552, %v3650
        %v3683 = vmul.f32 %v3554, %v3651
        %v3684 = vmul.f32 %v3556, %v3652
        %3685 = vmatpush.xpose.msra.mxu0 %v3668
        %3686 = vmatpush.xpose.msra.mxu0 %v3667
        %3687 = vmatpush.xpose.msra.mxu0 %v3666
        %3688 = vmatpush.xpose.msra.mxu0 %v3665
        %3689 = vmatpush.xpose.msra.mxu0 %v3664
        %3690 = vmatpush.xpose.msra.mxu0 %v3663
        %3691 = vmatpush.xpose.msra.mxu0 %v3662
        %3692 = vmatpush.xpose.msra.mxu0 %v3661
        %3693 = vmatpush.xpose.msra.mxu0 %v3660
        %3694 = vmatpush.xpose.msra.mxu0 %v3659
        %3695 = vmatpush.xpose.msra.mxu0 %v3658
        %3696 = vmatpush.xpose.msra.mxu0 %v3657
        %3697 = vmatpush.xpose.msra.mxu0 %v3656
        %3698 = vmatpush.xpose.msra.mxu0 %v3655
        %3699 = vmatpush.xpose.msra.mxu0 %v3654
        %3700 = vmatpush.xpose.msra.mxu0 %v3653
        %3701 = vmatmul.f32.gmra.mxu0 %v756
        %v3702 = vpop.f32.mrf.mxu0
        %v3703 = vadd.f32 0.0, %v3702
        %3704 = vdwg.mxu0
        %3705 = vmatpush.xpose.msra.mxu0 %v3684
        %3706 = vmatpush.xpose.msra.mxu0 %v3683
        %3707 = vmatpush.xpose.msra.mxu0 %v3682
        %3708 = vmatpush.xpose.msra.mxu0 %v3681
        %3709 = vmatpush.xpose.msra.mxu0 %v3680
        %3710 = vmatpush.xpose.msra.mxu0 %v3679
        %3711 = vmatpush.xpose.msra.mxu0 %v3678
        %3712 = vmatpush.xpose.msra.mxu0 %v3677
        %3713 = vmatpush.xpose.msra.mxu0 %v3676
        %3714 = vmatpush.xpose.msra.mxu0 %v3675
        %3715 = vmatpush.xpose.msra.mxu0 %v3674
        %3716 = vmatpush.xpose.msra.mxu0 %v3673
        %3717 = vmatpush.xpose.msra.mxu0 %v3672
        %3718 = vmatpush.xpose.msra.mxu0 %v3671
        %3719 = vmatpush.xpose.msra.mxu0 %v3670
        %3720 = vmatpush.xpose.msra.mxu0 %v3669
        %3721 = vmatmul.f32.gmra.mxu0 %v756
        %v3722 = vpop.f32.mrf.mxu0
        %v3723 = vadd.f32 0.0, %v3722
        %3724 = vdwg.mxu0
        %v3725 = vperm.slane %v3108, 0
        %v3726 = vperm.slane %v3123, 0
        %v3727 = vmul.f32 %v3703, %v3725
        %v3728 = vmul.f32 %v3723, %v3726
        %3729 = vst [vmem:[%s496 + $0x30] sm:$0xff] %v3727
        %3730 = vst [vmem:[%s496 + $0x38] sm:$0xff] %v3728
        %s3731 = sand.u32 %s306, 1
        %s3732 = scalar_lea.sflag [#allocation4], %s3731
        %s3733 = sand.u32 %s306, 1
        %s3734 = smul.addr %s3733, 64
        %s3735 = scalar_lea.vmem [#allocation10], %s3734
        // Predicated region
        $region85: #{tpu_custom_call.1} parent=67 // pred_check
          %p3736 = pneg %p316
        $region86: #{tpu_custom_call.1} parent=67 // pred_check_branch
          %3738 = sbr.rel (%p3736) target = $region88
        $region87: #{tpu_custom_call.1} parent=67 // pred_region
          %3740 = vsyncadd %s3732, 0
          %s3741 = smul.addr %s31, 8
          %s3742 = smul.addr %s3741, 8
          %s3743 = scalar_lea.hbm %s12, %s3742
          %s3744 = sshll.u32 %s3735, 4
          %s3745 = int_to_ptr.vmem [resolvable:$true] %s3744
          %s3746 = sshll.u32 %s3743, 4
          %s3747 = int_to_ptr.hbm [resolvable:$true] %s3746
          %3752 = dma.vmem_to_hbm [thread:$0]  %s3745, 1024, %s3747, %s3732, 256, 256, 16
        $region88: #{tpu_custom_call.1} parent=67 // pred_fallthru
          _
      $region68: #{tpu_custom_call.1} parent=5 // pred_fallthru
        _
      %p3753 = scmp.le.s32.totalorder 2, %s26
      // Predicated region
      $region89: #{tpu_custom_call.1} parent=5 // pred_check
        %p3754 = pneg %p3753
      $region90: #{tpu_custom_call.1} parent=5 // pred_check_branch
        %3756 = sbr.rel (%p3754) target = $region92
      $region91: #{tpu_custom_call.1} parent=5 // pred_region
        %s3757 = ssub.s32 %s26, 2
        // Predicated region
        $region93: #{tpu_custom_call.1} parent=91 // pred_check
          %p3758 = pneg %p322
        $region94: #{tpu_custom_call.1} parent=91 // pred_check_branch
          %3760 = sbr.rel (%p3758) target = $region96
        $region95: #{tpu_custom_call.1} parent=91 // pred_region
          %s3761 = sand.u32 %s307, 1
          %s3762 = scalar_lea.sflag [#allocation4], %s3761
          %s3763 = sand.u32 %s307, 1
          %s3764 = smul.addr %s3763, 64
          %s3765 = scalar_lea.vmem [#allocation10], %s3764
          %3767 = dma.done %s3762, 1024
        $region96: #{tpu_custom_call.1} parent=91 // pred_fallthru
          _
      $region92: #{tpu_custom_call.1} parent=5 // pred_fallthru
        _
    $region6: #{tpu_custom_call.1} parent=1 // loop_footer
      %s30 = sadd.s32 1, %s26
    $region7: #{tpu_custom_call.1} parent=1 // loop_footer_branch
      %25 = sbr.rel target = $region3
    $region8: #{tpu_custom_call.1} parent=1 // loop_exit
      _
    %3768 = vsyncpa [#allocation3], 1
    %s3769 = scalar_lea.sflag [#allocation3], 1
    %3770 = vsyncpa %s3769, 1
    %3771 = vsyncpa [#allocation4], 1
    %s3772 = scalar_lea.sflag [#allocation4], 1
    %3773 = vsyncpa %s3772, 1
    %3774 = vsyncpa [#allocation5], 1
    %s3775 = scalar_lea.sflag [#allocation5], 1
    %3776 = vsyncpa %s3775, 1
    %3777 = vsyncpa [#allocation8], 1

</llo_original>
